<compile_context>
chip_gen: v6e
topology: v6e:2x2x1
jax: 0.10.0
libtpu: 0.0.40
codegen_flags: <defaults>
</compile_context>

<pallas_src>
import functools

import jax
import jax.numpy as jnp
from jax.experimental import pallas as pl
from jax.experimental.pallas import tpu as pltpu


def _round_up(x, m):
    return (x + m - 1) // m * m


def _pick_tile(n, candidates, minimum):
    for c in candidates:
        if c >= minimum and n % c == 0:
            return c
    return minimum


# ----------------------------------------------------------------------------
# Generic tiled matmul-with-bias:  out[M, N] = A[M, K] @ W[K, N] + b.
# Grid = (N-tiles, M-tiles); N is OUTERMOST so the weight tile is resident in
# VMEM across the inner M sweep (no weight re-streaming per M tile).
# `zero_rows` zeroes the first rows of the output inside the kernel (used by
# fc_out to produce outputs[0] == 0 without a concat pass over the logits).
# ----------------------------------------------------------------------------
def _matmul_bias_kernel(a_ref, w_ref, b_ref, o_ref, *, zero_rows):
    out = (jnp.dot(a_ref[...], w_ref[...], preferred_element_type=jnp.float32)
           + b_ref[...])
    o_ref[...] = out.astype(o_ref.dtype)
    if zero_rows:
        @pl.when(pl.program_id(1) == 0)
        def _():
            o_ref[0:zero_rows, :] = jnp.zeros(
                (zero_rows, o_ref.shape[-1]), o_ref.dtype)


def _matmul_bias(a, w, b, *, out_dtype=jnp.float32, zero_rows=0):
    """a: [M, K] bf16, w: [K, N] bf16, b: [1, N] f32 -> [M, N] out_dtype."""
    M, K = a.shape
    _, N = w.shape
    assert M % 8 == 0 and N % 128 == 0
    assert zero_rows == 0 or (zero_rows % 8 == 0 and M % zero_rows == 0)
    tn = _pick_tile(N, (512, 256, 128), 128)
    tm = _pick_tile(M, (512, 256, 128, 64, 32, 16, 8), max(zero_rows, 8))
    out_bytes = jnp.dtype(out_dtype).itemsize
    return pl.pallas_call(
        functools.partial(_matmul_bias_kernel, zero_rows=zero_rows),
        out_shape=jax.ShapeDtypeStruct((M, N), out_dtype),
        grid_spec=pltpu.PrefetchScalarGridSpec(
            num_scalar_prefetch=0,
            grid=(N // tn, M // tm),        # N outermost -> weight stays resident
            in_specs=[
                pl.BlockSpec((tm, K), lambda j, i: (i, 0)),   # activations
                pl.BlockSpec((K, tn), lambda j, i: (0, j)),   # weight (N-tiled)
                pl.BlockSpec((1, tn), lambda j, i: (0, j)),   # bias
            ],
            out_specs=pl.BlockSpec((tm, tn), lambda j, i: (i, j)),
        ),
        compiler_params=pltpu.CompilerParams(
            dimension_semantics=("parallel", "parallel")),
        cost_estimate=pl.CostEstimate(
            flops=2 * M * K * N, transcendentals=0,
            bytes_accessed=M * K * 2 + K * N * 2 + N * 4 + M * N * out_bytes),
    )(a, w, b)


# ----------------------------------------------------------------------------
# Encoder recurrence: gates_x precomputed (bf16); each grid step runs TS LSTM
# steps with an unrolled loop, (h, c) carried in VMEM scratch, updates masked
# with (t < src_len).  Grid = (batch tiles ["parallel"], time blocks ["arbitrary"]).
# ----------------------------------------------------------------------------
def _encoder_lstm_kernel(gx_ref, len_ref, whh_ref, h_out_ref, c_out_ref,
                         h_s, c_s, *, ts):
    tb = pl.program_id(1)

    @pl.when(tb == 0)
    def _():
        h_s[...] = jnp.zeros_like(h_s)
        c_s[...] = jnp.zeros_like(c_s)

    Hp = h_s.shape[-1]
    whh = whh_ref[...]
    lens = len_ref[...]                               # [BT, 1] int32

    def step(s, carry):
        h, c = carry
        gates = gx_ref[s].astype(jnp.float32) + jnp.dot(
            h.astype(jnp.bfloat16), whh, preferred_element_type=jnp.float32)
        i_g = jax.nn.sigmoid(gates[:, 0 * Hp:1 * Hp])
        f_g = jax.nn.sigmoid(gates[:, 1 * Hp:2 * Hp])
        g_g = jnp.tanh(gates[:, 2 * Hp:3 * Hp])
        o_g = jax.nn.sigmoid(gates[:, 3 * Hp:4 * Hp])
        c_new = f_g * c + i_g * g_g
        h_new = o_g * jnp.tanh(c_new)
        m = lens > (tb * ts + s)                      # update while t < src_len
        return jnp.where(m, h_new, h), jnp.where(m, c_new, c)

    h, c = jax.lax.fori_loop(0, ts, step, (h_s[...], c_s[...]), unroll=True)
    h_s[...] = h
    c_s[...] = c

    @pl.when(tb == pl.num_programs(1) - 1)
    def _():
        h_out_ref[...] = h
        c_out_ref[...] = c


def _run_encoder(gx, len_col, whh, *, BT, Hp, ts):
    Tp, Bp, _ = gx.shape
    grid_spec = pltpu.PrefetchScalarGridSpec(
        num_scalar_prefetch=0,
        grid=(Bp // BT, Tp // ts),
        in_specs=[
            pl.BlockSpec((ts, BT, 4 * Hp), lambda b, t: (t, b, 0)),  # gx block
            pl.BlockSpec((BT, 1), lambda b, t: (b, 0)),              # src_len
            pl.BlockSpec((Hp, 4 * Hp), lambda b, t: (0, 0)),         # W_hh
        ],
        out_specs=[
            pl.BlockSpec((BT, Hp), lambda b, t: (b, 0)),             # final h
            pl.BlockSpec((BT, Hp), lambda b, t: (b, 0)),             # final c
        ],
        scratch_shapes=[pltpu.VMEM((BT, Hp), jnp.float32),
                        pltpu.VMEM((BT, Hp), jnp.float32)],
    )
    return pl.pallas_call(
        functools.partial(_encoder_lstm_kernel, ts=ts),
        out_shape=(jax.ShapeDtypeStruct((Bp, Hp), jnp.float32),
                   jax.ShapeDtypeStruct((Bp, Hp), jnp.float32)),
        grid_spec=grid_spec,
        compiler_params=pltpu.CompilerParams(
            dimension_semantics=("parallel", "arbitrary")),
    )(gx, len_col, whh)


# ----------------------------------------------------------------------------
# Decoder recurrence: TS steps per grid step, bf16 hidden states written in
# large lane-dense blocks.  Time is aligned to the OUTPUT index: global step 0
# is a dummy slot (holds h0; its logits row is zeroed by fc_out).
# ----------------------------------------------------------------------------
def _decoder_lstm_kernel(gx_ref, h0_ref, c0_ref, whh_ref, h_all_ref,
                         h_s, c_s, *, ts):
    tb = pl.program_id(1)

    @pl.when(tb == 0)
    def _():
        h_s[...] = h0_ref[...]
        c_s[...] = c0_ref[...]

    Hp = h_s.shape[-1]
    whh = whh_ref[...]

    def step(s, carry):
        h, c = carry
        gates = gx_ref[s].astype(jnp.float32) + jnp.dot(
            h.astype(jnp.bfloat16), whh, preferred_element_type=jnp.float32)
        i_g = jax.nn.sigmoid(gates[:, 0 * Hp:1 * Hp])
        f_g = jax.nn.sigmoid(gates[:, 1 * Hp:2 * Hp])
        g_g = jnp.tanh(gates[:, 2 * Hp:3 * Hp])
        o_g = jax.nn.sigmoid(gates[:, 3 * Hp:4 * Hp])
        c_new = f_g * c + i_g * g_g
        h_new = o_g * jnp.tanh(c_new)
        keep = (tb * ts + s) >= 1        # global step 0 is the dummy slot
        h = jnp.where(keep, h_new, h)
        c = jnp.where(keep, c_new, c)
        h_all_ref[s] = h.astype(jnp.bfloat16)
        return h, c

    h, c = jax.lax.fori_loop(0, ts, step, (h_s[...], c_s[...]), unroll=True)
    h_s[...] = h
    c_s[...] = c


def _run_decoder(gx, h0, c0, whh, *, BT, Hp, ts):
    Tp, Bp, _ = gx.shape
    grid_spec = pltpu.PrefetchScalarGridSpec(
        num_scalar_prefetch=0,
        grid=(Bp // BT, Tp // ts),
        in_specs=[
            pl.BlockSpec((ts, BT, 4 * Hp), lambda b, t: (t, b, 0)),  # gx block
            pl.BlockSpec((BT, Hp), lambda b, t: (b, 0)),             # h0
            pl.BlockSpec((BT, Hp), lambda b, t: (b, 0)),             # c0
            pl.BlockSpec((Hp, 4 * Hp), lambda b, t: (0, 0)),         # W_hh
        ],
        out_specs=pl.BlockSpec((ts, BT, Hp), lambda b, t: (t, b, 0)),
        scratch_shapes=[pltpu.VMEM((BT, Hp), jnp.float32),
                        pltpu.VMEM((BT, Hp), jnp.float32)],
    )
    return pl.pallas_call(
        functools.partial(_decoder_lstm_kernel, ts=ts),
        out_shape=jax.ShapeDtypeStruct((Tp, Bp, Hp), jnp.bfloat16),
        grid_spec=grid_spec,
        compiler_params=pltpu.CompilerParams(
            dimension_semantics=("parallel", "arbitrary")),
    )(gx, h0, c0, whh)


# ----------------------------------------------------------------------------
# Parameters: raw (PyTorch-like), then padded/cast for the kernels.
# ----------------------------------------------------------------------------
def init_params(key, *, src_vocab, trg_vocab, emb_dim, hidden_dim):
    ks = jax.random.split(key, 10)
    s = 0.1
    return {
        "enc_emb": jax.random.normal(ks[0], (src_vocab, emb_dim), jnp.float32) * s,
        "enc_wih": jax.random.normal(ks[1], (emb_dim, 4 * hidden_dim), jnp.float32) * s,
        "enc_whh": jax.random.normal(ks[2], (hidden_dim, 4 * hidden_dim), jnp.float32) * s,
        "enc_b":   jax.random.normal(ks[3], (1, 4 * hidden_dim), jnp.float32) * s,
        "dec_emb": jax.random.normal(ks[4], (trg_vocab, emb_dim), jnp.float32) * s,
        "dec_wih": jax.random.normal(ks[5], (emb_dim, 4 * hidden_dim), jnp.float32) * s,
        "dec_whh": jax.random.normal(ks[6], (hidden_dim, 4 * hidden_dim), jnp.float32) * s,
        "dec_b":   jax.random.normal(ks[7], (1, 4 * hidden_dim), jnp.float32) * s,
        "fc_w":    jax.random.normal(ks[8], (hidden_dim, trg_vocab), jnp.float32) * s,
        "fc_b":    jax.random.normal(ks[9], (1, trg_vocab), jnp.float32) * s,
    }


def prepare_params(raw, *, emb_dim, hidden_dim, src_vocab, trg_vocab):
    E, H, V = emb_dim, hidden_dim, trg_vocab
    Ep = _round_up(E, 128)
    Hp = _round_up(H, 128)
    Vp = _round_up(V, 128)

    def pad2(x, shape):
        return jnp.pad(x, [(0, s - d) for d, s in zip(x.shape, shape)])

    def pad_gates(w, in_dim, in_pad):
        w = w.reshape(in_dim, 4, H)
        w = jnp.pad(w, ((0, in_pad - in_dim), (0, 0), (0, Hp - H)))
        return w.reshape(in_pad, 4 * Hp)

    def pad_bias(b):
        b = b.reshape(4, H)
        b = jnp.pad(b, ((0, 0), (0, Hp - H)))
        return b.reshape(1, 4 * Hp)

    return {
        "enc_emb": pad2(raw["enc_emb"], (src_vocab, Ep)).astype(jnp.bfloat16),
        "enc_wih": pad_gates(raw["enc_wih"], E, Ep).astype(jnp.bfloat16),
        "enc_whh": pad_gates(raw["enc_whh"], H, Hp).astype(jnp.bfloat16),
        "enc_b":   pad_bias(raw["enc_b"]).astype(jnp.float32),
        "dec_emb": pad2(raw["dec_emb"], (trg_vocab, Ep)).astype(jnp.bfloat16),
        "dec_wih": pad_gates(raw["dec_wih"], E, Ep).astype(jnp.bfloat16),
        "dec_whh": pad_gates(raw["dec_whh"], H, Hp).astype(jnp.bfloat16),
        "dec_b":   pad_bias(raw["dec_b"]).astype(jnp.float32),
        "fc_w":    pad2(raw["fc_w"], (Hp, Vp)).astype(jnp.bfloat16),
        "fc_b":    pad2(raw["fc_b"], (1, Vp)).astype(jnp.float32),
    }


# ----------------------------------------------------------------------------
# Forward pass (mirrors seq2seq.forward): outputs[0] = 0, teacher forcing.
# ----------------------------------------------------------------------------
@functools.partial(jax.jit, static_argnames=("trg_vocab",))
def seq2seq_forward(params, src, src_len, trg, *, trg_vocab):
    TS = 8                                   # timesteps per recurrence grid step
    T_src, B = src.shape
    T_trg = trg.shape[0]
    assert T_src >= 1 and T_trg >= 2, "need at least 1 src and 2 trg steps"

    V = trg_vocab
    Ep = params["enc_wih"].shape[0]
    Hp = params["enc_whh"].shape[0]
    Vp = params["fc_w"].shape[1]
    Bp = max(_round_up(B, 8), 8)
    n_btiles = 2 if (Bp >= 16 and Bp % 16 == 0) else 1   # megacore batch split
    BT = Bp // n_btiles

    T_src_p = _round_up(T_src, TS)
    T_out_p = _round_up(T_trg, TS)

    # ---- encoder: embed, single pad covering both time and batch ----
    src_emb = jnp.take(params["enc_emb"], src, axis=0)          # [T_src, B, Ep] bf16
    src_emb = jnp.pad(src_emb, ((0, T_src_p - T_src), (0, Bp - B), (0, 0)))
    gx_enc = _matmul_bias(src_emb.reshape(T_src_p * Bp, Ep),
                          params["enc_wih"], params["enc_b"],
                          out_dtype=jnp.bfloat16)
    gx_enc = gx_enc.reshape(T_src_p, Bp, 4 * Hp)

    # src lengths (padded batch rows get 0 -> their state stays zero / unused)
    len_col = jnp.pad(src_len.astype(jnp.int32), (0, Bp - B)).reshape(Bp, 1)

    h, c = _run_encoder(gx_enc, len_col, params["enc_whh"], BT=BT, Hp=Hp, ts=TS)

    # ---- decoder inputs aligned to OUTPUT step t: token[t] = trg[t-1] ----
    dec_tok = jnp.zeros((T_out_p, B), jnp.int32).at[1:T_trg].set(
        trg[:-1].astype(jnp.int32))
    dec_emb = jnp.take(params["dec_emb"], dec_tok, axis=0)      # [T_out_p, B, Ep]
    dec_emb = jnp.pad(dec_emb, ((0, 0), (0, Bp - B), (0, 0)))
    gx_dec = _matmul_bias(dec_emb.reshape(T_out_p * Bp, Ep),
                          params["dec_wih"], params["dec_b"],
                          out_dtype=jnp.bfloat16)
    gx_dec = gx_dec.reshape(T_out_p, Bp, 4 * Hp)

    # ---- decoder recurrence (bf16 hidden states, time-blocked) ----
    h_all = _run_decoder(gx_dec, h, c, params["dec_whh"], BT=BT, Hp=Hp, ts=TS)

    # ---- fc_out: one weight-resident matmul over all steps; the t=0 rows are
    #      zeroed inside the kernel so no zeros+concat pass is needed. ----
    logits = _matmul_bias(h_all.reshape(T_out_p * Bp, Hp),
                          params["fc_w"], params["fc_b"],
                          out_dtype=jnp.float32, zero_rows=Bp)
    logits = logits.reshape(T_out_p, Bp, Vp)
    return logits[:T_trg, :B, :V]            # [T_trg, B, V]; row 0 is exactly 0


# TODO(synk): seq2seq.predict (greedy argmax decoding with data-dependent
# early stop) has no clean static-shaped Pallas equivalent and is not
# implemented here.


if __name__ == "__main__":
    SRC_VOCAB, TRG_VOCAB = 16, 12
    EMB_DIM, HIDDEN = 16, 32
    T_SRC, T_TRG, BATCH = 10, 8, 2

    key = jax.random.PRNGKey(0)
    k_param, k_src, k_trg = jax.random.split(key, 3)

    raw = init_params(k_param, src_vocab=SRC_VOCAB, trg_vocab=TRG_VOCAB,
                      emb_dim=EMB_DIM, hidden_dim=HIDDEN)
    params = prepare_params(raw, emb_dim=EMB_DIM, hidden_dim=HIDDEN,
                            src_vocab=SRC_VOCAB, trg_vocab=TRG_VOCAB)

    src = jax.random.randint(k_src, (T_SRC, BATCH), 0, SRC_VOCAB, jnp.int32)
    trg = jax.random.randint(k_trg, (T_TRG, BATCH), 0, TRG_VOCAB, jnp.int32)
    src_len = jnp.array([T_SRC, T_SRC - 3], dtype=jnp.int32)

    outputs = seq2seq_forward(params, src, src_len, trg, trg_vocab=TRG_VOCAB)
    jax.block_until_ready(outputs)

    assert outputs.shape == (T_TRG, BATCH, TRG_VOCAB)
    assert outputs.dtype == jnp.float32
    assert bool(jnp.all(outputs[0] == 0.0))
    assert bool(jnp.all(jnp.isfinite(outputs)))
    print("KERNEL_OK")
</pallas_src>

<mosaic_0001>
module attributes {stable_mosaic.version = 11 : i64} {
  func.func @_matmul_bias_kernel(%arg0: i32, %arg1: i32, %arg2: memref<64x128xbf16, #tpu.memory_space<vmem>>, %arg3: memref<128x512xbf16, #tpu.memory_space<vmem>>, %arg4: memref<1x512xf32, #tpu.memory_space<vmem>>, %arg5: memref<64x512xbf16, #tpu.memory_space<vmem>>) attributes {dimension_semantics = [#tpu.dimension_semantics<parallel>, #tpu.dimension_semantics<parallel>], iteration_bounds = array<i64: 1, 1>, scalar_prefetch = 0 : i64, scratch_operands = 0 : i64, tpu.core_type = #tpu.core_type<tc>, window_params = [{transform_indices = @transform_0, window_bounds = array<i64: 64, 128>}, {transform_indices = @transform_1, window_bounds = array<i64: 128, 512>}, {transform_indices = @transform_2, window_bounds = array<i64: 1, 512>}, {transform_indices = @transform_3, window_bounds = array<i64: 64, 512>}]} {
    %c0 = arith.constant 0 : index
    %c0_0 = arith.constant 0 : index
    %0 = vector.load %arg2[%c0, %c0_0] : memref<64x128xbf16, #tpu.memory_space<vmem>>, vector<64x128xbf16>
    %c0_1 = arith.constant 0 : index
    %c0_2 = arith.constant 0 : index
    %1 = vector.load %arg3[%c0_1, %c0_2] : memref<128x512xbf16, #tpu.memory_space<vmem>>, vector<128x512xbf16>
    %cst = arith.constant dense<0.000000e+00> : vector<64x512xf32>
    %2 = tpu.matmul %0, %1, %cst {dimension_numbers = #tpu.dot_dimension_numbers<[1], [0], [0], [1], [0, 0, 1, 1], [], []>} : vector<64x128xbf16>, vector<128x512xbf16>, vector<64x512xf32> -> vector<64x512xf32>
    %c0_3 = arith.constant 0 : index
    %c0_4 = arith.constant 0 : index
    %3 = vector.load %arg4[%c0_3, %c0_4] : memref<1x512xf32, #tpu.memory_space<vmem>>, vector<1x512xf32>
    %4 = vector.broadcast %3 : vector<1x512xf32> to vector<64x512xf32>
    %5 = arith.addf %2, %4 : vector<64x512xf32>
    %6 = arith.truncf %5 : vector<64x512xf32> to vector<64x512xbf16>
    %c0_5 = arith.constant 0 : index
    %c0_6 = arith.constant 0 : index
    %7 = vector.load %arg5[%c0_5, %c0_6] : memref<64x512xbf16, #tpu.memory_space<vmem>>, vector<64x512xbf16>
    tpu.vector_store %arg5[%c0_5, %c0_6], %6 {strides = array<i32>} : memref<64x512xbf16, #tpu.memory_space<vmem>>, vector<64x512xbf16>,
    return
  }
  func.func @transform_0(%arg0: i32, %arg1: i32) -> (i32, i32) {
    %c0_i32 = arith.constant 0 : i32
    %c0_i32_0 = arith.constant 0 : i32
    return %arg1, %c0_i32 : i32, i32
  }
  func.func @transform_1(%arg0: i32, %arg1: i32) -> (i32, i32) {
    %c0_i32 = arith.constant 0 : i32
    %c0_i32_0 = arith.constant 0 : i32
    return %c0_i32, %arg0 : i32, i32
  }
  func.func @transform_2(%arg0: i32, %arg1: i32) -> (i32, i32) {
    %c0_i32 = arith.constant 0 : i32
    %c0_i32_0 = arith.constant 0 : i32
    return %c0_i32, %arg0 : i32, i32
  }
  func.func @transform_3(%arg0: i32, %arg1: i32) -> (i32, i32) {
    %c0_i32 = arith.constant 0 : i32
    return %arg1, %arg0 : i32, i32
  }
}

module attributes {stable_mosaic.version = 11 : i64} {
  func.func @_decoder_lstm_kernel(%arg0: i32, %arg1: i32, %arg2: memref<8x8x512xbf16, #tpu.memory_space<vmem>>, %arg3: memref<8x128xf32, #tpu.memory_space<vmem>>, %arg4: memref<8x128xf32, #tpu.memory_space<vmem>>, %arg5: memref<128x512xbf16, #tpu.memory_space<vmem>>, %arg6: memref<8x8x128xbf16, #tpu.memory_space<vmem>>, %arg7: memref<8x128xf32, #tpu.memory_space<vmem>>, %arg8: memref<8x128xf32, #tpu.memory_space<vmem>>) attributes {dimension_semantics = [#tpu.dimension_semantics<parallel>, #tpu.dimension_semantics<arbitrary>], iteration_bounds = array<i64: 1, 1>, scalar_prefetch = 0 : i64, scratch_operands = 2 : i64, tpu.core_type = #tpu.core_type<tc>, window_params = [{transform_indices = @transform_0, window_bounds = array<i64: 8, 8, 512>}, {transform_indices = @transform_1, window_bounds = array<i64: 8, 128>}, {transform_indices = @transform_2, window_bounds = array<i64: 8, 128>}, {pipeline_mode = #tpu.pipeline_mode<synchronous>, transform_indices = @transform_3, window_bounds = array<i64: 128, 512>}, {transform_indices = @transform_4, window_bounds = array<i64: 8, 8, 128>}]} {
    %c0_i32 = arith.constant 0 : i32
    %0 = arith.cmpi eq, %arg1, %c0_i32 : i32
    %1 = arith.extui %0 : i1 to i32
    %c0_i32_0 = arith.constant 0 : i32
    %2 = arith.cmpi ne, %1, %c0_i32_0 : i32
    scf.if %2 {
      %c0_90 = arith.constant 0 : index
      %c0_91 = arith.constant 0 : index
      %344 = vector.load %arg3[%c0_90, %c0_91] : memref<8x128xf32, #tpu.memory_space<vmem>>, vector<8x128xf32>
      %c0_92 = arith.constant 0 : index
      %c0_93 = arith.constant 0 : index
      %345 = vector.load %arg7[%c0_92, %c0_93] : memref<8x128xf32, #tpu.memory_space<vmem>>, vector<8x128xf32>
      tpu.vector_store %arg7[%c0_92, %c0_93], %344 {strides = array<i32>} : memref<8x128xf32, #tpu.memory_space<vmem>>, vector<8x128xf32>,
      %c0_94 = arith.constant 0 : index
      %c0_95 = arith.constant 0 : index
      %346 = vector.load %arg4[%c0_94, %c0_95] : memref<8x128xf32, #tpu.memory_space<vmem>>, vector<8x128xf32>
      %c0_96 = arith.constant 0 : index
      %c0_97 = arith.constant 0 : index
      %347 = vector.load %arg8[%c0_96, %c0_97] : memref<8x128xf32, #tpu.memory_space<vmem>>, vector<8x128xf32>
      tpu.vector_store %arg8[%c0_96, %c0_97], %346 {strides = array<i32>} : memref<8x128xf32, #tpu.memory_space<vmem>>, vector<8x128xf32>,
    } else {
    }
    %c0 = arith.constant 0 : index
    %c0_1 = arith.constant 0 : index
    %3 = vector.load %arg5[%c0, %c0_1] : memref<128x512xbf16, #tpu.memory_space<vmem>>, vector<128x512xbf16>
    %c0_2 = arith.constant 0 : index
    %c0_3 = arith.constant 0 : index
    %4 = vector.load %arg7[%c0_2, %c0_3] : memref<8x128xf32, #tpu.memory_space<vmem>>, vector<8x128xf32>
    %c0_4 = arith.constant 0 : index
    %c0_5 = arith.constant 0 : index
    %5 = vector.load %arg8[%c0_4, %c0_5] : memref<8x128xf32, #tpu.memory_space<vmem>>, vector<8x128xf32>
    %c0_i32_6 = arith.constant 0 : i32
    %6 = arith.index_cast %c0_i32_6 : i32 to index
    %c0_7 = arith.constant 0 : index
    %c0_8 = arith.constant 0 : index
    %7 = vector.load %arg2[%6, %c0_7, %c0_8] : memref<8x8x512xbf16, #tpu.memory_space<vmem>>, vector<1x8x512xbf16>
    %8 = vector.shape_cast %7 : vector<1x8x512xbf16> to vector<8x512xbf16>
    %9 = arith.extf %8 : vector<8x512xbf16> to vector<8x512xf32>
    %10 = arith.truncf %4 : vector<8x128xf32> to vector<8x128xbf16>
    %cst = arith.constant dense<0.000000e+00> : vector<8x512xf32>
    %11 = tpu.matmul %10, %3, %cst {dimension_numbers = #tpu.dot_dimension_numbers<[1], [0], [0], [1], [0, 0, 1, 1], [], []>} : vector<8x128xbf16>, vector<128x512xbf16>, vector<8x512xf32> -> vector<8x512xf32>
    %12 = arith.addf %9, %11 : vector<8x512xf32>
    %13 = vector.extract_strided_slice %12 {offsets = [0, 0], sizes = [8, 128], strides = [1, 1]} : vector<8x512xf32> to vector<8x128xf32>
    %14 = arith.negf %13 : vector<8x128xf32>
    %15 = math.exp %14 : vector<8x128xf32>
    %cst_9 = arith.constant 1.000000e+00 : f32
    %16 = vector.broadcast %cst_9 : f32 to vector<8x128xf32>
    %17 = arith.addf %16, %15 : vector<8x128xf32>
    %18 = arith.divf %16, %17 : vector<8x128xf32>
    %19 = vector.extract_strided_slice %12 {offsets = [0, 128], sizes = [8, 128], strides = [1, 1]} : vector<8x512xf32> to vector<8x128xf32>
    %20 = arith.negf %19 : vector<8x128xf32>
    %21 = math.exp %20 : vector<8x128xf32>
    %cst_10 = arith.constant 1.000000e+00 : f32
    %22 = vector.broadcast %cst_10 : f32 to vector<8x128xf32>
    %23 = arith.addf %22, %21 : vector<8x128xf32>
    %24 = arith.divf %22, %23 : vector<8x128xf32>
    %25 = vector.extract_strided_slice %12 {offsets = [0, 256], sizes = [8, 128], strides = [1, 1]} : vector<8x512xf32> to vector<8x128xf32>
    %26 = math.tanh %25 : vector<8x128xf32>
    %27 = vector.extract_strided_slice %12 {offsets = [0, 384], sizes = [8, 128], strides = [1, 1]} : vector<8x512xf32> to vector<8x128xf32>
    %28 = arith.negf %27 : vector<8x128xf32>
    %29 = math.exp %28 : vector<8x128xf32>
    %cst_11 = arith.constant 1.000000e+00 : f32
    %30 = vector.broadcast %cst_11 : f32 to vector<8x128xf32>
    %31 = arith.addf %30, %29 : vector<8x128xf32>
    %32 = arith.divf %30, %31 : vector<8x128xf32>
    %33 = arith.mulf %24, %5 : vector<8x128xf32>
    %34 = arith.mulf %18, %26 : vector<8x128xf32>
    %35 = arith.addf %33, %34 : vector<8x128xf32>
    %36 = math.tanh %35 : vector<8x128xf32>
    %37 = arith.mulf %32, %36 : vector<8x128xf32>
    %c8_i32 = arith.constant 8 : i32
    %38 = arith.muli %arg1, %c8_i32 : i32
    %39 = arith.addi %38, %c0_i32_6 : i32
    %c1_i32 = arith.constant 1 : i32
    %40 = arith.cmpi sge, %39, %c1_i32 : i32
    %41 = arith.select %40, %37, %4 : vector<8x128xf32>
    %42 = arith.select %40, %35, %5 : vector<8x128xf32>
    %43 = arith.truncf %41 : vector<8x128xf32> to vector<8x128xbf16>
    %44 = arith.index_cast %c0_i32_6 : i32 to index
    %c0_12 = arith.constant 0 : index
    %c0_13 = arith.constant 0 : index
    %45 = vector.load %arg6[%44, %c0_12, %c0_13] : memref<8x8x128xbf16, #tpu.memory_space<vmem>>, vector<1x8x128xbf16>
    %46 = vector.shape_cast %45 : vector<1x8x128xbf16> to vector<8x128xbf16>
    %47 = vector.shape_cast %43 : vector<8x128xbf16> to vector<1x8x128xbf16>
    tpu.vector_store %arg6[%44, %c0_12, %c0_13], %47 {strides = array<i32>} : memref<8x8x128xbf16, #tpu.memory_space<vmem>>, vector<1x8x128xbf16>,
    %c1_i32_14 = arith.constant 1 : i32
    %48 = arith.index_cast %c1_i32_14 : i32 to index
    %c0_15 = arith.constant 0 : index
    %c0_16 = arith.constant 0 : index
    %49 = vector.load %arg2[%48, %c0_15, %c0_16] : memref<8x8x512xbf16, #tpu.memory_space<vmem>>, vector<1x8x512xbf16>
    %50 = vector.shape_cast %49 : vector<1x8x512xbf16> to vector<8x512xbf16>
    %51 = arith.extf %50 : vector<8x512xbf16> to vector<8x512xf32>
    %52 = arith.truncf %41 : vector<8x128xf32> to vector<8x128xbf16>
    %cst_17 = arith.constant dense<0.000000e+00> : vector<8x512xf32>
    %53 = tpu.matmul %52, %3, %cst_17 {dimension_numbers = #tpu.dot_dimension_numbers<[1], [0], [0], [1], [0, 0, 1, 1], [], []>} : vector<8x128xbf16>, vector<128x512xbf16>, vector<8x512xf32> -> vector<8x512xf32>
    %54 = arith.addf %51, %53 : vector<8x512xf32>
    %55 = vector.extract_strided_slice %54 {offsets = [0, 0], sizes = [8, 128], strides = [1, 1]} : vector<8x512xf32> to vector<8x128xf32>
    %56 = arith.negf %55 : vector<8x128xf32>
    %57 = math.exp %56 : vector<8x128xf32>
    %cst_18 = arith.constant 1.000000e+00 : f32
    %58 = vector.broadcast %cst_18 : f32 to vector<8x128xf32>
    %59 = arith.addf %58, %57 : vector<8x128xf32>
    %60 = arith.divf %58, %59 : vector<8x128xf32>
    %61 = vector.extract_strided_slice %54 {offsets = [0, 128], sizes = [8, 128], strides = [1, 1]} : vector<8x512xf32> to vector<8x128xf32>
    %62 = arith.negf %61 : vector<8x128xf32>
    %63 = math.exp %62 : vector<8x128xf32>
    %cst_19 = arith.constant 1.000000e+00 : f32
    %64 = vector.broadcast %cst_19 : f32 to vector<8x128xf32>
    %65 = arith.addf %64, %63 : vector<8x128xf32>
    %66 = arith.divf %64, %65 : vector<8x128xf32>
    %67 = vector.extract_strided_slice %54 {offsets = [0, 256], sizes = [8, 128], strides = [1, 1]} : vector<8x512xf32> to vector<8x128xf32>
    %68 = math.tanh %67 : vector<8x128xf32>
    %69 = vector.extract_strided_slice %54 {offsets = [0, 384], sizes = [8, 128], strides = [1, 1]} : vector<8x512xf32> to vector<8x128xf32>
    %70 = arith.negf %69 : vector<8x128xf32>
    %71 = math.exp %70 : vector<8x128xf32>
    %cst_20 = arith.constant 1.000000e+00 : f32
    %72 = vector.broadcast %cst_20 : f32 to vector<8x128xf32>
    %73 = arith.addf %72, %71 : vector<8x128xf32>
    %74 = arith.divf %72, %73 : vector<8x128xf32>
    %75 = arith.mulf %66, %42 : vector<8x128xf32>
    %76 = arith.mulf %60, %68 : vector<8x128xf32>
    %77 = arith.addf %75, %76 : vector<8x128xf32>
    %78 = math.tanh %77 : vector<8x128xf32>
    %79 = arith.mulf %74, %78 : vector<8x128xf32>
    %c8_i32_21 = arith.constant 8 : i32
    %80 = arith.muli %arg1, %c8_i32_21 : i32
    %81 = arith.addi %80, %c1_i32_14 : i32
    %c1_i32_22 = arith.constant 1 : i32
    %82 = arith.cmpi sge, %81, %c1_i32_22 : i32
    %83 = arith.select %82, %79, %41 : vector<8x128xf32>
    %84 = arith.select %82, %77, %42 : vector<8x128xf32>
    %85 = arith.truncf %83 : vector<8x128xf32> to vector<8x128xbf16>
    %86 = arith.index_cast %c1_i32_14 : i32 to index
    %c0_23 = arith.constant 0 : index
    %c0_24 = arith.constant 0 : index
    %87 = vector.load %arg6[%86, %c0_23, %c0_24] : memref<8x8x128xbf16, #tpu.memory_space<vmem>>, vector<1x8x128xbf16>
    %88 = vector.shape_cast %87 : vector<1x8x128xbf16> to vector<8x128xbf16>
    %89 = vector.shape_cast %85 : vector<8x128xbf16> to vector<1x8x128xbf16>
    tpu.vector_store %arg6[%86, %c0_23, %c0_24], %89 {strides = array<i32>} : memref<8x8x128xbf16, #tpu.memory_space<vmem>>, vector<1x8x128xbf16>,
    %c2_i32 = arith.constant 2 : i32
    %90 = arith.index_cast %c2_i32 : i32 to index
    %c0_25 = arith.constant 0 : index
    %c0_26 = arith.constant 0 : index
    %91 = vector.load %arg2[%90, %c0_25, %c0_26] : memref<8x8x512xbf16, #tpu.memory_space<vmem>>, vector<1x8x512xbf16>
    %92 = vector.shape_cast %91 : vector<1x8x512xbf16> to vector<8x512xbf16>
    %93 = arith.extf %92 : vector<8x512xbf16> to vector<8x512xf32>
    %94 = arith.truncf %83 : vector<8x128xf32> to vector<8x128xbf16>
    %cst_27 = arith.constant dense<0.000000e+00> : vector<8x512xf32>
    %95 = tpu.matmul %94, %3, %cst_27 {dimension_numbers = #tpu.dot_dimension_numbers<[1], [0], [0], [1], [0, 0, 1, 1], [], []>} : vector<8x128xbf16>, vector<128x512xbf16>, vector<8x512xf32> -> vector<8x512xf32>
    %96 = arith.addf %93, %95 : vector<8x512xf32>
    %97 = vector.extract_strided_slice %96 {offsets = [0, 0], sizes = [8, 128], strides = [1, 1]} : vector<8x512xf32> to vector<8x128xf32>
    %98 = arith.negf %97 : vector<8x128xf32>
    %99 = math.exp %98 : vector<8x128xf32>
    %cst_28 = arith.constant 1.000000e+00 : f32
    %100 = vector.broadcast %cst_28 : f32 to vector<8x128xf32>
    %101 = arith.addf %100, %99 : vector<8x128xf32>
    %102 = arith.divf %100, %101 : vector<8x128xf32>
    %103 = vector.extract_strided_slice %96 {offsets = [0, 128], sizes = [8, 128], strides = [1, 1]} : vector<8x512xf32> to vector<8x128xf32>
    %104 = arith.negf %103 : vector<8x128xf32>
    %105 = math.exp %104 : vector<8x128xf32>
    %cst_29 = arith.constant 1.000000e+00 : f32
    %106 = vector.broadcast %cst_29 : f32 to vector<8x128xf32>
    %107 = arith.addf %106, %105 : vector<8x128xf32>
    %108 = arith.divf %106, %107 : vector<8x128xf32>
    %109 = vector.extract_strided_slice %96 {offsets = [0, 256], sizes = [8, 128], strides = [1, 1]} : vector<8x512xf32> to vector<8x128xf32>
    %110 = math.tanh %109 : vector<8x128xf32>
    %111 = vector.extract_strided_slice %96 {offsets = [0, 384], sizes = [8, 128], strides = [1, 1]} : vector<8x512xf32> to vector<8x128xf32>
    %112 = arith.negf %111 : vector<8x128xf32>
    %113 = math.exp %112 : vector<8x128xf32>
    %cst_30 = arith.constant 1.000000e+00 : f32
    %114 = vector.broadcast %cst_30 : f32 to vector<8x128xf32>
    %115 = arith.addf %114, %113 : vector<8x128xf32>
    %116 = arith.divf %114, %115 : vector<8x128xf32>
    %117 = arith.mulf %108, %84 : vector<8x128xf32>
    %118 = arith.mulf %102, %110 : vector<8x128xf32>
    %119 = arith.addf %117, %118 : vector<8x128xf32>
    %120 = math.tanh %119 : vector<8x128xf32>
    %121 = arith.mulf %116, %120 : vector<8x128xf32>
    %c8_i32_31 = arith.constant 8 : i32
    %122 = arith.muli %arg1, %c8_i32_31 : i32
    %123 = arith.addi %122, %c2_i32 : i32
    %c1_i32_32 = arith.constant 1 : i32
    %124 = arith.cmpi sge, %123, %c1_i32_32 : i32
    %125 = arith.select %124, %121, %83 : vector<8x128xf32>
    %126 = arith.select %124, %119, %84 : vector<8x128xf32>
    %127 = arith.truncf %125 : vector<8x128xf32> to vector<8x128xbf16>
    %128 = arith.index_cast %c2_i32 : i32 to index
    %c0_33 = arith.constant 0 : index
    %c0_34 = arith.constant 0 : index
    %129 = vector.load %arg6[%128, %c0_33, %c0_34] : memref<8x8x128xbf16, #tpu.memory_space<vmem>>, vector<1x8x128xbf16>
    %130 = vector.shape_cast %129 : vector<1x8x128xbf16> to vector<8x128xbf16>
    %131 = vector.shape_cast %127 : vector<8x128xbf16> to vector<1x8x128xbf16>
    tpu.vector_store %arg6[%128, %c0_33, %c0_34], %131 {strides = array<i32>} : memref<8x8x128xbf16, #tpu.memory_space<vmem>>, vector<1x8x128xbf16>,
    %c3_i32 = arith.constant 3 : i32
    %132 = arith.index_cast %c3_i32 : i32 to index
    %c0_35 = arith.constant 0 : index
    %c0_36 = arith.constant 0 : index
    %133 = vector.load %arg2[%132, %c0_35, %c0_36] : memref<8x8x512xbf16, #tpu.memory_space<vmem>>, vector<1x8x512xbf16>
    %134 = vector.shape_cast %133 : vector<1x8x512xbf16> to vector<8x512xbf16>
    %135 = arith.extf %134 : vector<8x512xbf16> to vector<8x512xf32>
    %136 = arith.truncf %125 : vector<8x128xf32> to vector<8x128xbf16>
    %cst_37 = arith.constant dense<0.000000e+00> : vector<8x512xf32>
    %137 = tpu.matmul %136, %3, %cst_37 {dimension_numbers = #tpu.dot_dimension_numbers<[1], [0], [0], [1], [0, 0, 1, 1], [], []>} : vector<8x128xbf16>, vector<128x512xbf16>, vector<8x512xf32> -> vector<8x512xf32>
    %138 = arith.addf %135, %137 : vector<8x512xf32>
    %139 = vector.extract_strided_slice %138 {offsets = [0, 0], sizes = [8, 128], strides = [1, 1]} : vector<8x512xf32> to vector<8x128xf32>
    %140 = arith.negf %139 : vector<8x128xf32>
    %141 = math.exp %140 : vector<8x128xf32>
    %cst_38 = arith.constant 1.000000e+00 : f32
    %142 = vector.broadcast %cst_38 : f32 to vector<8x128xf32>
    %143 = arith.addf %142, %141 : vector<8x128xf32>
    %144 = arith.divf %142, %143 : vector<8x128xf32>
    %145 = vector.extract_strided_slice %138 {offsets = [0, 128], sizes = [8, 128], strides = [1, 1]} : vector<8x512xf32> to vector<8x128xf32>
    %146 = arith.negf %145 : vector<8x128xf32>
    %147 = math.exp %146 : vector<8x128xf32>
    %cst_39 = arith.constant 1.000000e+00 : f32
    %148 = vector.broadcast %cst_39 : f32 to vector<8x128xf32>
    %149 = arith.addf %148, %147 : vector<8x128xf32>
    %150 = arith.divf %148, %149 : vector<8x128xf32>
    %151 = vector.extract_strided_slice %138 {offsets = [0, 256], sizes = [8, 128], strides = [1, 1]} : vector<8x512xf32> to vector<8x128xf32>
    %152 = math.tanh %151 : vector<8x128xf32>
    %153 = vector.extract_strided_slice %138 {offsets = [0, 384], sizes = [8, 128], strides = [1, 1]} : vector<8x512xf32> to vector<8x128xf32>
    %154 = arith.negf %153 : vector<8x128xf32>
    %155 = math.exp %154 : vector<8x128xf32>
    %cst_40 = arith.constant 1.000000e+00 : f32
    %156 = vector.broadcast %cst_40 : f32 to vector<8x128xf32>
    %157 = arith.addf %156, %155 : vector<8x128xf32>
    %158 = arith.divf %156, %157 : vector<8x128xf32>
    %159 = arith.mulf %150, %126 : vector<8x128xf32>
    %160 = arith.mulf %144, %152 : vector<8x128xf32>
    %161 = arith.addf %159, %160 : vector<8x128xf32>
    %162 = math.tanh %161 : vector<8x128xf32>
    %163 = arith.mulf %158, %162 : vector<8x128xf32>
    %c8_i32_41 = arith.constant 8 : i32
    %164 = arith.muli %arg1, %c8_i32_41 : i32
    %165 = arith.addi %164, %c3_i32 : i32
    %c1_i32_42 = arith.constant 1 : i32
    %166 = arith.cmpi sge, %165, %c1_i32_42 : i32
    %167 = arith.select %166, %163, %125 : vector<8x128xf32>
    %168 = arith.select %166, %161, %126 : vector<8x128xf32>
    %169 = arith.truncf %167 : vector<8x128xf32> to vector<8x128xbf16>
    %170 = arith.index_cast %c3_i32 : i32 to index
    %c0_43 = arith.constant 0 : index
    %c0_44 = arith.constant 0 : index
    %171 = vector.load %arg6[%170, %c0_43, %c0_44] : memref<8x8x128xbf16, #tpu.memory_space<vmem>>, vector<1x8x128xbf16>
    %172 = vector.shape_cast %171 : vector<1x8x128xbf16> to vector<8x128xbf16>
    %173 = vector.shape_cast %169 : vector<8x128xbf16> to vector<1x8x128xbf16>
    tpu.vector_store %arg6[%170, %c0_43, %c0_44], %173 {strides = array<i32>} : memref<8x8x128xbf16, #tpu.memory_space<vmem>>, vector<1x8x128xbf16>,
    %c4_i32 = arith.constant 4 : i32
    %174 = arith.index_cast %c4_i32 : i32 to index
    %c0_45 = arith.constant 0 : index
    %c0_46 = arith.constant 0 : index
    %175 = vector.load %arg2[%174, %c0_45, %c0_46] : memref<8x8x512xbf16, #tpu.memory_space<vmem>>, vector<1x8x512xbf16>
    %176 = vector.shape_cast %175 : vector<1x8x512xbf16> to vector<8x512xbf16>
    %177 = arith.extf %176 : vector<8x512xbf16> to vector<8x512xf32>
    %178 = arith.truncf %167 : vector<8x128xf32> to vector<8x128xbf16>
    %cst_47 = arith.constant dense<0.000000e+00> : vector<8x512xf32>
    %179 = tpu.matmul %178, %3, %cst_47 {dimension_numbers = #tpu.dot_dimension_numbers<[1], [0], [0], [1], [0, 0, 1, 1], [], []>} : vector<8x128xbf16>, vector<128x512xbf16>, vector<8x512xf32> -> vector<8x512xf32>
    %180 = arith.addf %177, %179 : vector<8x512xf32>
    %181 = vector.extract_strided_slice %180 {offsets = [0, 0], sizes = [8, 128], strides = [1, 1]} : vector<8x512xf32> to vector<8x128xf32>
    %182 = arith.negf %181 : vector<8x128xf32>
    %183 = math.exp %182 : vector<8x128xf32>
    %cst_48 = arith.constant 1.000000e+00 : f32
    %184 = vector.broadcast %cst_48 : f32 to vector<8x128xf32>
    %185 = arith.addf %184, %183 : vector<8x128xf32>
    %186 = arith.divf %184, %185 : vector<8x128xf32>
    %187 = vector.extract_strided_slice %180 {offsets = [0, 128], sizes = [8, 128], strides = [1, 1]} : vector<8x512xf32> to vector<8x128xf32>
    %188 = arith.negf %187 : vector<8x128xf32>
    %189 = math.exp %188 : vector<8x128xf32>
    %cst_49 = arith.constant 1.000000e+00 : f32
    %190 = vector.broadcast %cst_49 : f32 to vector<8x128xf32>
    %191 = arith.addf %190, %189 : vector<8x128xf32>
    %192 = arith.divf %190, %191 : vector<8x128xf32>
    %193 = vector.extract_strided_slice %180 {offsets = [0, 256], sizes = [8, 128], strides = [1, 1]} : vector<8x512xf32> to vector<8x128xf32>
    %194 = math.tanh %193 : vector<8x128xf32>
    %195 = vector.extract_strided_slice %180 {offsets = [0, 384], sizes = [8, 128], strides = [1, 1]} : vector<8x512xf32> to vector<8x128xf32>
    %196 = arith.negf %195 : vector<8x128xf32>
    %197 = math.exp %196 : vector<8x128xf32>
    %cst_50 = arith.constant 1.000000e+00 : f32
    %198 = vector.broadcast %cst_50 : f32 to vector<8x128xf32>
    %199 = arith.addf %198, %197 : vector<8x128xf32>
    %200 = arith.divf %198, %199 : vector<8x128xf32>
    %201 = arith.mulf %192, %168 : vector<8x128xf32>
    %202 = arith.mulf %186, %194 : vector<8x128xf32>
    %203 = arith.addf %201, %202 : vector<8x128xf32>
    %204 = math.tanh %203 : vector<8x128xf32>
    %205 = arith.mulf %200, %204 : vector<8x128xf32>
    %c8_i32_51 = arith.constant 8 : i32
    %206 = arith.muli %arg1, %c8_i32_51 : i32
    %207 = arith.addi %206, %c4_i32 : i32
    %c1_i32_52 = arith.constant 1 : i32
    %208 = arith.cmpi sge, %207, %c1_i32_52 : i32
    %209 = arith.select %208, %205, %167 : vector<8x128xf32>
    %210 = arith.select %208, %203, %168 : vector<8x128xf32>
    %211 = arith.truncf %209 : vector<8x128xf32> to vector<8x128xbf16>
    %212 = arith.index_cast %c4_i32 : i32 to index
    %c0_53 = arith.constant 0 : index
    %c0_54 = arith.constant 0 : index
    %213 = vector.load %arg6[%212, %c0_53, %c0_54] : memref<8x8x128xbf16, #tpu.memory_space<vmem>>, vector<1x8x128xbf16>
    %214 = vector.shape_cast %213 : vector<1x8x128xbf16> to vector<8x128xbf16>
    %215 = vector.shape_cast %211 : vector<8x128xbf16> to vector<1x8x128xbf16>
    tpu.vector_store %arg6[%212, %c0_53, %c0_54], %215 {strides = array<i32>} : memref<8x8x128xbf16, #tpu.memory_space<vmem>>, vector<1x8x128xbf16>,
    %c5_i32 = arith.constant 5 : i32
    %216 = arith.index_cast %c5_i32 : i32 to index
    %c0_55 = arith.constant 0 : index
    %c0_56 = arith.constant 0 : index
    %217 = vector.load %arg2[%216, %c0_55, %c0_56] : memref<8x8x512xbf16, #tpu.memory_space<vmem>>, vector<1x8x512xbf16>
    %218 = vector.shape_cast %217 : vector<1x8x512xbf16> to vector<8x512xbf16>
    %219 = arith.extf %218 : vector<8x512xbf16> to vector<8x512xf32>
    %220 = arith.truncf %209 : vector<8x128xf32> to vector<8x128xbf16>
    %cst_57 = arith.constant dense<0.000000e+00> : vector<8x512xf32>
    %221 = tpu.matmul %220, %3, %cst_57 {dimension_numbers = #tpu.dot_dimension_numbers<[1], [0], [0], [1], [0, 0, 1, 1], [], []>} : vector<8x128xbf16>, vector<128x512xbf16>, vector<8x512xf32> -> vector<8x512xf32>
    %222 = arith.addf %219, %221 : vector<8x512xf32>
    %223 = vector.extract_strided_slice %222 {offsets = [0, 0], sizes = [8, 128], strides = [1, 1]} : vector<8x512xf32> to vector<8x128xf32>
    %224 = arith.negf %223 : vector<8x128xf32>
    %225 = math.exp %224 : vector<8x128xf32>
    %cst_58 = arith.constant 1.000000e+00 : f32
    %226 = vector.broadcast %cst_58 : f32 to vector<8x128xf32>
    %227 = arith.addf %226, %225 : vector<8x128xf32>
    %228 = arith.divf %226, %227 : vector<8x128xf32>
    %229 = vector.extract_strided_slice %222 {offsets = [0, 128], sizes = [8, 128], strides = [1, 1]} : vector<8x512xf32> to vector<8x128xf32>
    %230 = arith.negf %229 : vector<8x128xf32>
    %231 = math.exp %230 : vector<8x128xf32>
    %cst_59 = arith.constant 1.000000e+00 : f32
    %232 = vector.broadcast %cst_59 : f32 to vector<8x128xf32>
    %233 = arith.addf %232, %231 : vector<8x128xf32>
    %234 = arith.divf %232, %233 : vector<8x128xf32>
    %235 = vector.extract_strided_slice %222 {offsets = [0, 256], sizes = [8, 128], strides = [1, 1]} : vector<8x512xf32> to vector<8x128xf32>
    %236 = math.tanh %235 : vector<8x128xf32>
    %237 = vector.extract_strided_slice %222 {offsets = [0, 384], sizes = [8, 128], strides = [1, 1]} : vector<8x512xf32> to vector<8x128xf32>
    %238 = arith.negf %237 : vector<8x128xf32>
    %239 = math.exp %238 : vector<8x128xf32>
    %cst_60 = arith.constant 1.000000e+00 : f32
    %240 = vector.broadcast %cst_60 : f32 to vector<8x128xf32>
    %241 = arith.addf %240, %239 : vector<8x128xf32>
    %242 = arith.divf %240, %241 : vector<8x128xf32>
    %243 = arith.mulf %234, %210 : vector<8x128xf32>
    %244 = arith.mulf %228, %236 : vector<8x128xf32>
    %245 = arith.addf %243, %244 : vector<8x128xf32>
    %246 = math.tanh %245 : vector<8x128xf32>
    %247 = arith.mulf %242, %246 : vector<8x128xf32>
    %c8_i32_61 = arith.constant 8 : i32
    %248 = arith.muli %arg1, %c8_i32_61 : i32
    %249 = arith.addi %248, %c5_i32 : i32
    %c1_i32_62 = arith.constant 1 : i32
    %250 = arith.cmpi sge, %249, %c1_i32_62 : i32
    %251 = arith.select %250, %247, %209 : vector<8x128xf32>
    %252 = arith.select %250, %245, %210 : vector<8x128xf32>
    %253 = arith.truncf %251 : vector<8x128xf32> to vector<8x128xbf16>
    %254 = arith.index_cast %c5_i32 : i32 to index
    %c0_63 = arith.constant 0 : index
    %c0_64 = arith.constant 0 : index
    %255 = vector.load %arg6[%254, %c0_63, %c0_64] : memref<8x8x128xbf16, #tpu.memory_space<vmem>>, vector<1x8x128xbf16>
    %256 = vector.shape_cast %255 : vector<1x8x128xbf16> to vector<8x128xbf16>
    %257 = vector.shape_cast %253 : vector<8x128xbf16> to vector<1x8x128xbf16>
    tpu.vector_store %arg6[%254, %c0_63, %c0_64], %257 {strides = array<i32>} : memref<8x8x128xbf16, #tpu.memory_space<vmem>>, vector<1x8x128xbf16>,
    %c6_i32 = arith.constant 6 : i32
    %258 = arith.index_cast %c6_i32 : i32 to index
    %c0_65 = arith.constant 0 : index
    %c0_66 = arith.constant 0 : index
    %259 = vector.load %arg2[%258, %c0_65, %c0_66] : memref<8x8x512xbf16, #tpu.memory_space<vmem>>, vector<1x8x512xbf16>
    %260 = vector.shape_cast %259 : vector<1x8x512xbf16> to vector<8x512xbf16>
    %261 = arith.extf %260 : vector<8x512xbf16> to vector<8x512xf32>
    %262 = arith.truncf %251 : vector<8x128xf32> to vector<8x128xbf16>
    %cst_67 = arith.constant dense<0.000000e+00> : vector<8x512xf32>
    %263 = tpu.matmul %262, %3, %cst_67 {dimension_numbers = #tpu.dot_dimension_numbers<[1], [0], [0], [1], [0, 0, 1, 1], [], []>} : vector<8x128xbf16>, vector<128x512xbf16>, vector<8x512xf32> -> vector<8x512xf32>
    %264 = arith.addf %261, %263 : vector<8x512xf32>
    %265 = vector.extract_strided_slice %264 {offsets = [0, 0], sizes = [8, 128], strides = [1, 1]} : vector<8x512xf32> to vector<8x128xf32>
    %266 = arith.negf %265 : vector<8x128xf32>
    %267 = math.exp %266 : vector<8x128xf32>
    %cst_68 = arith.constant 1.000000e+00 : f32
    %268 = vector.broadcast %cst_68 : f32 to vector<8x128xf32>
    %269 = arith.addf %268, %267 : vector<8x128xf32>
    %270 = arith.divf %268, %269 : vector<8x128xf32>
    %271 = vector.extract_strided_slice %264 {offsets = [0, 128], sizes = [8, 128], strides = [1, 1]} : vector<8x512xf32> to vector<8x128xf32>
    %272 = arith.negf %271 : vector<8x128xf32>
    %273 = math.exp %272 : vector<8x128xf32>
    %cst_69 = arith.constant 1.000000e+00 : f32
    %274 = vector.broadcast %cst_69 : f32 to vector<8x128xf32>
    %275 = arith.addf %274, %273 : vector<8x128xf32>
    %276 = arith.divf %274, %275 : vector<8x128xf32>
    %277 = vector.extract_strided_slice %264 {offsets = [0, 256], sizes = [8, 128], strides = [1, 1]} : vector<8x512xf32> to vector<8x128xf32>
    %278 = math.tanh %277 : vector<8x128xf32>
    %279 = vector.extract_strided_slice %264 {offsets = [0, 384], sizes = [8, 128], strides = [1, 1]} : vector<8x512xf32> to vector<8x128xf32>
    %280 = arith.negf %279 : vector<8x128xf32>
    %281 = math.exp %280 : vector<8x128xf32>
    %cst_70 = arith.constant 1.000000e+00 : f32
    %282 = vector.broadcast %cst_70 : f32 to vector<8x128xf32>
    %283 = arith.addf %282, %281 : vector<8x128xf32>
    %284 = arith.divf %282, %283 : vector<8x128xf32>
    %285 = arith.mulf %276, %252 : vector<8x128xf32>
    %286 = arith.mulf %270, %278 : vector<8x128xf32>
    %287 = arith.addf %285, %286 : vector<8x128xf32>
    %288 = math.tanh %287 : vector<8x128xf32>
    %289 = arith.mulf %284, %288 : vector<8x128xf32>
    %c8_i32_71 = arith.constant 8 : i32
    %290 = arith.muli %arg1, %c8_i32_71 : i32
    %291 = arith.addi %290, %c6_i32 : i32
    %c1_i32_72 = arith.constant 1 : i32
    %292 = arith.cmpi sge, %291, %c1_i32_72 : i32
    %293 = arith.select %292, %289, %251 : vector<8x128xf32>
    %294 = arith.select %292, %287, %252 : vector<8x128xf32>
    %295 = arith.truncf %293 : vector<8x128xf32> to vector<8x128xbf16>
    %296 = arith.index_cast %c6_i32 : i32 to index
    %c0_73 = arith.constant 0 : index
    %c0_74 = arith.constant 0 : index
    %297 = vector.load %arg6[%296, %c0_73, %c0_74] : memref<8x8x128xbf16, #tpu.memory_space<vmem>>, vector<1x8x128xbf16>
    %298 = vector.shape_cast %297 : vector<1x8x128xbf16> to vector<8x128xbf16>
    %299 = vector.shape_cast %295 : vector<8x128xbf16> to vector<1x8x128xbf16>
    tpu.vector_store %arg6[%296, %c0_73, %c0_74], %299 {strides = array<i32>} : memref<8x8x128xbf16, #tpu.memory_space<vmem>>, vector<1x8x128xbf16>,
    %c7_i32 = arith.constant 7 : i32
    %300 = arith.index_cast %c7_i32 : i32 to index
    %c0_75 = arith.constant 0 : index
    %c0_76 = arith.constant 0 : index
    %301 = vector.load %arg2[%300, %c0_75, %c0_76] : memref<8x8x512xbf16, #tpu.memory_space<vmem>>, vector<1x8x512xbf16>
    %302 = vector.shape_cast %301 : vector<1x8x512xbf16> to vector<8x512xbf16>
    %303 = arith.extf %302 : vector<8x512xbf16> to vector<8x512xf32>
    %304 = arith.truncf %293 : vector<8x128xf32> to vector<8x128xbf16>
    %cst_77 = arith.constant dense<0.000000e+00> : vector<8x512xf32>
    %305 = tpu.matmul %304, %3, %cst_77 {dimension_numbers = #tpu.dot_dimension_numbers<[1], [0], [0], [1], [0, 0, 1, 1], [], []>} : vector<8x128xbf16>, vector<128x512xbf16>, vector<8x512xf32> -> vector<8x512xf32>
    %306 = arith.addf %303, %305 : vector<8x512xf32>
    %307 = vector.extract_strided_slice %306 {offsets = [0, 0], sizes = [8, 128], strides = [1, 1]} : vector<8x512xf32> to vector<8x128xf32>
    %308 = arith.negf %307 : vector<8x128xf32>
    %309 = math.exp %308 : vector<8x128xf32>
    %cst_78 = arith.constant 1.000000e+00 : f32
    %310 = vector.broadcast %cst_78 : f32 to vector<8x128xf32>
    %311 = arith.addf %310, %309 : vector<8x128xf32>
    %312 = arith.divf %310, %311 : vector<8x128xf32>
    %313 = vector.extract_strided_slice %306 {offsets = [0, 128], sizes = [8, 128], strides = [1, 1]} : vector<8x512xf32> to vector<8x128xf32>
    %314 = arith.negf %313 : vector<8x128xf32>
    %315 = math.exp %314 : vector<8x128xf32>
    %cst_79 = arith.constant 1.000000e+00 : f32
    %316 = vector.broadcast %cst_79 : f32 to vector<8x128xf32>
    %317 = arith.addf %316, %315 : vector<8x128xf32>
    %318 = arith.divf %316, %317 : vector<8x128xf32>
    %319 = vector.extract_strided_slice %306 {offsets = [0, 256], sizes = [8, 128], strides = [1, 1]} : vector<8x512xf32> to vector<8x128xf32>
    %320 = math.tanh %319 : vector<8x128xf32>
    %321 = vector.extract_strided_slice %306 {offsets = [0, 384], sizes = [8, 128], strides = [1, 1]} : vector<8x512xf32> to vector<8x128xf32>
    %322 = arith.negf %321 : vector<8x128xf32>
    %323 = math.exp %322 : vector<8x128xf32>
    %cst_80 = arith.constant 1.000000e+00 : f32
    %324 = vector.broadcast %cst_80 : f32 to vector<8x128xf32>
    %325 = arith.addf %324, %323 : vector<8x128xf32>
    %326 = arith.divf %324, %325 : vector<8x128xf32>
    %327 = arith.mulf %318, %294 : vector<8x128xf32>
    %328 = arith.mulf %312, %320 : vector<8x128xf32>
    %329 = arith.addf %327, %328 : vector<8x128xf32>
    %330 = math.tanh %329 : vector<8x128xf32>
    %331 = arith.mulf %326, %330 : vector<8x128xf32>
    %c8_i32_81 = arith.constant 8 : i32
    %332 = arith.muli %arg1, %c8_i32_81 : i32
    %333 = arith.addi %332, %c7_i32 : i32
    %c1_i32_82 = arith.constant 1 : i32
    %334 = arith.cmpi sge, %333, %c1_i32_82 : i32
    %335 = arith.select %334, %331, %293 : vector<8x128xf32>
    %336 = arith.select %334, %329, %294 : vector<8x128xf32>
    %337 = arith.truncf %335 : vector<8x128xf32> to vector<8x128xbf16>
    %338 = arith.index_cast %c7_i32 : i32 to index
    %c0_83 = arith.constant 0 : index
    %c0_84 = arith.constant 0 : index
    %339 = vector.load %arg6[%338, %c0_83, %c0_84] : memref<8x8x128xbf16, #tpu.memory_space<vmem>>, vector<1x8x128xbf16>
    %340 = vector.shape_cast %339 : vector<1x8x128xbf16> to vector<8x128xbf16>
    %341 = vector.shape_cast %337 : vector<8x128xbf16> to vector<1x8x128xbf16>
    tpu.vector_store %arg6[%338, %c0_83, %c0_84], %341 {strides = array<i32>} : memref<8x8x128xbf16, #tpu.memory_space<vmem>>, vector<1x8x128xbf16>,
    %c8_i32_85 = arith.constant 8 : i32
    %c0_86 = arith.constant 0 : index
    %c0_87 = arith.constant 0 : index
    %342 = vector.load %arg7[%c0_86, %c0_87] : memref<8x128xf32, #tpu.memory_space<vmem>>, vector<8x128xf32>
    tpu.vector_store %arg7[%c0_86, %c0_87], %335 {strides = array<i32>} : memref<8x128xf32, #tpu.memory_space<vmem>>, vector<8x128xf32>,
    %c0_88 = arith.constant 0 : index
    %c0_89 = arith.constant 0 : index
    %343 = vector.load %arg8[%c0_88, %c0_89] : memref<8x128xf32, #tpu.memory_space<vmem>>, vector<8x128xf32>
    tpu.vector_store %arg8[%c0_88, %c0_89], %336 {strides = array<i32>} : memref<8x128xf32, #tpu.memory_space<vmem>>, vector<8x128xf32>,
    return
  }
  func.func @transform_0(%arg0: i32, %arg1: i32) -> (i32, i32, i32) {
    %c0_i32 = arith.constant 0 : i32
    %c0_i32_0 = arith.constant 0 : i32
    return %arg1, %arg0, %c0_i32 : i32, i32, i32
  }
  func.func @transform_1(%arg0: i32, %arg1: i32) -> (i32, i32) {
    %c0_i32 = arith.constant 0 : i32
    %c0_i32_0 = arith.constant 0 : i32
    return %arg0, %c0_i32 : i32, i32
  }
  func.func @transform_2(%arg0: i32, %arg1: i32) -> (i32, i32) {
    %c0_i32 = arith.constant 0 : i32
    %c0_i32_0 = arith.constant 0 : i32
    return %arg0, %c0_i32 : i32, i32
  }
  func.func @transform_3(%arg0: i32, %arg1: i32) -> (i32, i32) {
    %c0_i32 = arith.constant 0 : i32
    %c0_i32_0 = arith.constant 0 : i32
    %c0_i32_1 = arith.constant 0 : i32
    return %c0_i32, %c0_i32_0 : i32, i32
  }
  func.func @transform_4(%arg0: i32, %arg1: i32) -> (i32, i32, i32) {
    %c0_i32 = arith.constant 0 : i32
    %c0_i32_0 = arith.constant 0 : i32
    return %arg1, %arg0, %c0_i32 : i32, i32, i32
  }
}

module attributes {stable_mosaic.version = 11 : i64} {
  func.func @_matmul_bias_kernel(%arg0: i32, %arg1: i32, %arg2: memref<128x128xbf16, #tpu.memory_space<vmem>>, %arg3: memref<128x512xbf16, #tpu.memory_space<vmem>>, %arg4: memref<1x512xf32, #tpu.memory_space<vmem>>, %arg5: memref<128x512xbf16, #tpu.memory_space<vmem>>) attributes {dimension_semantics = [#tpu.dimension_semantics<parallel>, #tpu.dimension_semantics<parallel>], iteration_bounds = array<i64: 1, 1>, scalar_prefetch = 0 : i64, scratch_operands = 0 : i64, tpu.core_type = #tpu.core_type<tc>, window_params = [{transform_indices = @transform_0, window_bounds = array<i64: 128, 128>}, {transform_indices = @transform_1, window_bounds = array<i64: 128, 512>}, {transform_indices = @transform_2, window_bounds = array<i64: 1, 512>}, {transform_indices = @transform_3, window_bounds = array<i64: 128, 512>}]} {
    %c0 = arith.constant 0 : index
    %c0_0 = arith.constant 0 : index
    %0 = vector.load %arg2[%c0, %c0_0] : memref<128x128xbf16, #tpu.memory_space<vmem>>, vector<128x128xbf16>
    %c0_1 = arith.constant 0 : index
    %c0_2 = arith.constant 0 : index
    %1 = vector.load %arg3[%c0_1, %c0_2] : memref<128x512xbf16, #tpu.memory_space<vmem>>, vector<128x512xbf16>
    %cst = arith.constant dense<0.000000e+00> : vector<128x512xf32>
    %2 = tpu.matmul %0, %1, %cst {dimension_numbers = #tpu.dot_dimension_numbers<[1], [0], [0], [1], [0, 0, 1, 1], [], []>} : vector<128x128xbf16>, vector<128x512xbf16>, vector<128x512xf32> -> vector<128x512xf32>
    %c0_3 = arith.constant 0 : index
    %c0_4 = arith.constant 0 : index
    %3 = vector.load %arg4[%c0_3, %c0_4] : memref<1x512xf32, #tpu.memory_space<vmem>>, vector<1x512xf32>
    %4 = vector.broadcast %3 : vector<1x512xf32> to vector<128x512xf32>
    %5 = arith.addf %2, %4 : vector<128x512xf32>
    %6 = arith.truncf %5 : vector<128x512xf32> to vector<128x512xbf16>
    %c0_5 = arith.constant 0 : index
    %c0_6 = arith.constant 0 : index
    %7 = vector.load %arg5[%c0_5, %c0_6] : memref<128x512xbf16, #tpu.memory_space<vmem>>, vector<128x512xbf16>
    tpu.vector_store %arg5[%c0_5, %c0_6], %6 {strides = array<i32>} : memref<128x512xbf16, #tpu.memory_space<vmem>>, vector<128x512xbf16>,
    return
  }
  func.func @transform_0(%arg0: i32, %arg1: i32) -> (i32, i32) {
    %c0_i32 = arith.constant 0 : i32
    %c0_i32_0 = arith.constant 0 : i32
    return %arg1, %c0_i32 : i32, i32
  }
  func.func @transform_1(%arg0: i32, %arg1: i32) -> (i32, i32) {
    %c0_i32 = arith.constant 0 : i32
    %c0_i32_0 = arith.constant 0 : i32
    return %c0_i32, %arg0 : i32, i32
  }
  func.func @transform_2(%arg0: i32, %arg1: i32) -> (i32, i32) {
    %c0_i32 = arith.constant 0 : i32
    %c0_i32_0 = arith.constant 0 : i32
    return %c0_i32, %arg0 : i32, i32
  }
  func.func @transform_3(%arg0: i32, %arg1: i32) -> (i32, i32) {
    %c0_i32 = arith.constant 0 : i32
    return %arg1, %arg0 : i32, i32
  }
}

module attributes {stable_mosaic.version = 11 : i64} {
  func.func @_encoder_lstm_kernel(%arg0: i32, %arg1: i32, %arg2: memref<8x8x512xbf16, #tpu.memory_space<vmem>>, %arg3: memref<8x1xi32, #tpu.memory_space<vmem>>, %arg4: memref<128x512xbf16, #tpu.memory_space<vmem>>, %arg5: memref<8x128xf32, #tpu.memory_space<vmem>>, %arg6: memref<8x128xf32, #tpu.memory_space<vmem>>, %arg7: memref<8x128xf32, #tpu.memory_space<vmem>>, %arg8: memref<8x128xf32, #tpu.memory_space<vmem>>) attributes {dimension_semantics = [#tpu.dimension_semantics<parallel>, #tpu.dimension_semantics<arbitrary>], iteration_bounds = array<i64: 1, 2>, scalar_prefetch = 0 : i64, scratch_operands = 2 : i64, tpu.core_type = #tpu.core_type<tc>, window_params = [{transform_indices = @transform_0, window_bounds = array<i64: 8, 8, 512>}, {transform_indices = @transform_1, window_bounds = array<i64: 8, 1>}, {pipeline_mode = #tpu.pipeline_mode<synchronous>, transform_indices = @transform_2, window_bounds = array<i64: 128, 512>}, {transform_indices = @transform_3, window_bounds = array<i64: 8, 128>}, {transform_indices = @transform_4, window_bounds = array<i64: 8, 128>}]} {
    %c0_i32 = arith.constant 0 : i32
    %0 = arith.cmpi eq, %arg1, %c0_i32 : i32
    %1 = arith.extui %0 : i1 to i32
    %c0_i32_0 = arith.constant 0 : i32
    %2 = arith.cmpi ne, %1, %c0_i32_0 : i32
    scf.if %2 {
      %cst_70 = arith.constant 0.000000e+00 : f32
      %348 = vector.broadcast %cst_70 : f32 to vector<8x128xf32>
      %c0_71 = arith.constant 0 : index
      %c0_72 = arith.constant 0 : index
      %349 = vector.load %arg7[%c0_71, %c0_72] : memref<8x128xf32, #tpu.memory_space<vmem>>, vector<8x128xf32>
      tpu.vector_store %arg7[%c0_71, %c0_72], %348 {strides = array<i32>} : memref<8x128xf32, #tpu.memory_space<vmem>>, vector<8x128xf32>,
      %cst_73 = arith.constant 0.000000e+00 : f32
      %350 = vector.broadcast %cst_73 : f32 to vector<8x128xf32>
      %c0_74 = arith.constant 0 : index
      %c0_75 = arith.constant 0 : index
      %351 = vector.load %arg8[%c0_74, %c0_75] : memref<8x128xf32, #tpu.memory_space<vmem>>, vector<8x128xf32>
      tpu.vector_store %arg8[%c0_74, %c0_75], %350 {strides = array<i32>} : memref<8x128xf32, #tpu.memory_space<vmem>>, vector<8x128xf32>,
    } else {
    }
    %c0 = arith.constant 0 : index
    %c0_1 = arith.constant 0 : index
    %3 = vector.load %arg4[%c0, %c0_1] : memref<128x512xbf16, #tpu.memory_space<vmem>>, vector<128x512xbf16>
    %c0_2 = arith.constant 0 : index
    %c0_3 = arith.constant 0 : index
    %4 = vector.load %arg3[%c0_2, %c0_3] : memref<8x1xi32, #tpu.memory_space<vmem>>, vector<8x1xi32>
    %c0_4 = arith.constant 0 : index
    %c0_5 = arith.constant 0 : index
    %5 = vector.load %arg7[%c0_4, %c0_5] : memref<8x128xf32, #tpu.memory_space<vmem>>, vector<8x128xf32>
    %c0_6 = arith.constant 0 : index
    %c0_7 = arith.constant 0 : index
    %6 = vector.load %arg8[%c0_6, %c0_7] : memref<8x128xf32, #tpu.memory_space<vmem>>, vector<8x128xf32>
    %c0_i32_8 = arith.constant 0 : i32
    %7 = arith.index_cast %c0_i32_8 : i32 to index
    %c0_9 = arith.constant 0 : index
    %c0_10 = arith.constant 0 : index
    %8 = vector.load %arg2[%7, %c0_9, %c0_10] : memref<8x8x512xbf16, #tpu.memory_space<vmem>>, vector<1x8x512xbf16>
    %9 = vector.shape_cast %8 : vector<1x8x512xbf16> to vector<8x512xbf16>
    %10 = arith.extf %9 : vector<8x512xbf16> to vector<8x512xf32>
    %11 = arith.truncf %5 : vector<8x128xf32> to vector<8x128xbf16>
    %cst = arith.constant dense<0.000000e+00> : vector<8x512xf32>
    %12 = tpu.matmul %11, %3, %cst {dimension_numbers = #tpu.dot_dimension_numbers<[1], [0], [0], [1], [0, 0, 1, 1], [], []>} : vector<8x128xbf16>, vector<128x512xbf16>, vector<8x512xf32> -> vector<8x512xf32>
    %13 = arith.addf %10, %12 : vector<8x512xf32>
    %14 = vector.extract_strided_slice %13 {offsets = [0, 0], sizes = [8, 128], strides = [1, 1]} : vector<8x512xf32> to vector<8x128xf32>
    %15 = arith.negf %14 : vector<8x128xf32>
    %16 = math.exp %15 : vector<8x128xf32>
    %cst_11 = arith.constant 1.000000e+00 : f32
    %17 = vector.broadcast %cst_11 : f32 to vector<8x128xf32>
    %18 = arith.addf %17, %16 : vector<8x128xf32>
    %19 = arith.divf %17, %18 : vector<8x128xf32>
    %20 = vector.extract_strided_slice %13 {offsets = [0, 128], sizes = [8, 128], strides = [1, 1]} : vector<8x512xf32> to vector<8x128xf32>
    %21 = arith.negf %20 : vector<8x128xf32>
    %22 = math.exp %21 : vector<8x128xf32>
    %cst_12 = arith.constant 1.000000e+00 : f32
    %23 = vector.broadcast %cst_12 : f32 to vector<8x128xf32>
    %24 = arith.addf %23, %22 : vector<8x128xf32>
    %25 = arith.divf %23, %24 : vector<8x128xf32>
    %26 = vector.extract_strided_slice %13 {offsets = [0, 256], sizes = [8, 128], strides = [1, 1]} : vector<8x512xf32> to vector<8x128xf32>
    %27 = math.tanh %26 : vector<8x128xf32>
    %28 = vector.extract_strided_slice %13 {offsets = [0, 384], sizes = [8, 128], strides = [1, 1]} : vector<8x512xf32> to vector<8x128xf32>
    %29 = arith.negf %28 : vector<8x128xf32>
    %30 = math.exp %29 : vector<8x128xf32>
    %cst_13 = arith.constant 1.000000e+00 : f32
    %31 = vector.broadcast %cst_13 : f32 to vector<8x128xf32>
    %32 = arith.addf %31, %30 : vector<8x128xf32>
    %33 = arith.divf %31, %32 : vector<8x128xf32>
    %34 = arith.mulf %25, %6 : vector<8x128xf32>
    %35 = arith.mulf %19, %27 : vector<8x128xf32>
    %36 = arith.addf %34, %35 : vector<8x128xf32>
    %37 = math.tanh %36 : vector<8x128xf32>
    %38 = arith.mulf %33, %37 : vector<8x128xf32>
    %c8_i32 = arith.constant 8 : i32
    %39 = arith.muli %arg1, %c8_i32 : i32
    %40 = arith.addi %39, %c0_i32_8 : i32
    %41 = vector.broadcast %40 : i32 to vector<8x1xi32>
    %42 = arith.cmpi sgt, %4, %41 : vector<8x1xi32>
    %43 = vector.shape_cast %42 : vector<8x1xi1> to vector<8x1xi1>
    %44 = vector.broadcast %43 : vector<8x1xi1> to vector<8x128xi1>
    %45 = arith.select %44, %38, %5 : vector<8x128xi1>, vector<8x128xf32>
    %46 = vector.shape_cast %42 : vector<8x1xi1> to vector<8x1xi1>
    %47 = vector.broadcast %46 : vector<8x1xi1> to vector<8x128xi1>
    %48 = arith.select %47, %36, %6 : vector<8x128xi1>, vector<8x128xf32>
    %c1_i32 = arith.constant 1 : i32
    %49 = arith.index_cast %c1_i32 : i32 to index
    %c0_14 = arith.constant 0 : index
    %c0_15 = arith.constant 0 : index
    %50 = vector.load %arg2[%49, %c0_14, %c0_15] : memref<8x8x512xbf16, #tpu.memory_space<vmem>>, vector<1x8x512xbf16>
    %51 = vector.shape_cast %50 : vector<1x8x512xbf16> to vector<8x512xbf16>
    %52 = arith.extf %51 : vector<8x512xbf16> to vector<8x512xf32>
    %53 = arith.truncf %45 : vector<8x128xf32> to vector<8x128xbf16>
    %cst_16 = arith.constant dense<0.000000e+00> : vector<8x512xf32>
    %54 = tpu.matmul %53, %3, %cst_16 {dimension_numbers = #tpu.dot_dimension_numbers<[1], [0], [0], [1], [0, 0, 1, 1], [], []>} : vector<8x128xbf16>, vector<128x512xbf16>, vector<8x512xf32> -> vector<8x512xf32>
    %55 = arith.addf %52, %54 : vector<8x512xf32>
    %56 = vector.extract_strided_slice %55 {offsets = [0, 0], sizes = [8, 128], strides = [1, 1]} : vector<8x512xf32> to vector<8x128xf32>
    %57 = arith.negf %56 : vector<8x128xf32>
    %58 = math.exp %57 : vector<8x128xf32>
    %cst_17 = arith.constant 1.000000e+00 : f32
    %59 = vector.broadcast %cst_17 : f32 to vector<8x128xf32>
    %60 = arith.addf %59, %58 : vector<8x128xf32>
    %61 = arith.divf %59, %60 : vector<8x128xf32>
    %62 = vector.extract_strided_slice %55 {offsets = [0, 128], sizes = [8, 128], strides = [1, 1]} : vector<8x512xf32> to vector<8x128xf32>
    %63 = arith.negf %62 : vector<8x128xf32>
    %64 = math.exp %63 : vector<8x128xf32>
    %cst_18 = arith.constant 1.000000e+00 : f32
    %65 = vector.broadcast %cst_18 : f32 to vector<8x128xf32>
    %66 = arith.addf %65, %64 : vector<8x128xf32>
    %67 = arith.divf %65, %66 : vector<8x128xf32>
    %68 = vector.extract_strided_slice %55 {offsets = [0, 256], sizes = [8, 128], strides = [1, 1]} : vector<8x512xf32> to vector<8x128xf32>
    %69 = math.tanh %68 : vector<8x128xf32>
    %70 = vector.extract_strided_slice %55 {offsets = [0, 384], sizes = [8, 128], strides = [1, 1]} : vector<8x512xf32> to vector<8x128xf32>
    %71 = arith.negf %70 : vector<8x128xf32>
    %72 = math.exp %71 : vector<8x128xf32>
    %cst_19 = arith.constant 1.000000e+00 : f32
    %73 = vector.broadcast %cst_19 : f32 to vector<8x128xf32>
    %74 = arith.addf %73, %72 : vector<8x128xf32>
    %75 = arith.divf %73, %74 : vector<8x128xf32>
    %76 = arith.mulf %67, %48 : vector<8x128xf32>
    %77 = arith.mulf %61, %69 : vector<8x128xf32>
    %78 = arith.addf %76, %77 : vector<8x128xf32>
    %79 = math.tanh %78 : vector<8x128xf32>
    %80 = arith.mulf %75, %79 : vector<8x128xf32>
    %c8_i32_20 = arith.constant 8 : i32
    %81 = arith.muli %arg1, %c8_i32_20 : i32
    %82 = arith.addi %81, %c1_i32 : i32
    %83 = vector.broadcast %82 : i32 to vector<8x1xi32>
    %84 = arith.cmpi sgt, %4, %83 : vector<8x1xi32>
    %85 = vector.shape_cast %84 : vector<8x1xi1> to vector<8x1xi1>
    %86 = vector.broadcast %85 : vector<8x1xi1> to vector<8x128xi1>
    %87 = arith.select %86, %80, %45 : vector<8x128xi1>, vector<8x128xf32>
    %88 = vector.shape_cast %84 : vector<8x1xi1> to vector<8x1xi1>
    %89 = vector.broadcast %88 : vector<8x1xi1> to vector<8x128xi1>
    %90 = arith.select %89, %78, %48 : vector<8x128xi1>, vector<8x128xf32>
    %c2_i32 = arith.constant 2 : i32
    %91 = arith.index_cast %c2_i32 : i32 to index
    %c0_21 = arith.constant 0 : index
    %c0_22 = arith.constant 0 : index
    %92 = vector.load %arg2[%91, %c0_21, %c0_22] : memref<8x8x512xbf16, #tpu.memory_space<vmem>>, vector<1x8x512xbf16>
    %93 = vector.shape_cast %92 : vector<1x8x512xbf16> to vector<8x512xbf16>
    %94 = arith.extf %93 : vector<8x512xbf16> to vector<8x512xf32>
    %95 = arith.truncf %87 : vector<8x128xf32> to vector<8x128xbf16>
    %cst_23 = arith.constant dense<0.000000e+00> : vector<8x512xf32>
    %96 = tpu.matmul %95, %3, %cst_23 {dimension_numbers = #tpu.dot_dimension_numbers<[1], [0], [0], [1], [0, 0, 1, 1], [], []>} : vector<8x128xbf16>, vector<128x512xbf16>, vector<8x512xf32> -> vector<8x512xf32>
    %97 = arith.addf %94, %96 : vector<8x512xf32>
    %98 = vector.extract_strided_slice %97 {offsets = [0, 0], sizes = [8, 128], strides = [1, 1]} : vector<8x512xf32> to vector<8x128xf32>
    %99 = arith.negf %98 : vector<8x128xf32>
    %100 = math.exp %99 : vector<8x128xf32>
    %cst_24 = arith.constant 1.000000e+00 : f32
    %101 = vector.broadcast %cst_24 : f32 to vector<8x128xf32>
    %102 = arith.addf %101, %100 : vector<8x128xf32>
    %103 = arith.divf %101, %102 : vector<8x128xf32>
    %104 = vector.extract_strided_slice %97 {offsets = [0, 128], sizes = [8, 128], strides = [1, 1]} : vector<8x512xf32> to vector<8x128xf32>
    %105 = arith.negf %104 : vector<8x128xf32>
    %106 = math.exp %105 : vector<8x128xf32>
    %cst_25 = arith.constant 1.000000e+00 : f32
    %107 = vector.broadcast %cst_25 : f32 to vector<8x128xf32>
    %108 = arith.addf %107, %106 : vector<8x128xf32>
    %109 = arith.divf %107, %108 : vector<8x128xf32>
    %110 = vector.extract_strided_slice %97 {offsets = [0, 256], sizes = [8, 128], strides = [1, 1]} : vector<8x512xf32> to vector<8x128xf32>
    %111 = math.tanh %110 : vector<8x128xf32>
    %112 = vector.extract_strided_slice %97 {offsets = [0, 384], sizes = [8, 128], strides = [1, 1]} : vector<8x512xf32> to vector<8x128xf32>
    %113 = arith.negf %112 : vector<8x128xf32>
    %114 = math.exp %113 : vector<8x128xf32>
    %cst_26 = arith.constant 1.000000e+00 : f32
    %115 = vector.broadcast %cst_26 : f32 to vector<8x128xf32>
    %116 = arith.addf %115, %114 : vector<8x128xf32>
    %117 = arith.divf %115, %116 : vector<8x128xf32>
    %118 = arith.mulf %109, %90 : vector<8x128xf32>
    %119 = arith.mulf %103, %111 : vector<8x128xf32>
    %120 = arith.addf %118, %119 : vector<8x128xf32>
    %121 = math.tanh %120 : vector<8x128xf32>
    %122 = arith.mulf %117, %121 : vector<8x128xf32>
    %c8_i32_27 = arith.constant 8 : i32
    %123 = arith.muli %arg1, %c8_i32_27 : i32
    %124 = arith.addi %123, %c2_i32 : i32
    %125 = vector.broadcast %124 : i32 to vector<8x1xi32>
    %126 = arith.cmpi sgt, %4, %125 : vector<8x1xi32>
    %127 = vector.shape_cast %126 : vector<8x1xi1> to vector<8x1xi1>
    %128 = vector.broadcast %127 : vector<8x1xi1> to vector<8x128xi1>
    %129 = arith.select %128, %122, %87 : vector<8x128xi1>, vector<8x128xf32>
    %130 = vector.shape_cast %126 : vector<8x1xi1> to vector<8x1xi1>
    %131 = vector.broadcast %130 : vector<8x1xi1> to vector<8x128xi1>
    %132 = arith.select %131, %120, %90 : vector<8x128xi1>, vector<8x128xf32>
    %c3_i32 = arith.constant 3 : i32
    %133 = arith.index_cast %c3_i32 : i32 to index
    %c0_28 = arith.constant 0 : index
    %c0_29 = arith.constant 0 : index
    %134 = vector.load %arg2[%133, %c0_28, %c0_29] : memref<8x8x512xbf16, #tpu.memory_space<vmem>>, vector<1x8x512xbf16>
    %135 = vector.shape_cast %134 : vector<1x8x512xbf16> to vector<8x512xbf16>
    %136 = arith.extf %135 : vector<8x512xbf16> to vector<8x512xf32>
    %137 = arith.truncf %129 : vector<8x128xf32> to vector<8x128xbf16>
    %cst_30 = arith.constant dense<0.000000e+00> : vector<8x512xf32>
    %138 = tpu.matmul %137, %3, %cst_30 {dimension_numbers = #tpu.dot_dimension_numbers<[1], [0], [0], [1], [0, 0, 1, 1], [], []>} : vector<8x128xbf16>, vector<128x512xbf16>, vector<8x512xf32> -> vector<8x512xf32>
    %139 = arith.addf %136, %138 : vector<8x512xf32>
    %140 = vector.extract_strided_slice %139 {offsets = [0, 0], sizes = [8, 128], strides = [1, 1]} : vector<8x512xf32> to vector<8x128xf32>
    %141 = arith.negf %140 : vector<8x128xf32>
    %142 = math.exp %141 : vector<8x128xf32>
    %cst_31 = arith.constant 1.000000e+00 : f32
    %143 = vector.broadcast %cst_31 : f32 to vector<8x128xf32>
    %144 = arith.addf %143, %142 : vector<8x128xf32>
    %145 = arith.divf %143, %144 : vector<8x128xf32>
    %146 = vector.extract_strided_slice %139 {offsets = [0, 128], sizes = [8, 128], strides = [1, 1]} : vector<8x512xf32> to vector<8x128xf32>
    %147 = arith.negf %146 : vector<8x128xf32>
    %148 = math.exp %147 : vector<8x128xf32>
    %cst_32 = arith.constant 1.000000e+00 : f32
    %149 = vector.broadcast %cst_32 : f32 to vector<8x128xf32>
    %150 = arith.addf %149, %148 : vector<8x128xf32>
    %151 = arith.divf %149, %150 : vector<8x128xf32>
    %152 = vector.extract_strided_slice %139 {offsets = [0, 256], sizes = [8, 128], strides = [1, 1]} : vector<8x512xf32> to vector<8x128xf32>
    %153 = math.tanh %152 : vector<8x128xf32>
    %154 = vector.extract_strided_slice %139 {offsets = [0, 384], sizes = [8, 128], strides = [1, 1]} : vector<8x512xf32> to vector<8x128xf32>
    %155 = arith.negf %154 : vector<8x128xf32>
    %156 = math.exp %155 : vector<8x128xf32>
    %cst_33 = arith.constant 1.000000e+00 : f32
    %157 = vector.broadcast %cst_33 : f32 to vector<8x128xf32>
    %158 = arith.addf %157, %156 : vector<8x128xf32>
    %159 = arith.divf %157, %158 : vector<8x128xf32>
    %160 = arith.mulf %151, %132 : vector<8x128xf32>
    %161 = arith.mulf %145, %153 : vector<8x128xf32>
    %162 = arith.addf %160, %161 : vector<8x128xf32>
    %163 = math.tanh %162 : vector<8x128xf32>
    %164 = arith.mulf %159, %163 : vector<8x128xf32>
    %c8_i32_34 = arith.constant 8 : i32
    %165 = arith.muli %arg1, %c8_i32_34 : i32
    %166 = arith.addi %165, %c3_i32 : i32
    %167 = vector.broadcast %166 : i32 to vector<8x1xi32>
    %168 = arith.cmpi sgt, %4, %167 : vector<8x1xi32>
    %169 = vector.shape_cast %168 : vector<8x1xi1> to vector<8x1xi1>
    %170 = vector.broadcast %169 : vector<8x1xi1> to vector<8x128xi1>
    %171 = arith.select %170, %164, %129 : vector<8x128xi1>, vector<8x128xf32>
    %172 = vector.shape_cast %168 : vector<8x1xi1> to vector<8x1xi1>
    %173 = vector.broadcast %172 : vector<8x1xi1> to vector<8x128xi1>
    %174 = arith.select %173, %162, %132 : vector<8x128xi1>, vector<8x128xf32>
    %c4_i32 = arith.constant 4 : i32
    %175 = arith.index_cast %c4_i32 : i32 to index
    %c0_35 = arith.constant 0 : index
    %c0_36 = arith.constant 0 : index
    %176 = vector.load %arg2[%175, %c0_35, %c0_36] : memref<8x8x512xbf16, #tpu.memory_space<vmem>>, vector<1x8x512xbf16>
    %177 = vector.shape_cast %176 : vector<1x8x512xbf16> to vector<8x512xbf16>
    %178 = arith.extf %177 : vector<8x512xbf16> to vector<8x512xf32>
    %179 = arith.truncf %171 : vector<8x128xf32> to vector<8x128xbf16>
    %cst_37 = arith.constant dense<0.000000e+00> : vector<8x512xf32>
    %180 = tpu.matmul %179, %3, %cst_37 {dimension_numbers = #tpu.dot_dimension_numbers<[1], [0], [0], [1], [0, 0, 1, 1], [], []>} : vector<8x128xbf16>, vector<128x512xbf16>, vector<8x512xf32> -> vector<8x512xf32>
    %181 = arith.addf %178, %180 : vector<8x512xf32>
    %182 = vector.extract_strided_slice %181 {offsets = [0, 0], sizes = [8, 128], strides = [1, 1]} : vector<8x512xf32> to vector<8x128xf32>
    %183 = arith.negf %182 : vector<8x128xf32>
    %184 = math.exp %183 : vector<8x128xf32>
    %cst_38 = arith.constant 1.000000e+00 : f32
    %185 = vector.broadcast %cst_38 : f32 to vector<8x128xf32>
    %186 = arith.addf %185, %184 : vector<8x128xf32>
    %187 = arith.divf %185, %186 : vector<8x128xf32>
    %188 = vector.extract_strided_slice %181 {offsets = [0, 128], sizes = [8, 128], strides = [1, 1]} : vector<8x512xf32> to vector<8x128xf32>
    %189 = arith.negf %188 : vector<8x128xf32>
    %190 = math.exp %189 : vector<8x128xf32>
    %cst_39 = arith.constant 1.000000e+00 : f32
    %191 = vector.broadcast %cst_39 : f32 to vector<8x128xf32>
    %192 = arith.addf %191, %190 : vector<8x128xf32>
    %193 = arith.divf %191, %192 : vector<8x128xf32>
    %194 = vector.extract_strided_slice %181 {offsets = [0, 256], sizes = [8, 128], strides = [1, 1]} : vector<8x512xf32> to vector<8x128xf32>
    %195 = math.tanh %194 : vector<8x128xf32>
    %196 = vector.extract_strided_slice %181 {offsets = [0, 384], sizes = [8, 128], strides = [1, 1]} : vector<8x512xf32> to vector<8x128xf32>
    %197 = arith.negf %196 : vector<8x128xf32>
    %198 = math.exp %197 : vector<8x128xf32>
    %cst_40 = arith.constant 1.000000e+00 : f32
    %199 = vector.broadcast %cst_40 : f32 to vector<8x128xf32>
    %200 = arith.addf %199, %198 : vector<8x128xf32>
    %201 = arith.divf %199, %200 : vector<8x128xf32>
    %202 = arith.mulf %193, %174 : vector<8x128xf32>
    %203 = arith.mulf %187, %195 : vector<8x128xf32>
    %204 = arith.addf %202, %203 : vector<8x128xf32>
    %205 = math.tanh %204 : vector<8x128xf32>
    %206 = arith.mulf %201, %205 : vector<8x128xf32>
    %c8_i32_41 = arith.constant 8 : i32
    %207 = arith.muli %arg1, %c8_i32_41 : i32
    %208 = arith.addi %207, %c4_i32 : i32
    %209 = vector.broadcast %208 : i32 to vector<8x1xi32>
    %210 = arith.cmpi sgt, %4, %209 : vector<8x1xi32>
    %211 = vector.shape_cast %210 : vector<8x1xi1> to vector<8x1xi1>
    %212 = vector.broadcast %211 : vector<8x1xi1> to vector<8x128xi1>
    %213 = arith.select %212, %206, %171 : vector<8x128xi1>, vector<8x128xf32>
    %214 = vector.shape_cast %210 : vector<8x1xi1> to vector<8x1xi1>
    %215 = vector.broadcast %214 : vector<8x1xi1> to vector<8x128xi1>
    %216 = arith.select %215, %204, %174 : vector<8x128xi1>, vector<8x128xf32>
    %c5_i32 = arith.constant 5 : i32
    %217 = arith.index_cast %c5_i32 : i32 to index
    %c0_42 = arith.constant 0 : index
    %c0_43 = arith.constant 0 : index
    %218 = vector.load %arg2[%217, %c0_42, %c0_43] : memref<8x8x512xbf16, #tpu.memory_space<vmem>>, vector<1x8x512xbf16>
    %219 = vector.shape_cast %218 : vector<1x8x512xbf16> to vector<8x512xbf16>
    %220 = arith.extf %219 : vector<8x512xbf16> to vector<8x512xf32>
    %221 = arith.truncf %213 : vector<8x128xf32> to vector<8x128xbf16>
    %cst_44 = arith.constant dense<0.000000e+00> : vector<8x512xf32>
    %222 = tpu.matmul %221, %3, %cst_44 {dimension_numbers = #tpu.dot_dimension_numbers<[1], [0], [0], [1], [0, 0, 1, 1], [], []>} : vector<8x128xbf16>, vector<128x512xbf16>, vector<8x512xf32> -> vector<8x512xf32>
    %223 = arith.addf %220, %222 : vector<8x512xf32>
    %224 = vector.extract_strided_slice %223 {offsets = [0, 0], sizes = [8, 128], strides = [1, 1]} : vector<8x512xf32> to vector<8x128xf32>
    %225 = arith.negf %224 : vector<8x128xf32>
    %226 = math.exp %225 : vector<8x128xf32>
    %cst_45 = arith.constant 1.000000e+00 : f32
    %227 = vector.broadcast %cst_45 : f32 to vector<8x128xf32>
    %228 = arith.addf %227, %226 : vector<8x128xf32>
    %229 = arith.divf %227, %228 : vector<8x128xf32>
    %230 = vector.extract_strided_slice %223 {offsets = [0, 128], sizes = [8, 128], strides = [1, 1]} : vector<8x512xf32> to vector<8x128xf32>
    %231 = arith.negf %230 : vector<8x128xf32>
    %232 = math.exp %231 : vector<8x128xf32>
    %cst_46 = arith.constant 1.000000e+00 : f32
    %233 = vector.broadcast %cst_46 : f32 to vector<8x128xf32>
    %234 = arith.addf %233, %232 : vector<8x128xf32>
    %235 = arith.divf %233, %234 : vector<8x128xf32>
    %236 = vector.extract_strided_slice %223 {offsets = [0, 256], sizes = [8, 128], strides = [1, 1]} : vector<8x512xf32> to vector<8x128xf32>
    %237 = math.tanh %236 : vector<8x128xf32>
    %238 = vector.extract_strided_slice %223 {offsets = [0, 384], sizes = [8, 128], strides = [1, 1]} : vector<8x512xf32> to vector<8x128xf32>
    %239 = arith.negf %238 : vector<8x128xf32>
    %240 = math.exp %239 : vector<8x128xf32>
    %cst_47 = arith.constant 1.000000e+00 : f32
    %241 = vector.broadcast %cst_47 : f32 to vector<8x128xf32>
    %242 = arith.addf %241, %240 : vector<8x128xf32>
    %243 = arith.divf %241, %242 : vector<8x128xf32>
    %244 = arith.mulf %235, %216 : vector<8x128xf32>
    %245 = arith.mulf %229, %237 : vector<8x128xf32>
    %246 = arith.addf %244, %245 : vector<8x128xf32>
    %247 = math.tanh %246 : vector<8x128xf32>
    %248 = arith.mulf %243, %247 : vector<8x128xf32>
    %c8_i32_48 = arith.constant 8 : i32
    %249 = arith.muli %arg1, %c8_i32_48 : i32
    %250 = arith.addi %249, %c5_i32 : i32
    %251 = vector.broadcast %250 : i32 to vector<8x1xi32>
    %252 = arith.cmpi sgt, %4, %251 : vector<8x1xi32>
    %253 = vector.shape_cast %252 : vector<8x1xi1> to vector<8x1xi1>
    %254 = vector.broadcast %253 : vector<8x1xi1> to vector<8x128xi1>
    %255 = arith.select %254, %248, %213 : vector<8x128xi1>, vector<8x128xf32>
    %256 = vector.shape_cast %252 : vector<8x1xi1> to vector<8x1xi1>
    %257 = vector.broadcast %256 : vector<8x1xi1> to vector<8x128xi1>
    %258 = arith.select %257, %246, %216 : vector<8x128xi1>, vector<8x128xf32>
    %c6_i32 = arith.constant 6 : i32
    %259 = arith.index_cast %c6_i32 : i32 to index
    %c0_49 = arith.constant 0 : index
    %c0_50 = arith.constant 0 : index
    %260 = vector.load %arg2[%259, %c0_49, %c0_50] : memref<8x8x512xbf16, #tpu.memory_space<vmem>>, vector<1x8x512xbf16>
    %261 = vector.shape_cast %260 : vector<1x8x512xbf16> to vector<8x512xbf16>
    %262 = arith.extf %261 : vector<8x512xbf16> to vector<8x512xf32>
    %263 = arith.truncf %255 : vector<8x128xf32> to vector<8x128xbf16>
    %cst_51 = arith.constant dense<0.000000e+00> : vector<8x512xf32>
    %264 = tpu.matmul %263, %3, %cst_51 {dimension_numbers = #tpu.dot_dimension_numbers<[1], [0], [0], [1], [0, 0, 1, 1], [], []>} : vector<8x128xbf16>, vector<128x512xbf16>, vector<8x512xf32> -> vector<8x512xf32>
    %265 = arith.addf %262, %264 : vector<8x512xf32>
    %266 = vector.extract_strided_slice %265 {offsets = [0, 0], sizes = [8, 128], strides = [1, 1]} : vector<8x512xf32> to vector<8x128xf32>
    %267 = arith.negf %266 : vector<8x128xf32>
    %268 = math.exp %267 : vector<8x128xf32>
    %cst_52 = arith.constant 1.000000e+00 : f32
    %269 = vector.broadcast %cst_52 : f32 to vector<8x128xf32>
    %270 = arith.addf %269, %268 : vector<8x128xf32>
    %271 = arith.divf %269, %270 : vector<8x128xf32>
    %272 = vector.extract_strided_slice %265 {offsets = [0, 128], sizes = [8, 128], strides = [1, 1]} : vector<8x512xf32> to vector<8x128xf32>
    %273 = arith.negf %272 : vector<8x128xf32>
    %274 = math.exp %273 : vector<8x128xf32>
    %cst_53 = arith.constant 1.000000e+00 : f32
    %275 = vector.broadcast %cst_53 : f32 to vector<8x128xf32>
    %276 = arith.addf %275, %274 : vector<8x128xf32>
    %277 = arith.divf %275, %276 : vector<8x128xf32>
    %278 = vector.extract_strided_slice %265 {offsets = [0, 256], sizes = [8, 128], strides = [1, 1]} : vector<8x512xf32> to vector<8x128xf32>
    %279 = math.tanh %278 : vector<8x128xf32>
    %280 = vector.extract_strided_slice %265 {offsets = [0, 384], sizes = [8, 128], strides = [1, 1]} : vector<8x512xf32> to vector<8x128xf32>
    %281 = arith.negf %280 : vector<8x128xf32>
    %282 = math.exp %281 : vector<8x128xf32>
    %cst_54 = arith.constant 1.000000e+00 : f32
    %283 = vector.broadcast %cst_54 : f32 to vector<8x128xf32>
    %284 = arith.addf %283, %282 : vector<8x128xf32>
    %285 = arith.divf %283, %284 : vector<8x128xf32>
    %286 = arith.mulf %277, %258 : vector<8x128xf32>
    %287 = arith.mulf %271, %279 : vector<8x128xf32>
    %288 = arith.addf %286, %287 : vector<8x128xf32>
    %289 = math.tanh %288 : vector<8x128xf32>
    %290 = arith.mulf %285, %289 : vector<8x128xf32>
    %c8_i32_55 = arith.constant 8 : i32
    %291 = arith.muli %arg1, %c8_i32_55 : i32
    %292 = arith.addi %291, %c6_i32 : i32
    %293 = vector.broadcast %292 : i32 to vector<8x1xi32>
    %294 = arith.cmpi sgt, %4, %293 : vector<8x1xi32>
    %295 = vector.shape_cast %294 : vector<8x1xi1> to vector<8x1xi1>
    %296 = vector.broadcast %295 : vector<8x1xi1> to vector<8x128xi1>
    %297 = arith.select %296, %290, %255 : vector<8x128xi1>, vector<8x128xf32>
    %298 = vector.shape_cast %294 : vector<8x1xi1> to vector<8x1xi1>
    %299 = vector.broadcast %298 : vector<8x1xi1> to vector<8x128xi1>
    %300 = arith.select %299, %288, %258 : vector<8x128xi1>, vector<8x128xf32>
    %c7_i32 = arith.constant 7 : i32
    %301 = arith.index_cast %c7_i32 : i32 to index
    %c0_56 = arith.constant 0 : index
    %c0_57 = arith.constant 0 : index
    %302 = vector.load %arg2[%301, %c0_56, %c0_57] : memref<8x8x512xbf16, #tpu.memory_space<vmem>>, vector<1x8x512xbf16>
    %303 = vector.shape_cast %302 : vector<1x8x512xbf16> to vector<8x512xbf16>
    %304 = arith.extf %303 : vector<8x512xbf16> to vector<8x512xf32>
    %305 = arith.truncf %297 : vector<8x128xf32> to vector<8x128xbf16>
    %cst_58 = arith.constant dense<0.000000e+00> : vector<8x512xf32>
    %306 = tpu.matmul %305, %3, %cst_58 {dimension_numbers = #tpu.dot_dimension_numbers<[1], [0], [0], [1], [0, 0, 1, 1], [], []>} : vector<8x128xbf16>, vector<128x512xbf16>, vector<8x512xf32> -> vector<8x512xf32>
    %307 = arith.addf %304, %306 : vector<8x512xf32>
    %308 = vector.extract_strided_slice %307 {offsets = [0, 0], sizes = [8, 128], strides = [1, 1]} : vector<8x512xf32> to vector<8x128xf32>
    %309 = arith.negf %308 : vector<8x128xf32>
    %310 = math.exp %309 : vector<8x128xf32>
    %cst_59 = arith.constant 1.000000e+00 : f32
    %311 = vector.broadcast %cst_59 : f32 to vector<8x128xf32>
    %312 = arith.addf %311, %310 : vector<8x128xf32>
    %313 = arith.divf %311, %312 : vector<8x128xf32>
    %314 = vector.extract_strided_slice %307 {offsets = [0, 128], sizes = [8, 128], strides = [1, 1]} : vector<8x512xf32> to vector<8x128xf32>
    %315 = arith.negf %314 : vector<8x128xf32>
    %316 = math.exp %315 : vector<8x128xf32>
    %cst_60 = arith.constant 1.000000e+00 : f32
    %317 = vector.broadcast %cst_60 : f32 to vector<8x128xf32>
    %318 = arith.addf %317, %316 : vector<8x128xf32>
    %319 = arith.divf %317, %318 : vector<8x128xf32>
    %320 = vector.extract_strided_slice %307 {offsets = [0, 256], sizes = [8, 128], strides = [1, 1]} : vector<8x512xf32> to vector<8x128xf32>
    %321 = math.tanh %320 : vector<8x128xf32>
    %322 = vector.extract_strided_slice %307 {offsets = [0, 384], sizes = [8, 128], strides = [1, 1]} : vector<8x512xf32> to vector<8x128xf32>
    %323 = arith.negf %322 : vector<8x128xf32>
    %324 = math.exp %323 : vector<8x128xf32>
    %cst_61 = arith.constant 1.000000e+00 : f32
    %325 = vector.broadcast %cst_61 : f32 to vector<8x128xf32>
    %326 = arith.addf %325, %324 : vector<8x128xf32>
    %327 = arith.divf %325, %326 : vector<8x128xf32>
    %328 = arith.mulf %319, %300 : vector<8x128xf32>
    %329 = arith.mulf %313, %321 : vector<8x128xf32>
    %330 = arith.addf %328, %329 : vector<8x128xf32>
    %331 = math.tanh %330 : vector<8x128xf32>
    %332 = arith.mulf %327, %331 : vector<8x128xf32>
    %c8_i32_62 = arith.constant 8 : i32
    %333 = arith.muli %arg1, %c8_i32_62 : i32
    %334 = arith.addi %333, %c7_i32 : i32
    %335 = vector.broadcast %334 : i32 to vector<8x1xi32>
    %336 = arith.cmpi sgt, %4, %335 : vector<8x1xi32>
    %337 = vector.shape_cast %336 : vector<8x1xi1> to vector<8x1xi1>
    %338 = vector.broadcast %337 : vector<8x1xi1> to vector<8x128xi1>
    %339 = arith.select %338, %332, %297 : vector<8x128xi1>, vector<8x128xf32>
    %340 = vector.shape_cast %336 : vector<8x1xi1> to vector<8x1xi1>
    %341 = vector.broadcast %340 : vector<8x1xi1> to vector<8x128xi1>
    %342 = arith.select %341, %330, %300 : vector<8x128xi1>, vector<8x128xf32>
    %c8_i32_63 = arith.constant 8 : i32
    %c0_64 = arith.constant 0 : index
    %c0_65 = arith.constant 0 : index
    %343 = vector.load %arg7[%c0_64, %c0_65] : memref<8x128xf32, #tpu.memory_space<vmem>>, vector<8x128xf32>
    tpu.vector_store %arg7[%c0_64, %c0_65], %339 {strides = array<i32>} : memref<8x128xf32, #tpu.memory_space<vmem>>, vector<8x128xf32>,
    %c0_66 = arith.constant 0 : index
    %c0_67 = arith.constant 0 : index
    %344 = vector.load %arg8[%c0_66, %c0_67] : memref<8x128xf32, #tpu.memory_space<vmem>>, vector<8x128xf32>
    tpu.vector_store %arg8[%c0_66, %c0_67], %342 {strides = array<i32>} : memref<8x128xf32, #tpu.memory_space<vmem>>, vector<8x128xf32>,
    %c1_i32_68 = arith.constant 1 : i32
    %345 = arith.cmpi eq, %arg1, %c1_i32_68 : i32
    %346 = arith.extui %345 : i1 to i32
    %c0_i32_69 = arith.constant 0 : i32
    %347 = arith.cmpi ne, %346, %c0_i32_69 : i32
    scf.if %347 {
      %c0_70 = arith.constant 0 : index
      %c0_71 = arith.constant 0 : index
      %348 = vector.load %arg5[%c0_70, %c0_71] : memref<8x128xf32, #tpu.memory_space<vmem>>, vector<8x128xf32>
      tpu.vector_store %arg5[%c0_70, %c0_71], %339 {strides = array<i32>} : memref<8x128xf32, #tpu.memory_space<vmem>>, vector<8x128xf32>,
      %c0_72 = arith.constant 0 : index
      %c0_73 = arith.constant 0 : index
      %349 = vector.load %arg6[%c0_72, %c0_73] : memref<8x128xf32, #tpu.memory_space<vmem>>, vector<8x128xf32>
      tpu.vector_store %arg6[%c0_72, %c0_73], %342 {strides = array<i32>} : memref<8x128xf32, #tpu.memory_space<vmem>>, vector<8x128xf32>,
    } else {
    }
    return
  }
  func.func @transform_0(%arg0: i32, %arg1: i32) -> (i32, i32, i32) {
    %c0_i32 = arith.constant 0 : i32
    %c0_i32_0 = arith.constant 0 : i32
    return %arg1, %arg0, %c0_i32 : i32, i32, i32
  }
  func.func @transform_1(%arg0: i32, %arg1: i32) -> (i32, i32) {
    %c0_i32 = arith.constant 0 : i32
    %c0_i32_0 = arith.constant 0 : i32
    return %arg0, %c0_i32 : i32, i32
  }
  func.func @transform_2(%arg0: i32, %arg1: i32) -> (i32, i32) {
    %c0_i32 = arith.constant 0 : i32
    %c0_i32_0 = arith.constant 0 : i32
    %c0_i32_1 = arith.constant 0 : i32
    return %c0_i32, %c0_i32_0 : i32, i32
  }
  func.func @transform_3(%arg0: i32, %arg1: i32) -> (i32, i32) {
    %c0_i32 = arith.constant 0 : i32
    %c0_i32_0 = arith.constant 0 : i32
    return %arg0, %c0_i32 : i32, i32
  }
  func.func @transform_4(%arg0: i32, %arg1: i32) -> (i32, i32) {
    %c0_i32 = arith.constant 0 : i32
    %c0_i32_0 = arith.constant 0 : i32
    return %arg0, %c0_i32 : i32, i32
  }
}

module attributes {stable_mosaic.version = 11 : i64} {
  func.func @_matmul_bias_kernel(%arg0: i32, %arg1: i32, %arg2: memref<64x128xbf16, #tpu.memory_space<vmem>>, %arg3: memref<128x128xbf16, #tpu.memory_space<vmem>>, %arg4: memref<1x128xf32, #tpu.memory_space<vmem>>, %arg5: memref<64x128xf32, #tpu.memory_space<vmem>>) attributes {dimension_semantics = [#tpu.dimension_semantics<parallel>, #tpu.dimension_semantics<parallel>], iteration_bounds = array<i64: 1, 1>, scalar_prefetch = 0 : i64, scratch_operands = 0 : i64, tpu.core_type = #tpu.core_type<tc>, window_params = [{transform_indices = @transform_0, window_bounds = array<i64: 64, 128>}, {transform_indices = @transform_1, window_bounds = array<i64: 128, 128>}, {transform_indices = @transform_2, window_bounds = array<i64: 1, 128>}, {transform_indices = @transform_3, window_bounds = array<i64: 64, 128>}]} {
    %c0 = arith.constant 0 : index
    %c0_0 = arith.constant 0 : index
    %0 = vector.load %arg2[%c0, %c0_0] : memref<64x128xbf16, #tpu.memory_space<vmem>>, vector<64x128xbf16>
    %c0_1 = arith.constant 0 : index
    %c0_2 = arith.constant 0 : index
    %1 = vector.load %arg3[%c0_1, %c0_2] : memref<128x128xbf16, #tpu.memory_space<vmem>>, vector<128x128xbf16>
    %cst = arith.constant dense<0.000000e+00> : vector<64x128xf32>
    %2 = tpu.matmul %0, %1, %cst {dimension_numbers = #tpu.dot_dimension_numbers<[1], [0], [0], [1], [0, 0, 1, 1], [], []>} : vector<64x128xbf16>, vector<128x128xbf16>, vector<64x128xf32> -> vector<64x128xf32>
    %c0_3 = arith.constant 0 : index
    %c0_4 = arith.constant 0 : index
    %3 = vector.load %arg4[%c0_3, %c0_4] : memref<1x128xf32, #tpu.memory_space<vmem>>, vector<1x128xf32>
    %4 = vector.broadcast %3 : vector<1x128xf32> to vector<64x128xf32>
    %5 = arith.addf %2, %4 : vector<64x128xf32>
    %c0_5 = arith.constant 0 : index
    %c0_6 = arith.constant 0 : index
    %6 = vector.load %arg5[%c0_5, %c0_6] : memref<64x128xf32, #tpu.memory_space<vmem>>, vector<64x128xf32>
    tpu.vector_store %arg5[%c0_5, %c0_6], %5 {strides = array<i32>} : memref<64x128xf32, #tpu.memory_space<vmem>>, vector<64x128xf32>,
    %c0_i32 = arith.constant 0 : i32
    %7 = arith.cmpi eq, %arg1, %c0_i32 : i32
    %8 = arith.extui %7 : i1 to i32
    %c0_i32_7 = arith.constant 0 : i32
    %9 = arith.cmpi ne, %8, %c0_i32_7 : i32
    scf.if %9 {
      %cst_8 = arith.constant 0.000000e+00 : f32
      %10 = vector.broadcast %cst_8 : f32 to vector<8x128xf32>
      %c0_9 = arith.constant 0 : index
      %c0_10 = arith.constant 0 : index
      %11 = vector.load %arg5[%c0_9, %c0_10] : memref<64x128xf32, #tpu.memory_space<vmem>>, vector<8x128xf32>
      tpu.vector_store %arg5[%c0_9, %c0_10], %10 {strides = array<i32>} : memref<64x128xf32, #tpu.memory_space<vmem>>, vector<8x128xf32>,
    } else {
    }
    return
  }
  func.func @transform_0(%arg0: i32, %arg1: i32) -> (i32, i32) {
    %c0_i32 = arith.constant 0 : i32
    %c0_i32_0 = arith.constant 0 : i32
    return %arg1, %c0_i32 : i32, i32
  }
  func.func @transform_1(%arg0: i32, %arg1: i32) -> (i32, i32) {
    %c0_i32 = arith.constant 0 : i32
    %c0_i32_0 = arith.constant 0 : i32
    return %c0_i32, %arg0 : i32, i32
  }
  func.func @transform_2(%arg0: i32, %arg1: i32) -> (i32, i32) {
    %c0_i32 = arith.constant 0 : i32
    %c0_i32_0 = arith.constant 0 : i32
    return %c0_i32, %arg0 : i32, i32
  }
  func.func @transform_3(%arg0: i32, %arg1: i32) -> (i32, i32) {
    %c0_i32 = arith.constant 0 : i32
    return %arg1, %arg0 : i32, i32
  }
}

</mosaic_0001>

<llo_original>
// kernel: seq2seq_forward.7
$region0: #{seq2seq_forward.7}
  #allocation0 [shape = 'u32[]', space=smem, size = 0x4, offset = 0x4, fixed_abs, tag = 'smem constant byte address 0x4 - core index']
  #allocation1 [shape = 'u32[144,128]{1,0:T(1,128)}', space=vmem, size = 0x12000, scoped, tag = 'internal scratch']
  %s0 = inlined_call_operand.vmem [shape: bf16[64,128], index: 0, kind: input, shape index: {}]
  %s1 = inlined_call_operand.hbm [shape: bf16[128,512], index: 1, kind: input, shape index: {}]
  %s2 = inlined_call_operand.vmem [shape: f32[1,512], index: 2, kind: input, shape index: {}]
  %s3 = inlined_call_operand.vmem [shape: bf16[64,512], index: 3, kind: output, shape index: {}]
  %s4 = sld [smem:[#allocation0]]
  $region26: #{seq2seq_forward.7} parent=0
    _
  %s6 = ssub.s32 1, %s4
  %s7 = scalar_select 0, %s6, %s4
  $region1: #{seq2seq_forward.7} parent=0
    #allocation2 [shape = 'u8[131072]{0}', space=vmem, size = 0x20000, scoped, tag = 'input window, operand 1, single buffered']
    #allocation3 [shape = 's32[1]{0}', space=sflag, size = 0x4, scoped, tag = 'scoped memory for seq2seq_forward.7']
    %8 = vsyncpa [#allocation3], 0
    // Predicated region
    $region2: #{seq2seq_forward.7} parent=1 // pred_check
      _
    $region3: #{seq2seq_forward.7} parent=1 // pred_check_branch
      %10 = sbr.rel (0) target = $region5
    $region4: #{seq2seq_forward.7} parent=1 // pred_region
      _
    $region5: #{seq2seq_forward.7} parent=1 // pred_fallthru
      _
    // Predicated region
    $region6: #{seq2seq_forward.7} parent=1 // pred_check
      _
    $region7: #{seq2seq_forward.7} parent=1 // pred_check_branch
      %12 = sbr.rel (0) target = $region9
    $region8: #{seq2seq_forward.7} parent=1 // pred_region
      %s14 = ssub.s32 4096, 4096
      %15 = vsyncadd [#allocation3], %s14
      %s16 = sshll.u32 [#allocation2], 4
      %s17 = int_to_ptr.vmem [resolvable:$true] %s16
      %22 = dma.hbm_to_vmem [thread:$0]  %s1, 4096, %s17, [#allocation3], 256, 256, 16
    $region9: #{seq2seq_forward.7} parent=1 // pred_fallthru
      _
    // Predicated region
    $region10: #{seq2seq_forward.7} parent=1 // pred_check
      _
    $region11: #{seq2seq_forward.7} parent=1 // pred_check_branch
      %24 = sbr.rel (0) target = $region13
    $region12: #{seq2seq_forward.7} parent=1 // pred_region
      _
    $region13: #{seq2seq_forward.7} parent=1 // pred_fallthru
      _
    // Predicated region
    $region14: #{seq2seq_forward.7} parent=1 // pred_check
      _
    $region15: #{seq2seq_forward.7} parent=1 // pred_check_branch
      %26 = sbr.rel (0) target = $region17
    $region16: #{seq2seq_forward.7} parent=1 // pred_region
      %27 = dma.done [#allocation3], 4096
    $region17: #{seq2seq_forward.7} parent=1 // pred_fallthru
      _
    %v29 = vld [vmem:[%s0] sm:$0xf]
    %v30 = vld [vmem:[%s0 + $0x4] sm:$0xf]
    %v31 = vld [vmem:[%s0 + $0x8] sm:$0xf]
    %v32 = vld [vmem:[%s0 + $0xc] sm:$0xf]
    %v33 = vld [vmem:[%s0 + $0x10] sm:$0xf]
    %v34 = vld [vmem:[%s0 + $0x14] sm:$0xf]
    %v35 = vld [vmem:[%s0 + $0x18] sm:$0xf]
    %v36 = vld [vmem:[%s0 + $0x1c] sm:$0xf]
    %v37 = vld [vmem:[#allocation2] sm:$0xff]
    %v38 = vld [vmem:[#allocation2 + $0x8] sm:$0xff]
    %v39 = vld [vmem:[#allocation2 + $0x10] sm:$0xff]
    %v40 = vld [vmem:[#allocation2 + $0x18] sm:$0xff]
    %v41 = vld [vmem:[#allocation2 + $0x20] sm:$0xff]
    %v42 = vld [vmem:[#allocation2 + $0x28] sm:$0xff]
    %v43 = vld [vmem:[#allocation2 + $0x30] sm:$0xff]
    %v44 = vld [vmem:[#allocation2 + $0x38] sm:$0xff]
    %v45 = vld [vmem:[#allocation2 + $0x40] sm:$0xff]
    %v46 = vld [vmem:[#allocation2 + $0x48] sm:$0xff]
    %v47 = vld [vmem:[#allocation2 + $0x50] sm:$0xff]
    %v48 = vld [vmem:[#allocation2 + $0x58] sm:$0xff]
    %v49 = vld [vmem:[#allocation2 + $0x60] sm:$0xff]
    %v50 = vld [vmem:[#allocation2 + $0x68] sm:$0xff]
    %v51 = vld [vmem:[#allocation2 + $0x70] sm:$0xff]
    %v52 = vld [vmem:[#allocation2 + $0x78] sm:$0xff]
    %v53 = vld [vmem:[#allocation2 + $0x80] sm:$0xff]
    %v54 = vld [vmem:[#allocation2 + $0x88] sm:$0xff]
    %v55 = vld [vmem:[#allocation2 + $0x90] sm:$0xff]
    %v56 = vld [vmem:[#allocation2 + $0x98] sm:$0xff]
    %v57 = vld [vmem:[#allocation2 + $0xa0] sm:$0xff]
    %v58 = vld [vmem:[#allocation2 + $0xa8] sm:$0xff]
    %v59 = vld [vmem:[#allocation2 + $0xb0] sm:$0xff]
    %v60 = vld [vmem:[#allocation2 + $0xb8] sm:$0xff]
    %v61 = vld [vmem:[#allocation2 + $0xc0] sm:$0xff]
    %v62 = vld [vmem:[#allocation2 + $0xc8] sm:$0xff]
    %v63 = vld [vmem:[#allocation2 + $0xd0] sm:$0xff]
    %v64 = vld [vmem:[#allocation2 + $0xd8] sm:$0xff]
    %v65 = vld [vmem:[#allocation2 + $0xe0] sm:$0xff]
    %v66 = vld [vmem:[#allocation2 + $0xe8] sm:$0xff]
    %v67 = vld [vmem:[#allocation2 + $0xf0] sm:$0xff]
    %v68 = vld [vmem:[#allocation2 + $0xf8] sm:$0xff]
    %v69 = vld [vmem:[%s2] sm:$0xf]
    %v71 = vlaneseq
    %v72 = vshrl.u32 %v71, 7
    %v73 = vsub.s32 0, %v72
    %v74 = vrot.slane %v69, %v73
    %v75 = vlaneseq
    %v76 = vshrl.u32 %v75, 7
    %v77 = vsub.s32 1, %v76
    %v78 = vrot.slane %v69, %v77
    %v79 = vlaneseq
    %v80 = vshrl.u32 %v79, 7
    %v81 = vsub.s32 2, %v80
    %v82 = vrot.slane %v69, %v81
    %v83 = vlaneseq
    %v84 = vshrl.u32 %v83, 7
    %v85 = vsub.s32 3, %v84
    %v86 = vrot.slane %v69, %v85
    %v99 = vunpack.c.l.b16 %v29
    %v100 = vunpack.c.l.b16 %v30
    %v101 = vunpack.c.l.b16 %v31
    %v102 = vunpack.c.l.b16 %v32
    %v103 = vunpack.c.l.b16 %v33
    %v104 = vunpack.c.l.b16 %v34
    %v105 = vunpack.c.l.b16 %v35
    %v106 = vunpack.c.l.b16 %v36
    %v107 = vpack.c.b16 %v100, %v99
    %v108 = vpack.c.b16 %v102, %v101
    %v109 = vpack.c.b16 %v104, %v103
    %v110 = vpack.c.b16 %v106, %v105
    %v147 = vunpack.c.l.b16 %v37
    %v148 = vunpack.c.h.b16 %v37
    %v149 = vunpack.c.l.b16 %v38
    %v150 = vunpack.c.h.b16 %v38
    %v151 = vunpack.c.l.b16 %v39
    %v152 = vunpack.c.h.b16 %v39
    %v153 = vunpack.c.l.b16 %v40
    %v154 = vunpack.c.h.b16 %v40
    %v155 = vunpack.c.l.b16 %v41
    %v156 = vunpack.c.h.b16 %v41
    %v157 = vunpack.c.l.b16 %v42
    %v158 = vunpack.c.h.b16 %v42
    %v159 = vunpack.c.l.b16 %v43
    %v160 = vunpack.c.h.b16 %v43
    %v161 = vunpack.c.l.b16 %v44
    %v162 = vunpack.c.h.b16 %v44
    %v163 = vunpack.c.l.b16 %v45
    %v164 = vunpack.c.h.b16 %v45
    %v165 = vunpack.c.l.b16 %v46
    %v166 = vunpack.c.h.b16 %v46
    %v167 = vunpack.c.l.b16 %v47
    %v168 = vunpack.c.h.b16 %v47
    %v169 = vunpack.c.l.b16 %v48
    %v170 = vunpack.c.h.b16 %v48
    %v171 = vunpack.c.l.b16 %v49
    %v172 = vunpack.c.h.b16 %v49
    %v173 = vunpack.c.l.b16 %v50
    %v174 = vunpack.c.h.b16 %v50
    %v175 = vunpack.c.l.b16 %v51
    %v176 = vunpack.c.h.b16 %v51
    %v177 = vunpack.c.l.b16 %v52
    %v178 = vunpack.c.h.b16 %v52
    %v179 = vunpack.c.l.b16 %v53
    %v180 = vunpack.c.h.b16 %v53
    %v181 = vunpack.c.l.b16 %v54
    %v182 = vunpack.c.h.b16 %v54
    %v183 = vunpack.c.l.b16 %v55
    %v184 = vunpack.c.h.b16 %v55
    %v185 = vunpack.c.l.b16 %v56
    %v186 = vunpack.c.h.b16 %v56
    %v187 = vunpack.c.l.b16 %v57
    %v188 = vunpack.c.h.b16 %v57
    %v189 = vunpack.c.l.b16 %v58
    %v190 = vunpack.c.h.b16 %v58
    %v191 = vunpack.c.l.b16 %v59
    %v192 = vunpack.c.h.b16 %v59
    %v193 = vunpack.c.l.b16 %v60
    %v194 = vunpack.c.h.b16 %v60
    %v195 = vunpack.c.l.b16 %v61
    %v196 = vunpack.c.h.b16 %v61
    %v197 = vunpack.c.l.b16 %v62
    %v198 = vunpack.c.h.b16 %v62
    %v199 = vunpack.c.l.b16 %v63
    %v200 = vunpack.c.h.b16 %v63
    %v201 = vunpack.c.l.b16 %v64
    %v202 = vunpack.c.h.b16 %v64
    %v203 = vunpack.c.l.b16 %v65
    %v204 = vunpack.c.h.b16 %v65
    %v205 = vunpack.c.l.b16 %v66
    %v206 = vunpack.c.h.b16 %v66
    %v207 = vunpack.c.l.b16 %v67
    %v208 = vunpack.c.h.b16 %v67
    %v209 = vunpack.c.l.b16 %v68
    %v210 = vunpack.c.h.b16 %v68
    %v211 = vpack.c.b16 %v151, %v147
    %v212 = vpack.c.b16 %v152, %v148
    %v213 = vpack.c.b16 %v153, %v149
    %v214 = vpack.c.b16 %v154, %v150
    %v215 = vpack.c.b16 %v159, %v155
    %v216 = vpack.c.b16 %v160, %v156
    %v217 = vpack.c.b16 %v161, %v157
    %v218 = vpack.c.b16 %v162, %v158
    %v219 = vpack.c.b16 %v167, %v163
    %v220 = vpack.c.b16 %v168, %v164
    %v221 = vpack.c.b16 %v169, %v165
    %v222 = vpack.c.b16 %v170, %v166
    %v223 = vpack.c.b16 %v175, %v171
    %v224 = vpack.c.b16 %v176, %v172
    %v225 = vpack.c.b16 %v177, %v173
    %v226 = vpack.c.b16 %v178, %v174
    %v227 = vpack.c.b16 %v183, %v179
    %v228 = vpack.c.b16 %v184, %v180
    %v229 = vpack.c.b16 %v185, %v181
    %v230 = vpack.c.b16 %v186, %v182
    %v231 = vpack.c.b16 %v191, %v187
    %v232 = vpack.c.b16 %v192, %v188
    %v233 = vpack.c.b16 %v193, %v189
    %v234 = vpack.c.b16 %v194, %v190
    %v235 = vpack.c.b16 %v199, %v195
    %v236 = vpack.c.b16 %v200, %v196
    %v237 = vpack.c.b16 %v201, %v197
    %v238 = vpack.c.b16 %v202, %v198
    %v239 = vpack.c.b16 %v207, %v203
    %v240 = vpack.c.b16 %v208, %v204
    %v241 = vpack.c.b16 %v209, %v205
    %v242 = vpack.c.b16 %v210, %v206
    %275 = vmatprep.subr.bf16.mxu0 %v240
    %276 = vmatpush1.bf16.msra.mxu0 %v239
    %277 = vmatprep.subr.bf16.mxu0 %v236
    %278 = vmatpush1.bf16.msra.mxu0 %v235
    %279 = vmatprep.subr.bf16.mxu0 %v232
    %280 = vmatpush1.bf16.msra.mxu0 %v231
    %281 = vmatprep.subr.bf16.mxu0 %v228
    %282 = vmatpush1.bf16.msra.mxu0 %v227
    %283 = vmatprep.subr.bf16.mxu0 %v224
    %284 = vmatpush1.bf16.msra.mxu0 %v223
    %285 = vmatprep.subr.bf16.mxu0 %v220
    %286 = vmatpush1.bf16.msra.mxu0 %v219
    %287 = vmatprep.subr.bf16.mxu0 %v216
    %288 = vmatpush1.bf16.msra.mxu0 %v215
    %289 = vmatprep.subr.bf16.mxu0 %v212
    %290 = vmatpush1.bf16.msra.mxu0 %v211
    %291 = vmatprep.subr.bf16.mxu0 0
    %292 = vmatpush2.bf16.msra.mxu0 0
    %293 = vmatprep.subr.bf16.mxu0 0
    %294 = vmatpush2.bf16.msra.mxu0 0
    %295 = vmatprep.subr.bf16.mxu0 0
    %296 = vmatpush2.bf16.msra.mxu0 0
    %297 = vmatprep.subr.bf16.mxu0 0
    %298 = vmatpush2.bf16.msra.mxu0 0
    %299 = vmatprep.subr.bf16.mxu0 0
    %300 = vmatpush2.bf16.msra.mxu0 0
    %301 = vmatprep.subr.bf16.mxu0 0
    %302 = vmatpush2.bf16.msra.mxu0 0
    %303 = vmatprep.subr.bf16.mxu0 0
    %304 = vmatpush2.bf16.msra.mxu0 0
    %305 = vmatprep.subr.bf16.mxu0 0
    %306 = vmatpush2.bf16.msra.mxu0 0
    %307 = vmatprep.mubr.bf16.mxu0 0
    %308 = vmatmul.mubr.bf16.gmra.mxu0 %v107
    %v309 = vpop.f32.mrf.mxu0
    %v310 = vadd.f32 %v74, %v309
    %v311 = vpop.f32.mrf.mxu0
    %v312 = vadd.f32 %v78, %v311
    %v313 = vpop.f32.mrf.mxu0
    %v314 = vadd.f32 %v74, %v313
    %v315 = vpop.f32.mrf.mxu0
    %v316 = vadd.f32 %v78, %v315
    %317 = vmatprep.mubr.bf16.mxu0 0
    %318 = vmatmul.mubr.bf16.gmra.mxu0 %v108
    %v319 = vpop.f32.mrf.mxu0
    %v320 = vadd.f32 %v74, %v319
    %v321 = vpop.f32.mrf.mxu0
    %v322 = vadd.f32 %v78, %v321
    %v323 = vpop.f32.mrf.mxu0
    %v324 = vadd.f32 %v74, %v323
    %v325 = vpop.f32.mrf.mxu0
    %v326 = vadd.f32 %v78, %v325
    %327 = vmatprep.mubr.bf16.mxu0 0
    %328 = vmatmul.mubr.bf16.gmra.mxu0 %v109
    %v329 = vpop.f32.mrf.mxu0
    %v330 = vadd.f32 %v74, %v329
    %v331 = vpop.f32.mrf.mxu0
    %v332 = vadd.f32 %v78, %v331
    %v333 = vpop.f32.mrf.mxu0
    %v334 = vadd.f32 %v74, %v333
    %v335 = vpop.f32.mrf.mxu0
    %v336 = vadd.f32 %v78, %v335
    %337 = vmatprep.mubr.bf16.mxu0 0
    %338 = vmatmul.mubr.bf16.gmra.mxu0 %v110
    %v339 = vpop.f32.mrf.mxu0
    %v340 = vadd.f32 %v74, %v339
    %v341 = vpop.f32.mrf.mxu0
    %v342 = vadd.f32 %v78, %v341
    %v343 = vpop.f32.mrf.mxu0
    %v344 = vadd.f32 %v74, %v343
    %v345 = vpop.f32.mrf.mxu0
    %v346 = vadd.f32 %v78, %v345
    %347 = vdwg.mxu0
    %348 = vmatprep.subr.bf16.mxu0 %v242
    %349 = vmatpush1.bf16.msra.mxu0 %v241
    %350 = vmatprep.subr.bf16.mxu0 %v238
    %351 = vmatpush1.bf16.msra.mxu0 %v237
    %352 = vmatprep.subr.bf16.mxu0 %v234
    %353 = vmatpush1.bf16.msra.mxu0 %v233
    %354 = vmatprep.subr.bf16.mxu0 %v230
    %355 = vmatpush1.bf16.msra.mxu0 %v229
    %356 = vmatprep.subr.bf16.mxu0 %v226
    %357 = vmatpush1.bf16.msra.mxu0 %v225
    %358 = vmatprep.subr.bf16.mxu0 %v222
    %359 = vmatpush1.bf16.msra.mxu0 %v221
    %360 = vmatprep.subr.bf16.mxu0 %v218
    %361 = vmatpush1.bf16.msra.mxu0 %v217
    %362 = vmatprep.subr.bf16.mxu0 %v214
    %363 = vmatpush1.bf16.msra.mxu0 %v213
    %364 = vmatprep.subr.bf16.mxu0 0
    %365 = vmatpush2.bf16.msra.mxu0 0
    %366 = vmatprep.subr.bf16.mxu0 0
    %367 = vmatpush2.bf16.msra.mxu0 0
    %368 = vmatprep.subr.bf16.mxu0 0
    %369 = vmatpush2.bf16.msra.mxu0 0
    %370 = vmatprep.subr.bf16.mxu0 0
    %371 = vmatpush2.bf16.msra.mxu0 0
    %372 = vmatprep.subr.bf16.mxu0 0
    %373 = vmatpush2.bf16.msra.mxu0 0
    %374 = vmatprep.subr.bf16.mxu0 0
    %375 = vmatpush2.bf16.msra.mxu0 0
    %376 = vmatprep.subr.bf16.mxu0 0
    %377 = vmatpush2.bf16.msra.mxu0 0
    %378 = vmatprep.subr.bf16.mxu0 0
    %379 = vmatpush2.bf16.msra.mxu0 0
    %380 = vmatprep.mubr.bf16.mxu0 0
    %381 = vmatmul.mubr.bf16.gmra.mxu0 %v107
    %v382 = vpop.f32.mrf.mxu0
    %v383 = vadd.f32 %v82, %v382
    %v384 = vpop.f32.mrf.mxu0
    %v385 = vadd.f32 %v86, %v384
    %v386 = vpop.f32.mrf.mxu0
    %v387 = vadd.f32 %v82, %v386
    %v388 = vpop.f32.mrf.mxu0
    %v389 = vadd.f32 %v86, %v388
    %390 = vmatprep.mubr.bf16.mxu0 0
    %391 = vmatmul.mubr.bf16.gmra.mxu0 %v108
    %v392 = vpop.f32.mrf.mxu0
    %v393 = vadd.f32 %v82, %v392
    %v394 = vpop.f32.mrf.mxu0
    %v395 = vadd.f32 %v86, %v394
    %v396 = vpop.f32.mrf.mxu0
    %v397 = vadd.f32 %v82, %v396
    %v398 = vpop.f32.mrf.mxu0
    %v399 = vadd.f32 %v86, %v398
    %400 = vmatprep.mubr.bf16.mxu0 0
    %401 = vmatmul.mubr.bf16.gmra.mxu0 %v109
    %v402 = vpop.f32.mrf.mxu0
    %v403 = vadd.f32 %v82, %v402
    %v404 = vpop.f32.mrf.mxu0
    %v405 = vadd.f32 %v86, %v404
    %v406 = vpop.f32.mrf.mxu0
    %v407 = vadd.f32 %v82, %v406
    %v408 = vpop.f32.mrf.mxu0
    %v409 = vadd.f32 %v86, %v408
    %410 = vmatprep.mubr.bf16.mxu0 0
    %411 = vmatmul.mubr.bf16.gmra.mxu0 %v110
    %v412 = vpop.f32.mrf.mxu0
    %v413 = vadd.f32 %v82, %v412
    %v414 = vpop.f32.mrf.mxu0
    %v415 = vadd.f32 %v86, %v414
    %v416 = vpop.f32.mrf.mxu0
    %v417 = vadd.f32 %v82, %v416
    %v418 = vpop.f32.mrf.mxu0
    %v419 = vadd.f32 %v86, %v418
    %420 = vdwg.mxu0
    %v421 = vpack.c.bf16 %v314, %v310
    %v422 = vpack.c.bf16 %v316, %v312
    %v423 = vpack.c.bf16 %v387, %v383
    %v424 = vpack.c.bf16 %v389, %v385
    %v425 = vpack.c.bf16 %v324, %v320
    %v426 = vpack.c.bf16 %v326, %v322
    %v427 = vpack.c.bf16 %v397, %v393
    %v428 = vpack.c.bf16 %v399, %v395
    %v429 = vpack.c.bf16 %v334, %v330
    %v430 = vpack.c.bf16 %v336, %v332
    %v431 = vpack.c.bf16 %v407, %v403
    %v432 = vpack.c.bf16 %v409, %v405
    %v433 = vpack.c.bf16 %v344, %v340
    %v434 = vpack.c.bf16 %v346, %v342
    %v435 = vpack.c.bf16 %v417, %v413
    %v436 = vpack.c.bf16 %v419, %v415
    %v453 = vunpack.c.l.b16 %v421
    %v454 = vunpack.c.l.b16 %v422
    %v455 = vunpack.c.l.b16 %v423
    %v456 = vunpack.c.l.b16 %v424
    %v457 = vunpack.c.h.b16 %v421
    %v458 = vunpack.c.h.b16 %v422
    %v459 = vunpack.c.h.b16 %v423
    %v460 = vunpack.c.h.b16 %v424
    %v461 = vunpack.c.l.b16 %v425
    %v462 = vunpack.c.l.b16 %v426
    %v463 = vunpack.c.l.b16 %v427
    %v464 = vunpack.c.l.b16 %v428
    %v465 = vunpack.c.h.b16 %v425
    %v466 = vunpack.c.h.b16 %v426
    %v467 = vunpack.c.h.b16 %v427
    %v468 = vunpack.c.h.b16 %v428
    %v469 = vunpack.c.l.b16 %v429
    %v470 = vunpack.c.l.b16 %v430
    %v471 = vunpack.c.l.b16 %v431
    %v472 = vunpack.c.l.b16 %v432
    %v473 = vunpack.c.h.b16 %v429
    %v474 = vunpack.c.h.b16 %v430
    %v475 = vunpack.c.h.b16 %v431
    %v476 = vunpack.c.h.b16 %v432
    %v477 = vunpack.c.l.b16 %v433
    %v478 = vunpack.c.l.b16 %v434
    %v479 = vunpack.c.l.b16 %v435
    %v480 = vunpack.c.l.b16 %v436
    %v481 = vunpack.c.h.b16 %v433
    %v482 = vunpack.c.h.b16 %v434
    %v483 = vunpack.c.h.b16 %v435
    %v484 = vunpack.c.h.b16 %v436
    %v485 = vpack.c.b16 %v454, %v453
    %v486 = vpack.c.b16 %v456, %v455
    %v487 = vpack.c.b16 %v458, %v457
    %v488 = vpack.c.b16 %v460, %v459
    %v489 = vpack.c.b16 %v462, %v461
    %v490 = vpack.c.b16 %v464, %v463
    %v491 = vpack.c.b16 %v466, %v465
    %v492 = vpack.c.b16 %v468, %v467
    %v493 = vpack.c.b16 %v470, %v469
    %v494 = vpack.c.b16 %v472, %v471
    %v495 = vpack.c.b16 %v474, %v473
    %v496 = vpack.c.b16 %v476, %v475
    %v497 = vpack.c.b16 %v478, %v477
    %v498 = vpack.c.b16 %v480, %v479
    %v499 = vpack.c.b16 %v482, %v481
    %v500 = vpack.c.b16 %v484, %v483
    %517 = vst [vmem:[%s3] sm:$0xff] %v485
    %518 = vst [vmem:[%s3 + $0x8] sm:$0xff] %v486
    %519 = vst [vmem:[%s3 + $0x10] sm:$0xff] %v487
    %520 = vst [vmem:[%s3 + $0x18] sm:$0xff] %v488
    %521 = vst [vmem:[%s3 + $0x20] sm:$0xff] %v489
    %522 = vst [vmem:[%s3 + $0x28] sm:$0xff] %v490
    %523 = vst [vmem:[%s3 + $0x30] sm:$0xff] %v491
    %524 = vst [vmem:[%s3 + $0x38] sm:$0xff] %v492
    %525 = vst [vmem:[%s3 + $0x40] sm:$0xff] %v493
    %526 = vst [vmem:[%s3 + $0x48] sm:$0xff] %v494
    %527 = vst [vmem:[%s3 + $0x50] sm:$0xff] %v495
    %528 = vst [vmem:[%s3 + $0x58] sm:$0xff] %v496
    %529 = vst [vmem:[%s3 + $0x60] sm:$0xff] %v497
    %530 = vst [vmem:[%s3 + $0x68] sm:$0xff] %v498
    %531 = vst [vmem:[%s3 + $0x70] sm:$0xff] %v499
    %532 = vst [vmem:[%s3 + $0x78] sm:$0xff] %v500
    // Predicated region
    $region18: #{seq2seq_forward.7} parent=1 // pred_check
      _
    $region19: #{seq2seq_forward.7} parent=1 // pred_check_branch
      %534 = sbr.rel (0) target = $region21
    $region20: #{seq2seq_forward.7} parent=1 // pred_region
      _
    $region21: #{seq2seq_forward.7} parent=1 // pred_fallthru
      _
    // Predicated region
    $region22: #{seq2seq_forward.7} parent=1 // pred_check
      _
    $region23: #{seq2seq_forward.7} parent=1 // pred_check_branch
      %536 = sbr.rel (0) target = $region25
    $region24: #{seq2seq_forward.7} parent=1 // pred_region
      _
    $region25: #{seq2seq_forward.7} parent=1 // pred_fallthru
      _
    %537 = vsyncpa [#allocation3], 1

// kernel: seq2seq_forward.5
$region0: #{seq2seq_forward.5}
  #allocation0 [shape = 'u32[]', space=smem, size = 0x4, offset = 0x4, fixed_abs, tag = 'smem constant byte address 0x4 - core index']
  #allocation1 [shape = 'u32[144,128]{1,0:T(1,128)}', space=vmem, size = 0x12000, scoped, tag = 'internal scratch']
  %s0 = inlined_call_operand.vmem [shape: bf16[128,128], index: 0, kind: input, shape index: {}]
  %s1 = inlined_call_operand.vmem [shape: bf16[128,512], index: 1, kind: input, shape index: {}]
  %s2 = inlined_call_operand.vmem [shape: f32[1,512], index: 2, kind: input, shape index: {}]
  %s3 = inlined_call_operand.vmem [shape: bf16[128,512], index: 3, kind: output, shape index: {}]
  %s4 = sld [smem:[#allocation0]]
  $region22: #{seq2seq_forward.5} parent=0
    _
  %s6 = ssub.s32 1, %s4
  %s7 = scalar_select 0, %s6, %s4
  // Predicated region
  $region2: #{seq2seq_forward.5} parent=0 // pred_check
    _
  $region3: #{seq2seq_forward.5} parent=0 // pred_check_branch
    %9 = sbr.rel (0) target = $region5
  $region4: #{seq2seq_forward.5} parent=0 // pred_region
    _
  $region5: #{seq2seq_forward.5} parent=0 // pred_fallthru
    _
  // Predicated region
  $region6: #{seq2seq_forward.5} parent=0 // pred_check
    _
  $region7: #{seq2seq_forward.5} parent=0 // pred_check_branch
    %11 = sbr.rel (0) target = $region9
  $region8: #{seq2seq_forward.5} parent=0 // pred_region
    _
  $region9: #{seq2seq_forward.5} parent=0 // pred_fallthru
    _
  // Predicated region
  $region10: #{seq2seq_forward.5} parent=0 // pred_check
    _
  $region11: #{seq2seq_forward.5} parent=0 // pred_check_branch
    %13 = sbr.rel (0) target = $region13
  $region12: #{seq2seq_forward.5} parent=0 // pred_region
    _
  $region13: #{seq2seq_forward.5} parent=0 // pred_fallthru
    _
  %v15 = vld [vmem:[%s0] sm:$0xf]
  %v16 = vld [vmem:[%s0 + $0x4] sm:$0xf]
  %v17 = vld [vmem:[%s0 + $0x8] sm:$0xf]
  %v18 = vld [vmem:[%s0 + $0xc] sm:$0xf]
  %v19 = vld [vmem:[%s0 + $0x10] sm:$0xf]
  %v20 = vld [vmem:[%s0 + $0x14] sm:$0xf]
  %v21 = vld [vmem:[%s0 + $0x18] sm:$0xf]
  %v22 = vld [vmem:[%s0 + $0x1c] sm:$0xf]
  %v23 = vld [vmem:[%s0 + $0x20] sm:$0xf]
  %v24 = vld [vmem:[%s0 + $0x24] sm:$0xf]
  %v25 = vld [vmem:[%s0 + $0x28] sm:$0xf]
  %v26 = vld [vmem:[%s0 + $0x2c] sm:$0xf]
  %v27 = vld [vmem:[%s0 + $0x30] sm:$0xf]
  %v28 = vld [vmem:[%s0 + $0x34] sm:$0xf]
  %v29 = vld [vmem:[%s0 + $0x38] sm:$0xf]
  %v30 = vld [vmem:[%s0 + $0x3c] sm:$0xf]
  %v31 = vld [vmem:[%s1] sm:$0xff]
  %v32 = vld [vmem:[%s1 + $0x8] sm:$0xff]
  %v33 = vld [vmem:[%s1 + $0x10] sm:$0xff]
  %v34 = vld [vmem:[%s1 + $0x18] sm:$0xff]
  %v35 = vld [vmem:[%s1 + $0x20] sm:$0xff]
  %v36 = vld [vmem:[%s1 + $0x28] sm:$0xff]
  %v37 = vld [vmem:[%s1 + $0x30] sm:$0xff]
  %v38 = vld [vmem:[%s1 + $0x38] sm:$0xff]
  %v39 = vld [vmem:[%s1 + $0x40] sm:$0xff]
  %v40 = vld [vmem:[%s1 + $0x48] sm:$0xff]
  %v41 = vld [vmem:[%s1 + $0x50] sm:$0xff]
  %v42 = vld [vmem:[%s1 + $0x58] sm:$0xff]
  %v43 = vld [vmem:[%s1 + $0x60] sm:$0xff]
  %v44 = vld [vmem:[%s1 + $0x68] sm:$0xff]
  %v45 = vld [vmem:[%s1 + $0x70] sm:$0xff]
  %v46 = vld [vmem:[%s1 + $0x78] sm:$0xff]
  %v47 = vld [vmem:[%s1 + $0x80] sm:$0xff]
  %v48 = vld [vmem:[%s1 + $0x88] sm:$0xff]
  %v49 = vld [vmem:[%s1 + $0x90] sm:$0xff]
  %v50 = vld [vmem:[%s1 + $0x98] sm:$0xff]
  %v51 = vld [vmem:[%s1 + $0xa0] sm:$0xff]
  %v52 = vld [vmem:[%s1 + $0xa8] sm:$0xff]
  %v53 = vld [vmem:[%s1 + $0xb0] sm:$0xff]
  %v54 = vld [vmem:[%s1 + $0xb8] sm:$0xff]
  %v55 = vld [vmem:[%s1 + $0xc0] sm:$0xff]
  %v56 = vld [vmem:[%s1 + $0xc8] sm:$0xff]
  %v57 = vld [vmem:[%s1 + $0xd0] sm:$0xff]
  %v58 = vld [vmem:[%s1 + $0xd8] sm:$0xff]
  %v59 = vld [vmem:[%s1 + $0xe0] sm:$0xff]
  %v60 = vld [vmem:[%s1 + $0xe8] sm:$0xff]
  %v61 = vld [vmem:[%s1 + $0xf0] sm:$0xff]
  %v62 = vld [vmem:[%s1 + $0xf8] sm:$0xff]
  %v63 = vld [vmem:[%s2] sm:$0xf]
  %v65 = vlaneseq
  %v66 = vshrl.u32 %v65, 7
  %v67 = vsub.s32 0, %v66
  %v68 = vrot.slane %v63, %v67
  %v69 = vlaneseq
  %v70 = vshrl.u32 %v69, 7
  %v71 = vsub.s32 1, %v70
  %v72 = vrot.slane %v63, %v71
  %v73 = vlaneseq
  %v74 = vshrl.u32 %v73, 7
  %v75 = vsub.s32 2, %v74
  %v76 = vrot.slane %v63, %v75
  %v77 = vlaneseq
  %v78 = vshrl.u32 %v77, 7
  %v79 = vsub.s32 3, %v78
  %v80 = vrot.slane %v63, %v79
  %v101 = vunpack.c.l.b16 %v15
  %v102 = vunpack.c.l.b16 %v16
  %v103 = vunpack.c.l.b16 %v17
  %v104 = vunpack.c.l.b16 %v18
  %v105 = vunpack.c.l.b16 %v19
  %v106 = vunpack.c.l.b16 %v20
  %v107 = vunpack.c.l.b16 %v21
  %v108 = vunpack.c.l.b16 %v22
  %v109 = vunpack.c.l.b16 %v23
  %v110 = vunpack.c.l.b16 %v24
  %v111 = vunpack.c.l.b16 %v25
  %v112 = vunpack.c.l.b16 %v26
  %v113 = vunpack.c.l.b16 %v27
  %v114 = vunpack.c.l.b16 %v28
  %v115 = vunpack.c.l.b16 %v29
  %v116 = vunpack.c.l.b16 %v30
  %v117 = vpack.c.b16 %v102, %v101
  %v118 = vpack.c.b16 %v104, %v103
  %v119 = vpack.c.b16 %v106, %v105
  %v120 = vpack.c.b16 %v108, %v107
  %v121 = vpack.c.b16 %v110, %v109
  %v122 = vpack.c.b16 %v112, %v111
  %v123 = vpack.c.b16 %v114, %v113
  %v124 = vpack.c.b16 %v116, %v115
  %v165 = vunpack.c.l.b16 %v31
  %v166 = vunpack.c.h.b16 %v31
  %v167 = vunpack.c.l.b16 %v32
  %v168 = vunpack.c.h.b16 %v32
  %v169 = vunpack.c.l.b16 %v33
  %v170 = vunpack.c.h.b16 %v33
  %v171 = vunpack.c.l.b16 %v34
  %v172 = vunpack.c.h.b16 %v34
  %v173 = vunpack.c.l.b16 %v35
  %v174 = vunpack.c.h.b16 %v35
  %v175 = vunpack.c.l.b16 %v36
  %v176 = vunpack.c.h.b16 %v36
  %v177 = vunpack.c.l.b16 %v37
  %v178 = vunpack.c.h.b16 %v37
  %v179 = vunpack.c.l.b16 %v38
  %v180 = vunpack.c.h.b16 %v38
  %v181 = vunpack.c.l.b16 %v39
  %v182 = vunpack.c.h.b16 %v39
  %v183 = vunpack.c.l.b16 %v40
  %v184 = vunpack.c.h.b16 %v40
  %v185 = vunpack.c.l.b16 %v41
  %v186 = vunpack.c.h.b16 %v41
  %v187 = vunpack.c.l.b16 %v42
  %v188 = vunpack.c.h.b16 %v42
  %v189 = vunpack.c.l.b16 %v43
  %v190 = vunpack.c.h.b16 %v43
  %v191 = vunpack.c.l.b16 %v44
  %v192 = vunpack.c.h.b16 %v44
  %v193 = vunpack.c.l.b16 %v45
  %v194 = vunpack.c.h.b16 %v45
  %v195 = vunpack.c.l.b16 %v46
  %v196 = vunpack.c.h.b16 %v46
  %v197 = vunpack.c.l.b16 %v47
  %v198 = vunpack.c.h.b16 %v47
  %v199 = vunpack.c.l.b16 %v48
  %v200 = vunpack.c.h.b16 %v48
  %v201 = vunpack.c.l.b16 %v49
  %v202 = vunpack.c.h.b16 %v49
  %v203 = vunpack.c.l.b16 %v50
  %v204 = vunpack.c.h.b16 %v50
  %v205 = vunpack.c.l.b16 %v51
  %v206 = vunpack.c.h.b16 %v51
  %v207 = vunpack.c.l.b16 %v52
  %v208 = vunpack.c.h.b16 %v52
  %v209 = vunpack.c.l.b16 %v53
  %v210 = vunpack.c.h.b16 %v53
  %v211 = vunpack.c.l.b16 %v54
  %v212 = vunpack.c.h.b16 %v54
  %v213 = vunpack.c.l.b16 %v55
  %v214 = vunpack.c.h.b16 %v55
  %v215 = vunpack.c.l.b16 %v56
  %v216 = vunpack.c.h.b16 %v56
  %v217 = vunpack.c.l.b16 %v57
  %v218 = vunpack.c.h.b16 %v57
  %v219 = vunpack.c.l.b16 %v58
  %v220 = vunpack.c.h.b16 %v58
  %v221 = vunpack.c.l.b16 %v59
  %v222 = vunpack.c.h.b16 %v59
  %v223 = vunpack.c.l.b16 %v60
  %v224 = vunpack.c.h.b16 %v60
  %v225 = vunpack.c.l.b16 %v61
  %v226 = vunpack.c.h.b16 %v61
  %v227 = vunpack.c.l.b16 %v62
  %v228 = vunpack.c.h.b16 %v62
  %v229 = vpack.c.b16 %v169, %v165
  %v230 = vpack.c.b16 %v170, %v166
  %v231 = vpack.c.b16 %v171, %v167
  %v232 = vpack.c.b16 %v172, %v168
  %v233 = vpack.c.b16 %v177, %v173
  %v234 = vpack.c.b16 %v178, %v174
  %v235 = vpack.c.b16 %v179, %v175
  %v236 = vpack.c.b16 %v180, %v176
  %v237 = vpack.c.b16 %v185, %v181
  %v238 = vpack.c.b16 %v186, %v182
  %v239 = vpack.c.b16 %v187, %v183
  %v240 = vpack.c.b16 %v188, %v184
  %v241 = vpack.c.b16 %v193, %v189
  %v242 = vpack.c.b16 %v194, %v190
  %v243 = vpack.c.b16 %v195, %v191
  %v244 = vpack.c.b16 %v196, %v192
  %v245 = vpack.c.b16 %v201, %v197
  %v246 = vpack.c.b16 %v202, %v198
  %v247 = vpack.c.b16 %v203, %v199
  %v248 = vpack.c.b16 %v204, %v200
  %v249 = vpack.c.b16 %v209, %v205
  %v250 = vpack.c.b16 %v210, %v206
  %v251 = vpack.c.b16 %v211, %v207
  %v252 = vpack.c.b16 %v212, %v208
  %v253 = vpack.c.b16 %v217, %v213
  %v254 = vpack.c.b16 %v218, %v214
  %v255 = vpack.c.b16 %v219, %v215
  %v256 = vpack.c.b16 %v220, %v216
  %v257 = vpack.c.b16 %v225, %v221
  %v258 = vpack.c.b16 %v226, %v222
  %v259 = vpack.c.b16 %v227, %v223
  %v260 = vpack.c.b16 %v228, %v224
  %293 = vmatprep.subr.bf16.mxu0 %v258
  %294 = vmatpush1.bf16.msra.mxu0 %v257
  %295 = vmatprep.subr.bf16.mxu0 %v254
  %296 = vmatpush1.bf16.msra.mxu0 %v253
  %297 = vmatprep.subr.bf16.mxu0 %v250
  %298 = vmatpush1.bf16.msra.mxu0 %v249
  %299 = vmatprep.subr.bf16.mxu0 %v246
  %300 = vmatpush1.bf16.msra.mxu0 %v245
  %301 = vmatprep.subr.bf16.mxu0 %v242
  %302 = vmatpush1.bf16.msra.mxu0 %v241
  %303 = vmatprep.subr.bf16.mxu0 %v238
  %304 = vmatpush1.bf16.msra.mxu0 %v237
  %305 = vmatprep.subr.bf16.mxu0 %v234
  %306 = vmatpush1.bf16.msra.mxu0 %v233
  %307 = vmatprep.subr.bf16.mxu0 %v230
  %308 = vmatpush1.bf16.msra.mxu0 %v229
  %309 = vmatprep.subr.bf16.mxu0 0
  %310 = vmatpush2.bf16.msra.mxu0 0
  %311 = vmatprep.subr.bf16.mxu0 0
  %312 = vmatpush2.bf16.msra.mxu0 0
  %313 = vmatprep.subr.bf16.mxu0 0
  %314 = vmatpush2.bf16.msra.mxu0 0
  %315 = vmatprep.subr.bf16.mxu0 0
  %316 = vmatpush2.bf16.msra.mxu0 0
  %317 = vmatprep.subr.bf16.mxu0 0
  %318 = vmatpush2.bf16.msra.mxu0 0
  %319 = vmatprep.subr.bf16.mxu0 0
  %320 = vmatpush2.bf16.msra.mxu0 0
  %321 = vmatprep.subr.bf16.mxu0 0
  %322 = vmatpush2.bf16.msra.mxu0 0
  %323 = vmatprep.subr.bf16.mxu0 0
  %324 = vmatpush2.bf16.msra.mxu0 0
  %325 = vmatprep.mubr.bf16.mxu0 0
  %326 = vmatmul.mubr.bf16.gmra.mxu0 %v117
  %v327 = vpop.f32.mrf.mxu0
  %v328 = vadd.f32 %v68, %v327
  %v329 = vpop.f32.mrf.mxu0
  %v330 = vadd.f32 %v72, %v329
  %v331 = vpop.f32.mrf.mxu0
  %v332 = vadd.f32 %v68, %v331
  %v333 = vpop.f32.mrf.mxu0
  %v334 = vadd.f32 %v72, %v333
  %335 = vmatprep.mubr.bf16.mxu0 0
  %336 = vmatmul.mubr.bf16.gmra.mxu0 %v118
  %v337 = vpop.f32.mrf.mxu0
  %v338 = vadd.f32 %v68, %v337
  %v339 = vpop.f32.mrf.mxu0
  %v340 = vadd.f32 %v72, %v339
  %v341 = vpop.f32.mrf.mxu0
  %v342 = vadd.f32 %v68, %v341
  %v343 = vpop.f32.mrf.mxu0
  %v344 = vadd.f32 %v72, %v343
  %345 = vmatprep.mubr.bf16.mxu0 0
  %346 = vmatmul.mubr.bf16.gmra.mxu0 %v119
  %v347 = vpop.f32.mrf.mxu0
  %v348 = vadd.f32 %v68, %v347
  %v349 = vpop.f32.mrf.mxu0
  %v350 = vadd.f32 %v72, %v349
  %v351 = vpop.f32.mrf.mxu0
  %v352 = vadd.f32 %v68, %v351
  %v353 = vpop.f32.mrf.mxu0
  %v354 = vadd.f32 %v72, %v353
  %355 = vmatprep.mubr.bf16.mxu0 0
  %356 = vmatmul.mubr.bf16.gmra.mxu0 %v120
  %v357 = vpop.f32.mrf.mxu0
  %v358 = vadd.f32 %v68, %v357
  %v359 = vpop.f32.mrf.mxu0
  %v360 = vadd.f32 %v72, %v359
  %v361 = vpop.f32.mrf.mxu0
  %v362 = vadd.f32 %v68, %v361
  %v363 = vpop.f32.mrf.mxu0
  %v364 = vadd.f32 %v72, %v363
  %365 = vmatprep.mubr.bf16.mxu0 0
  %366 = vmatmul.mubr.bf16.gmra.mxu0 %v121
  %v367 = vpop.f32.mrf.mxu0
  %v368 = vadd.f32 %v68, %v367
  %v369 = vpop.f32.mrf.mxu0
  %v370 = vadd.f32 %v72, %v369
  %v371 = vpop.f32.mrf.mxu0
  %v372 = vadd.f32 %v68, %v371
  %v373 = vpop.f32.mrf.mxu0
  %v374 = vadd.f32 %v72, %v373
  %375 = vmatprep.mubr.bf16.mxu0 0
  %376 = vmatmul.mubr.bf16.gmra.mxu0 %v122
  %v377 = vpop.f32.mrf.mxu0
  %v378 = vadd.f32 %v68, %v377
  %v379 = vpop.f32.mrf.mxu0
  %v380 = vadd.f32 %v72, %v379
  %v381 = vpop.f32.mrf.mxu0
  %v382 = vadd.f32 %v68, %v381
  %v383 = vpop.f32.mrf.mxu0
  %v384 = vadd.f32 %v72, %v383
  %385 = vmatprep.mubr.bf16.mxu0 0
  %386 = vmatmul.mubr.bf16.gmra.mxu0 %v123
  %v387 = vpop.f32.mrf.mxu0
  %v388 = vadd.f32 %v68, %v387
  %v389 = vpop.f32.mrf.mxu0
  %v390 = vadd.f32 %v72, %v389
  %v391 = vpop.f32.mrf.mxu0
  %v392 = vadd.f32 %v68, %v391
  %v393 = vpop.f32.mrf.mxu0
  %v394 = vadd.f32 %v72, %v393
  %395 = vmatprep.mubr.bf16.mxu0 0
  %396 = vmatmul.mubr.bf16.gmra.mxu0 %v124
  %v397 = vpop.f32.mrf.mxu0
  %v398 = vadd.f32 %v68, %v397
  %v399 = vpop.f32.mrf.mxu0
  %v400 = vadd.f32 %v72, %v399
  %v401 = vpop.f32.mrf.mxu0
  %v402 = vadd.f32 %v68, %v401
  %v403 = vpop.f32.mrf.mxu0
  %v404 = vadd.f32 %v72, %v403
  %405 = vdwg.mxu0
  %406 = vmatprep.subr.bf16.mxu0 %v260
  %407 = vmatpush1.bf16.msra.mxu0 %v259
  %408 = vmatprep.subr.bf16.mxu0 %v256
  %409 = vmatpush1.bf16.msra.mxu0 %v255
  %410 = vmatprep.subr.bf16.mxu0 %v252
  %411 = vmatpush1.bf16.msra.mxu0 %v251
  %412 = vmatprep.subr.bf16.mxu0 %v248
  %413 = vmatpush1.bf16.msra.mxu0 %v247
  %414 = vmatprep.subr.bf16.mxu0 %v244
  %415 = vmatpush1.bf16.msra.mxu0 %v243
  %416 = vmatprep.subr.bf16.mxu0 %v240
  %417 = vmatpush1.bf16.msra.mxu0 %v239
  %418 = vmatprep.subr.bf16.mxu0 %v236
  %419 = vmatpush1.bf16.msra.mxu0 %v235
  %420 = vmatprep.subr.bf16.mxu0 %v232
  %421 = vmatpush1.bf16.msra.mxu0 %v231
  %422 = vmatprep.subr.bf16.mxu0 0
  %423 = vmatpush2.bf16.msra.mxu0 0
  %424 = vmatprep.subr.bf16.mxu0 0
  %425 = vmatpush2.bf16.msra.mxu0 0
  %426 = vmatprep.subr.bf16.mxu0 0
  %427 = vmatpush2.bf16.msra.mxu0 0
  %428 = vmatprep.subr.bf16.mxu0 0
  %429 = vmatpush2.bf16.msra.mxu0 0
  %430 = vmatprep.subr.bf16.mxu0 0
  %431 = vmatpush2.bf16.msra.mxu0 0
  %432 = vmatprep.subr.bf16.mxu0 0
  %433 = vmatpush2.bf16.msra.mxu0 0
  %434 = vmatprep.subr.bf16.mxu0 0
  %435 = vmatpush2.bf16.msra.mxu0 0
  %436 = vmatprep.subr.bf16.mxu0 0
  %437 = vmatpush2.bf16.msra.mxu0 0
  %438 = vmatprep.mubr.bf16.mxu0 0
  %439 = vmatmul.mubr.bf16.gmra.mxu0 %v117
  %v440 = vpop.f32.mrf.mxu0
  %v441 = vadd.f32 %v76, %v440
  %v442 = vpop.f32.mrf.mxu0
  %v443 = vadd.f32 %v80, %v442
  %v444 = vpop.f32.mrf.mxu0
  %v445 = vadd.f32 %v76, %v444
  %v446 = vpop.f32.mrf.mxu0
  %v447 = vadd.f32 %v80, %v446
  %448 = vmatprep.mubr.bf16.mxu0 0
  %449 = vmatmul.mubr.bf16.gmra.mxu0 %v118
  %v450 = vpop.f32.mrf.mxu0
  %v451 = vadd.f32 %v76, %v450
  %v452 = vpop.f32.mrf.mxu0
  %v453 = vadd.f32 %v80, %v452
  %v454 = vpop.f32.mrf.mxu0
  %v455 = vadd.f32 %v76, %v454
  %v456 = vpop.f32.mrf.mxu0
  %v457 = vadd.f32 %v80, %v456
  %458 = vmatprep.mubr.bf16.mxu0 0
  %459 = vmatmul.mubr.bf16.gmra.mxu0 %v119
  %v460 = vpop.f32.mrf.mxu0
  %v461 = vadd.f32 %v76, %v460
  %v462 = vpop.f32.mrf.mxu0
  %v463 = vadd.f32 %v80, %v462
  %v464 = vpop.f32.mrf.mxu0
  %v465 = vadd.f32 %v76, %v464
  %v466 = vpop.f32.mrf.mxu0
  %v467 = vadd.f32 %v80, %v466
  %468 = vmatprep.mubr.bf16.mxu0 0
  %469 = vmatmul.mubr.bf16.gmra.mxu0 %v120
  %v470 = vpop.f32.mrf.mxu0
  %v471 = vadd.f32 %v76, %v470
  %v472 = vpop.f32.mrf.mxu0
  %v473 = vadd.f32 %v80, %v472
  %v474 = vpop.f32.mrf.mxu0
  %v475 = vadd.f32 %v76, %v474
  %v476 = vpop.f32.mrf.mxu0
  %v477 = vadd.f32 %v80, %v476
  %478 = vmatprep.mubr.bf16.mxu0 0
  %479 = vmatmul.mubr.bf16.gmra.mxu0 %v121
  %v480 = vpop.f32.mrf.mxu0
  %v481 = vadd.f32 %v76, %v480
  %v482 = vpop.f32.mrf.mxu0
  %v483 = vadd.f32 %v80, %v482
  %v484 = vpop.f32.mrf.mxu0
  %v485 = vadd.f32 %v76, %v484
  %v486 = vpop.f32.mrf.mxu0
  %v487 = vadd.f32 %v80, %v486
  %488 = vmatprep.mubr.bf16.mxu0 0
  %489 = vmatmul.mubr.bf16.gmra.mxu0 %v122
  %v490 = vpop.f32.mrf.mxu0
  %v491 = vadd.f32 %v76, %v490
  %v492 = vpop.f32.mrf.mxu0
  %v493 = vadd.f32 %v80, %v492
  %v494 = vpop.f32.mrf.mxu0
  %v495 = vadd.f32 %v76, %v494
  %v496 = vpop.f32.mrf.mxu0
  %v497 = vadd.f32 %v80, %v496
  %498 = vmatprep.mubr.bf16.mxu0 0
  %499 = vmatmul.mubr.bf16.gmra.mxu0 %v123
  %v500 = vpop.f32.mrf.mxu0
  %v501 = vadd.f32 %v76, %v500
  %v502 = vpop.f32.mrf.mxu0
  %v503 = vadd.f32 %v80, %v502
  %v504 = vpop.f32.mrf.mxu0
  %v505 = vadd.f32 %v76, %v504
  %v506 = vpop.f32.mrf.mxu0
  %v507 = vadd.f32 %v80, %v506
  %508 = vmatprep.mubr.bf16.mxu0 0
  %509 = vmatmul.mubr.bf16.gmra.mxu0 %v124
  %v510 = vpop.f32.mrf.mxu0
  %v511 = vadd.f32 %v76, %v510
  %v512 = vpop.f32.mrf.mxu0
  %v513 = vadd.f32 %v80, %v512
  %v514 = vpop.f32.mrf.mxu0
  %v515 = vadd.f32 %v76, %v514
  %v516 = vpop.f32.mrf.mxu0
  %v517 = vadd.f32 %v80, %v516
  %518 = vdwg.mxu0
  %v519 = vpack.c.bf16 %v332, %v328
  %v520 = vpack.c.bf16 %v334, %v330
  %v521 = vpack.c.bf16 %v445, %v441
  %v522 = vpack.c.bf16 %v447, %v443
  %v523 = vpack.c.bf16 %v342, %v338
  %v524 = vpack.c.bf16 %v344, %v340
  %v525 = vpack.c.bf16 %v455, %v451
  %v526 = vpack.c.bf16 %v457, %v453
  %v527 = vpack.c.bf16 %v352, %v348
  %v528 = vpack.c.bf16 %v354, %v350
  %v529 = vpack.c.bf16 %v465, %v461
  %v530 = vpack.c.bf16 %v467, %v463
  %v531 = vpack.c.bf16 %v362, %v358
  %v532 = vpack.c.bf16 %v364, %v360
  %v533 = vpack.c.bf16 %v475, %v471
  %v534 = vpack.c.bf16 %v477, %v473
  %v535 = vpack.c.bf16 %v372, %v368
  %v536 = vpack.c.bf16 %v374, %v370
  %v537 = vpack.c.bf16 %v485, %v481
  %v538 = vpack.c.bf16 %v487, %v483
  %v539 = vpack.c.bf16 %v382, %v378
  %v540 = vpack.c.bf16 %v384, %v380
  %v541 = vpack.c.bf16 %v495, %v491
  %v542 = vpack.c.bf16 %v497, %v493
  %v543 = vpack.c.bf16 %v392, %v388
  %v544 = vpack.c.bf16 %v394, %v390
  %v545 = vpack.c.bf16 %v505, %v501
  %v546 = vpack.c.bf16 %v507, %v503
  %v547 = vpack.c.bf16 %v402, %v398
  %v548 = vpack.c.bf16 %v404, %v400
  %v549 = vpack.c.bf16 %v515, %v511
  %v550 = vpack.c.bf16 %v517, %v513
  %v583 = vunpack.c.l.b16 %v519
  %v584 = vunpack.c.l.b16 %v520
  %v585 = vunpack.c.l.b16 %v521
  %v586 = vunpack.c.l.b16 %v522
  %v587 = vunpack.c.h.b16 %v519
  %v588 = vunpack.c.h.b16 %v520
  %v589 = vunpack.c.h.b16 %v521
  %v590 = vunpack.c.h.b16 %v522
  %v591 = vunpack.c.l.b16 %v523
  %v592 = vunpack.c.l.b16 %v524
  %v593 = vunpack.c.l.b16 %v525
  %v594 = vunpack.c.l.b16 %v526
  %v595 = vunpack.c.h.b16 %v523
  %v596 = vunpack.c.h.b16 %v524
  %v597 = vunpack.c.h.b16 %v525
  %v598 = vunpack.c.h.b16 %v526
  %v599 = vunpack.c.l.b16 %v527
  %v600 = vunpack.c.l.b16 %v528
  %v601 = vunpack.c.l.b16 %v529
  %v602 = vunpack.c.l.b16 %v530
  %v603 = vunpack.c.h.b16 %v527
  %v604 = vunpack.c.h.b16 %v528
  %v605 = vunpack.c.h.b16 %v529
  %v606 = vunpack.c.h.b16 %v530
  %v607 = vunpack.c.l.b16 %v531
  %v608 = vunpack.c.l.b16 %v532
  %v609 = vunpack.c.l.b16 %v533
  %v610 = vunpack.c.l.b16 %v534
  %v611 = vunpack.c.h.b16 %v531
  %v612 = vunpack.c.h.b16 %v532
  %v613 = vunpack.c.h.b16 %v533
  %v614 = vunpack.c.h.b16 %v534
  %v615 = vunpack.c.l.b16 %v535
  %v616 = vunpack.c.l.b16 %v536
  %v617 = vunpack.c.l.b16 %v537
  %v618 = vunpack.c.l.b16 %v538
  %v619 = vunpack.c.h.b16 %v535
  %v620 = vunpack.c.h.b16 %v536
  %v621 = vunpack.c.h.b16 %v537
  %v622 = vunpack.c.h.b16 %v538
  %v623 = vunpack.c.l.b16 %v539
  %v624 = vunpack.c.l.b16 %v540
  %v625 = vunpack.c.l.b16 %v541
  %v626 = vunpack.c.l.b16 %v542
  %v627 = vunpack.c.h.b16 %v539
  %v628 = vunpack.c.h.b16 %v540
  %v629 = vunpack.c.h.b16 %v541
  %v630 = vunpack.c.h.b16 %v542
  %v631 = vunpack.c.l.b16 %v543
  %v632 = vunpack.c.l.b16 %v544
  %v633 = vunpack.c.l.b16 %v545
  %v634 = vunpack.c.l.b16 %v546
  %v635 = vunpack.c.h.b16 %v543
  %v636 = vunpack.c.h.b16 %v544
  %v637 = vunpack.c.h.b16 %v545
  %v638 = vunpack.c.h.b16 %v546
  %v639 = vunpack.c.l.b16 %v547
  %v640 = vunpack.c.l.b16 %v548
  %v641 = vunpack.c.l.b16 %v549
  %v642 = vunpack.c.l.b16 %v550
  %v643 = vunpack.c.h.b16 %v547
  %v644 = vunpack.c.h.b16 %v548
  %v645 = vunpack.c.h.b16 %v549
  %v646 = vunpack.c.h.b16 %v550
  %v647 = vpack.c.b16 %v584, %v583
  %v648 = vpack.c.b16 %v586, %v585
  %v649 = vpack.c.b16 %v588, %v587
  %v650 = vpack.c.b16 %v590, %v589
  %v651 = vpack.c.b16 %v592, %v591
  %v652 = vpack.c.b16 %v594, %v593
  %v653 = vpack.c.b16 %v596, %v595
  %v654 = vpack.c.b16 %v598, %v597
  %v655 = vpack.c.b16 %v600, %v599
  %v656 = vpack.c.b16 %v602, %v601
  %v657 = vpack.c.b16 %v604, %v603
  %v658 = vpack.c.b16 %v606, %v605
  %v659 = vpack.c.b16 %v608, %v607
  %v660 = vpack.c.b16 %v610, %v609
  %v661 = vpack.c.b16 %v612, %v611
  %v662 = vpack.c.b16 %v614, %v613
  %v663 = vpack.c.b16 %v616, %v615
  %v664 = vpack.c.b16 %v618, %v617
  %v665 = vpack.c.b16 %v620, %v619
  %v666 = vpack.c.b16 %v622, %v621
  %v667 = vpack.c.b16 %v624, %v623
  %v668 = vpack.c.b16 %v626, %v625
  %v669 = vpack.c.b16 %v628, %v627
  %v670 = vpack.c.b16 %v630, %v629
  %v671 = vpack.c.b16 %v632, %v631
  %v672 = vpack.c.b16 %v634, %v633
  %v673 = vpack.c.b16 %v636, %v635
  %v674 = vpack.c.b16 %v638, %v637
  %v675 = vpack.c.b16 %v640, %v639
  %v676 = vpack.c.b16 %v642, %v641
  %v677 = vpack.c.b16 %v644, %v643
  %v678 = vpack.c.b16 %v646, %v645
  %711 = vst [vmem:[%s3] sm:$0xff] %v647
  %712 = vst [vmem:[%s3 + $0x8] sm:$0xff] %v648
  %713 = vst [vmem:[%s3 + $0x10] sm:$0xff] %v649
  %714 = vst [vmem:[%s3 + $0x18] sm:$0xff] %v650
  %715 = vst [vmem:[%s3 + $0x20] sm:$0xff] %v651
  %716 = vst [vmem:[%s3 + $0x28] sm:$0xff] %v652
  %717 = vst [vmem:[%s3 + $0x30] sm:$0xff] %v653
  %718 = vst [vmem:[%s3 + $0x38] sm:$0xff] %v654
  %719 = vst [vmem:[%s3 + $0x40] sm:$0xff] %v655
  %720 = vst [vmem:[%s3 + $0x48] sm:$0xff] %v656
  %721 = vst [vmem:[%s3 + $0x50] sm:$0xff] %v657
  %722 = vst [vmem:[%s3 + $0x58] sm:$0xff] %v658
  %723 = vst [vmem:[%s3 + $0x60] sm:$0xff] %v659
  %724 = vst [vmem:[%s3 + $0x68] sm:$0xff] %v660
  %725 = vst [vmem:[%s3 + $0x70] sm:$0xff] %v661
  %726 = vst [vmem:[%s3 + $0x78] sm:$0xff] %v662
  %727 = vst [vmem:[%s3 + $0x80] sm:$0xff] %v663
  %728 = vst [vmem:[%s3 + $0x88] sm:$0xff] %v664
  %729 = vst [vmem:[%s3 + $0x90] sm:$0xff] %v665
  %730 = vst [vmem:[%s3 + $0x98] sm:$0xff] %v666
  %731 = vst [vmem:[%s3 + $0xa0] sm:$0xff] %v667
  %732 = vst [vmem:[%s3 + $0xa8] sm:$0xff] %v668
  %733 = vst [vmem:[%s3 + $0xb0] sm:$0xff] %v669
  %734 = vst [vmem:[%s3 + $0xb8] sm:$0xff] %v670
  %735 = vst [vmem:[%s3 + $0xc0] sm:$0xff] %v671
  %736 = vst [vmem:[%s3 + $0xc8] sm:$0xff] %v672
  %737 = vst [vmem:[%s3 + $0xd0] sm:$0xff] %v673
  %738 = vst [vmem:[%s3 + $0xd8] sm:$0xff] %v674
  %739 = vst [vmem:[%s3 + $0xe0] sm:$0xff] %v675
  %740 = vst [vmem:[%s3 + $0xe8] sm:$0xff] %v676
  %741 = vst [vmem:[%s3 + $0xf0] sm:$0xff] %v677
  %742 = vst [vmem:[%s3 + $0xf8] sm:$0xff] %v678
  // Predicated region
  $region14: #{seq2seq_forward.5} parent=0 // pred_check
    _
  $region15: #{seq2seq_forward.5} parent=0 // pred_check_branch
    %744 = sbr.rel (0) target = $region17
  $region16: #{seq2seq_forward.5} parent=0 // pred_region
    _
  $region17: #{seq2seq_forward.5} parent=0 // pred_fallthru
    _
  // Predicated region
  $region18: #{seq2seq_forward.5} parent=0 // pred_check
    _
  $region19: #{seq2seq_forward.5} parent=0 // pred_check_branch
    %746 = sbr.rel (0) target = $region21
  $region20: #{seq2seq_forward.5} parent=0 // pred_region
    _
  $region21: #{seq2seq_forward.5} parent=0 // pred_fallthru
    _

// kernel: seq2seq_forward.8
$region0: #{seq2seq_forward.8}
  #allocation0 [shape = 'u32[]', space=smem, size = 0x4, offset = 0x4, fixed_abs, tag = 'smem constant byte address 0x4 - core index']
  #allocation1 [shape = 'u32[144,128]{1,0:T(1,128)}', space=vmem, size = 0x12000, scoped, tag = 'internal scratch']
  #allocation2 [shape = 'f32[8,128]{1,0:T(8,128)}', space=vmem, size = 0x1000, scoped, tag = 'scratch operand']
  #allocation3 [shape = 'f32[8,128]{1,0:T(8,128)}', space=vmem, size = 0x1000, scoped, tag = 'scratch operand']
  %s0 = inlined_call_operand.vmem [shape: bf16[8,8,512], index: 0, kind: input, shape index: {}]
  %s1 = inlined_call_operand.vmem [shape: f32[8,128], index: 1, kind: input, shape index: {}]
  %s2 = inlined_call_operand.vmem [shape: f32[8,128], index: 2, kind: input, shape index: {}]
  %s3 = inlined_call_operand.vmem [shape: bf16[128,512], index: 3, kind: input, shape index: {}]
  %s4 = inlined_call_operand.vmem [shape: bf16[8,8,128], index: 4, kind: output, shape index: {}]
  %s5 = sld [smem:[#allocation0]]
  $region30: #{seq2seq_forward.8} parent=0
    _
  %s7 = ssub.s32 1, %s5
  %s8 = scalar_select 0, %s7, %s5
  // Predicated region
  $region2: #{seq2seq_forward.8} parent=0 // pred_check
    _
  $region3: #{seq2seq_forward.8} parent=0 // pred_check_branch
    %10 = sbr.rel (0) target = $region5
  $region4: #{seq2seq_forward.8} parent=0 // pred_region
    _
  $region5: #{seq2seq_forward.8} parent=0 // pred_fallthru
    _
  // Predicated region
  $region6: #{seq2seq_forward.8} parent=0 // pred_check
    _
  $region7: #{seq2seq_forward.8} parent=0 // pred_check_branch
    %12 = sbr.rel (0) target = $region9
  $region8: #{seq2seq_forward.8} parent=0 // pred_region
    _
  $region9: #{seq2seq_forward.8} parent=0 // pred_fallthru
    _
  // Predicated region
  $region10: #{seq2seq_forward.8} parent=0 // pred_check
    _
  $region11: #{seq2seq_forward.8} parent=0 // pred_check_branch
    %14 = sbr.rel (0) target = $region13
  $region12: #{seq2seq_forward.8} parent=0 // pred_region
    _
  $region13: #{seq2seq_forward.8} parent=0 // pred_fallthru
    _
  // Predicated region
  $region14: #{seq2seq_forward.8} parent=0 // pred_check
    _
  $region15: #{seq2seq_forward.8} parent=0 // pred_check_branch
    %16 = sbr.rel (0) target = $region17
  $region16: #{seq2seq_forward.8} parent=0 // pred_region
    _
  $region17: #{seq2seq_forward.8} parent=0 // pred_fallthru
    _
  %p18 = scmp.eq.s32.totalorder 0, 0
  // Predicated region
  $region18: #{seq2seq_forward.8} parent=0 // pred_check
    %p19 = pneg %p18
  $region19: #{seq2seq_forward.8} parent=0 // pred_check_branch
    %21 = sbr.rel (%p19) target = $region21
  $region20: #{seq2seq_forward.8} parent=0 // pred_region
    %v22 = vld [vmem:[%s1] sm:$0xff]
    %23 = vst [vmem:[#allocation2] sm:$0xff] %v22
    %v24 = vld [vmem:[%s2] sm:$0xff]
    %25 = vst [vmem:[#allocation3] sm:$0xff] %v24
  $region21: #{seq2seq_forward.8} parent=0 // pred_fallthru
    _
  %v26 = vld [vmem:[%s3] sm:$0xff]
  %v27 = vld [vmem:[%s3 + $0x8] sm:$0xff]
  %v28 = vld [vmem:[%s3 + $0x10] sm:$0xff]
  %v29 = vld [vmem:[%s3 + $0x18] sm:$0xff]
  %v30 = vld [vmem:[%s3 + $0x20] sm:$0xff]
  %v31 = vld [vmem:[%s3 + $0x28] sm:$0xff]
  %v32 = vld [vmem:[%s3 + $0x30] sm:$0xff]
  %v33 = vld [vmem:[%s3 + $0x38] sm:$0xff]
  %v34 = vld [vmem:[%s3 + $0x40] sm:$0xff]
  %v35 = vld [vmem:[%s3 + $0x48] sm:$0xff]
  %v36 = vld [vmem:[%s3 + $0x50] sm:$0xff]
  %v37 = vld [vmem:[%s3 + $0x58] sm:$0xff]
  %v38 = vld [vmem:[%s3 + $0x60] sm:$0xff]
  %v39 = vld [vmem:[%s3 + $0x68] sm:$0xff]
  %v40 = vld [vmem:[%s3 + $0x70] sm:$0xff]
  %v41 = vld [vmem:[%s3 + $0x78] sm:$0xff]
  %v42 = vld [vmem:[%s3 + $0x80] sm:$0xff]
  %v43 = vld [vmem:[%s3 + $0x88] sm:$0xff]
  %v44 = vld [vmem:[%s3 + $0x90] sm:$0xff]
  %v45 = vld [vmem:[%s3 + $0x98] sm:$0xff]
  %v46 = vld [vmem:[%s3 + $0xa0] sm:$0xff]
  %v47 = vld [vmem:[%s3 + $0xa8] sm:$0xff]
  %v48 = vld [vmem:[%s3 + $0xb0] sm:$0xff]
  %v49 = vld [vmem:[%s3 + $0xb8] sm:$0xff]
  %v50 = vld [vmem:[%s3 + $0xc0] sm:$0xff]
  %v51 = vld [vmem:[%s3 + $0xc8] sm:$0xff]
  %v52 = vld [vmem:[%s3 + $0xd0] sm:$0xff]
  %v53 = vld [vmem:[%s3 + $0xd8] sm:$0xff]
  %v54 = vld [vmem:[%s3 + $0xe0] sm:$0xff]
  %v55 = vld [vmem:[%s3 + $0xe8] sm:$0xff]
  %v56 = vld [vmem:[%s3 + $0xf0] sm:$0xff]
  %v57 = vld [vmem:[%s3 + $0xf8] sm:$0xff]
  %v58 = vld [vmem:[#allocation2] sm:$0xff]
  %v59 = vld [vmem:[#allocation3] sm:$0xff]
  %v60 = vld [vmem:[%s0] sm:$0xff]
  %v61 = vld [vmem:[%s0 + $0x8] sm:$0xff]
  %v62 = vunpack.c.l.bf16 %v60
  %v63 = vunpack.c.h.bf16 %v60
  %v64 = vunpack.c.l.bf16 %v61
  %v65 = vunpack.c.h.bf16 %v61
  %v66 = vpack.c.bf16 %v58, %v58
  %v99 = vunpack.c.l.b16 %v26
  %v100 = vunpack.c.h.b16 %v26
  %v101 = vunpack.c.l.b16 %v27
  %v102 = vunpack.c.h.b16 %v27
  %v103 = vunpack.c.l.b16 %v28
  %v104 = vunpack.c.h.b16 %v28
  %v105 = vunpack.c.l.b16 %v29
  %v106 = vunpack.c.h.b16 %v29
  %v107 = vunpack.c.l.b16 %v30
  %v108 = vunpack.c.h.b16 %v30
  %v109 = vunpack.c.l.b16 %v31
  %v110 = vunpack.c.h.b16 %v31
  %v111 = vunpack.c.l.b16 %v32
  %v112 = vunpack.c.h.b16 %v32
  %v113 = vunpack.c.l.b16 %v33
  %v114 = vunpack.c.h.b16 %v33
  %v115 = vunpack.c.l.b16 %v34
  %v116 = vunpack.c.h.b16 %v34
  %v117 = vunpack.c.l.b16 %v35
  %v118 = vunpack.c.h.b16 %v35
  %v119 = vunpack.c.l.b16 %v36
  %v120 = vunpack.c.h.b16 %v36
  %v121 = vunpack.c.l.b16 %v37
  %v122 = vunpack.c.h.b16 %v37
  %v123 = vunpack.c.l.b16 %v38
  %v124 = vunpack.c.h.b16 %v38
  %v125 = vunpack.c.l.b16 %v39
  %v126 = vunpack.c.h.b16 %v39
  %v127 = vunpack.c.l.b16 %v40
  %v128 = vunpack.c.h.b16 %v40
  %v129 = vunpack.c.l.b16 %v41
  %v130 = vunpack.c.h.b16 %v41
  %v131 = vunpack.c.l.b16 %v42
  %v132 = vunpack.c.h.b16 %v42
  %v133 = vunpack.c.l.b16 %v43
  %v134 = vunpack.c.h.b16 %v43
  %v135 = vunpack.c.l.b16 %v44
  %v136 = vunpack.c.h.b16 %v44
  %v137 = vunpack.c.l.b16 %v45
  %v138 = vunpack.c.h.b16 %v45
  %v139 = vunpack.c.l.b16 %v46
  %v140 = vunpack.c.h.b16 %v46
  %v141 = vunpack.c.l.b16 %v47
  %v142 = vunpack.c.h.b16 %v47
  %v143 = vunpack.c.l.b16 %v48
  %v144 = vunpack.c.h.b16 %v48
  %v145 = vunpack.c.l.b16 %v49
  %v146 = vunpack.c.h.b16 %v49
  %v147 = vunpack.c.l.b16 %v50
  %v148 = vunpack.c.h.b16 %v50
  %v149 = vunpack.c.l.b16 %v51
  %v150 = vunpack.c.h.b16 %v51
  %v151 = vunpack.c.l.b16 %v52
  %v152 = vunpack.c.h.b16 %v52
  %v153 = vunpack.c.l.b16 %v53
  %v154 = vunpack.c.h.b16 %v53
  %v155 = vunpack.c.l.b16 %v54
  %v156 = vunpack.c.h.b16 %v54
  %v157 = vunpack.c.l.b16 %v55
  %v158 = vunpack.c.h.b16 %v55
  %v159 = vunpack.c.l.b16 %v56
  %v160 = vunpack.c.h.b16 %v56
  %v161 = vunpack.c.l.b16 %v57
  %v162 = vunpack.c.h.b16 %v57
  %v163 = vpack.c.b16 %v103, %v99
  %v164 = vpack.c.b16 %v104, %v100
  %v165 = vpack.c.b16 %v105, %v101
  %v166 = vpack.c.b16 %v106, %v102
  %v167 = vpack.c.b16 %v111, %v107
  %v168 = vpack.c.b16 %v112, %v108
  %v169 = vpack.c.b16 %v113, %v109
  %v170 = vpack.c.b16 %v114, %v110
  %v171 = vpack.c.b16 %v119, %v115
  %v172 = vpack.c.b16 %v120, %v116
  %v173 = vpack.c.b16 %v121, %v117
  %v174 = vpack.c.b16 %v122, %v118
  %v175 = vpack.c.b16 %v127, %v123
  %v176 = vpack.c.b16 %v128, %v124
  %v177 = vpack.c.b16 %v129, %v125
  %v178 = vpack.c.b16 %v130, %v126
  %v179 = vpack.c.b16 %v135, %v131
  %v180 = vpack.c.b16 %v136, %v132
  %v181 = vpack.c.b16 %v137, %v133
  %v182 = vpack.c.b16 %v138, %v134
  %v183 = vpack.c.b16 %v143, %v139
  %v184 = vpack.c.b16 %v144, %v140
  %v185 = vpack.c.b16 %v145, %v141
  %v186 = vpack.c.b16 %v146, %v142
  %v187 = vpack.c.b16 %v151, %v147
  %v188 = vpack.c.b16 %v152, %v148
  %v189 = vpack.c.b16 %v153, %v149
  %v190 = vpack.c.b16 %v154, %v150
  %v191 = vpack.c.b16 %v159, %v155
  %v192 = vpack.c.b16 %v160, %v156
  %v193 = vpack.c.b16 %v161, %v157
  %v194 = vpack.c.b16 %v162, %v158
  %227 = vmatprep.subr.bf16.mxu0 %v192
  %228 = vmatpush1.bf16.msra.mxu0 %v191
  %229 = vmatprep.subr.bf16.mxu0 %v188
  %230 = vmatpush1.bf16.msra.mxu0 %v187
  %231 = vmatprep.subr.bf16.mxu0 %v184
  %232 = vmatpush1.bf16.msra.mxu0 %v183
  %233 = vmatprep.subr.bf16.mxu0 %v180
  %234 = vmatpush1.bf16.msra.mxu0 %v179
  %235 = vmatprep.subr.bf16.mxu0 %v176
  %236 = vmatpush1.bf16.msra.mxu0 %v175
  %237 = vmatprep.subr.bf16.mxu0 %v172
  %238 = vmatpush1.bf16.msra.mxu0 %v171
  %239 = vmatprep.subr.bf16.mxu0 %v168
  %240 = vmatpush1.bf16.msra.mxu0 %v167
  %241 = vmatprep.subr.bf16.mxu0 %v164
  %242 = vmatpush1.bf16.msra.mxu0 %v163
  %243 = vmatprep.subr.bf16.mxu0 0
  %244 = vmatpush2.bf16.msra.mxu0 0
  %245 = vmatprep.subr.bf16.mxu0 0
  %246 = vmatpush2.bf16.msra.mxu0 0
  %247 = vmatprep.subr.bf16.mxu0 0
  %248 = vmatpush2.bf16.msra.mxu0 0
  %249 = vmatprep.subr.bf16.mxu0 0
  %250 = vmatpush2.bf16.msra.mxu0 0
  %251 = vmatprep.subr.bf16.mxu0 0
  %252 = vmatpush2.bf16.msra.mxu0 0
  %253 = vmatprep.subr.bf16.mxu0 0
  %254 = vmatpush2.bf16.msra.mxu0 0
  %255 = vmatprep.subr.bf16.mxu0 0
  %256 = vmatpush2.bf16.msra.mxu0 0
  %257 = vmatprep.subr.bf16.mxu0 0
  %258 = vmatpush2.bf16.msra.mxu0 0
  %259 = vmatprep.mubr.bf16.mxu0 0
  %260 = vmatmul.mubr.bf16.gmra.mxu0 %v66
  %v261 = vpop.f32.mrf.mxu0
  %v262 = vadd.f32 0.0, %v261
  %v263 = vpop.f32.mrf.mxu0
  %v264 = vadd.f32 0.0, %v263
  %v265 = vpop.f32.mrf.mxu0
  %v266 = vpop.f32.mrf.mxu0
  %267 = vdwg.mxu0
  %268 = vmatprep.subr.bf16.mxu0 %v194
  %269 = vmatpush1.bf16.msra.mxu0 %v193
  %270 = vmatprep.subr.bf16.mxu0 %v190
  %271 = vmatpush1.bf16.msra.mxu0 %v189
  %272 = vmatprep.subr.bf16.mxu0 %v186
  %273 = vmatpush1.bf16.msra.mxu0 %v185
  %274 = vmatprep.subr.bf16.mxu0 %v182
  %275 = vmatpush1.bf16.msra.mxu0 %v181
  %276 = vmatprep.subr.bf16.mxu0 %v178
  %277 = vmatpush1.bf16.msra.mxu0 %v177
  %278 = vmatprep.subr.bf16.mxu0 %v174
  %279 = vmatpush1.bf16.msra.mxu0 %v173
  %280 = vmatprep.subr.bf16.mxu0 %v170
  %281 = vmatpush1.bf16.msra.mxu0 %v169
  %282 = vmatprep.subr.bf16.mxu0 %v166
  %283 = vmatpush1.bf16.msra.mxu0 %v165
  %284 = vmatprep.subr.bf16.mxu0 0
  %285 = vmatpush2.bf16.msra.mxu0 0
  %286 = vmatprep.subr.bf16.mxu0 0
  %287 = vmatpush2.bf16.msra.mxu0 0
  %288 = vmatprep.subr.bf16.mxu0 0
  %289 = vmatpush2.bf16.msra.mxu0 0
  %290 = vmatprep.subr.bf16.mxu0 0
  %291 = vmatpush2.bf16.msra.mxu0 0
  %292 = vmatprep.subr.bf16.mxu0 0
  %293 = vmatpush2.bf16.msra.mxu0 0
  %294 = vmatprep.subr.bf16.mxu0 0
  %295 = vmatpush2.bf16.msra.mxu0 0
  %296 = vmatprep.subr.bf16.mxu0 0
  %297 = vmatpush2.bf16.msra.mxu0 0
  %298 = vmatprep.subr.bf16.mxu0 0
  %299 = vmatpush2.bf16.msra.mxu0 0
  %300 = vmatprep.mubr.bf16.mxu0 0
  %301 = vmatmul.mubr.bf16.gmra.mxu0 %v66
  %v302 = vpop.f32.mrf.mxu0
  %v303 = vadd.f32 0.0, %v302
  %v304 = vpop.f32.mrf.mxu0
  %v305 = vadd.f32 0.0, %v304
  %v306 = vpop.f32.mrf.mxu0
  %v307 = vpop.f32.mrf.mxu0
  %308 = vdwg.mxu0
  %v309 = vadd.f32 %v62, %v262
  %v310 = vadd.f32 %v63, %v264
  %v311 = vadd.f32 %v64, %v303
  %v312 = vadd.f32 %v65, %v305
  %v313 = vxor.u32 %v309, 2147483648
  %v314 = vmul.f32 %v313, 1.442695
  %v315 = vpow.pop %v314
  %v316 = vadd.f32 %v315, 1.0
  %v317 = vrcp.pop %v316
  %v318 = vmul.f32 1.0, %v317
  %v319 = vxor.u32 %v310, 2147483648
  %v320 = vmul.f32 %v319, 1.442695
  %v321 = vpow.pop %v320
  %v322 = vadd.f32 %v321, 1.0
  %v323 = vrcp.pop %v322
  %v324 = vmul.f32 1.0, %v323
  %v325 = vtanh.pop %v311
  %v326 = vxor.u32 %v312, 2147483648
  %v327 = vmul.f32 %v326, 1.442695
  %v328 = vpow.pop %v327
  %v329 = vadd.f32 %v328, 1.0
  %v330 = vrcp.pop %v329
  %v331 = vmul.f32 1.0, %v330
  %v332 = vmul.f32 %v324, %v59
  %v333 = vmul.f32 %v318, %v325
  %v334 = vadd.f32 %v332, %v333
  %v335 = vtanh.pop %v334
  %v336 = vmul.f32 %v331, %v335
  %s337 = smul.u32 0, 8
  %p338 = scmp.ge.s32.totalorder %s337, 1
  %s339 = scalar_select %p338, 1, 0
  %v340 = vstv %s339
  %vm341 = vcmp.eq.s32.totalorder %v340, 1
  %v342 = vsel %vm341, %v336, %v58
  %v343 = vsel %vm341, %v334, %v59
  %v344 = vpack.c.bf16 %v342, %v342
  %345 = vst [vmem:[%s4] sm:$0xf] %v344
  %s346 = scalar_lea.vmem %s0, 16
  %v347 = vld [vmem:[%s346] sm:$0xff]
  %v348 = vld [vmem:[%s346 + $0x8] sm:$0xff]
  %v349 = vunpack.c.l.bf16 %v347
  %v350 = vunpack.c.h.bf16 %v347
  %v351 = vunpack.c.l.bf16 %v348
  %v352 = vunpack.c.h.bf16 %v348
  %353 = vmatprep.subr.bf16.mxu0 %v192
  %354 = vmatpush1.bf16.msra.mxu0 %v191
  %355 = vmatprep.subr.bf16.mxu0 %v188
  %356 = vmatpush1.bf16.msra.mxu0 %v187
  %357 = vmatprep.subr.bf16.mxu0 %v184
  %358 = vmatpush1.bf16.msra.mxu0 %v183
  %359 = vmatprep.subr.bf16.mxu0 %v180
  %360 = vmatpush1.bf16.msra.mxu0 %v179
  %361 = vmatprep.subr.bf16.mxu0 %v176
  %362 = vmatpush1.bf16.msra.mxu0 %v175
  %363 = vmatprep.subr.bf16.mxu0 %v172
  %364 = vmatpush1.bf16.msra.mxu0 %v171
  %365 = vmatprep.subr.bf16.mxu0 %v168
  %366 = vmatpush1.bf16.msra.mxu0 %v167
  %367 = vmatprep.subr.bf16.mxu0 %v164
  %368 = vmatpush1.bf16.msra.mxu0 %v163
  %369 = vmatprep.subr.bf16.mxu0 0
  %370 = vmatpush2.bf16.msra.mxu0 0
  %371 = vmatprep.subr.bf16.mxu0 0
  %372 = vmatpush2.bf16.msra.mxu0 0
  %373 = vmatprep.subr.bf16.mxu0 0
  %374 = vmatpush2.bf16.msra.mxu0 0
  %375 = vmatprep.subr.bf16.mxu0 0
  %376 = vmatpush2.bf16.msra.mxu0 0
  %377 = vmatprep.subr.bf16.mxu0 0
  %378 = vmatpush2.bf16.msra.mxu0 0
  %379 = vmatprep.subr.bf16.mxu0 0
  %380 = vmatpush2.bf16.msra.mxu0 0
  %381 = vmatprep.subr.bf16.mxu0 0
  %382 = vmatpush2.bf16.msra.mxu0 0
  %383 = vmatprep.subr.bf16.mxu0 0
  %384 = vmatpush2.bf16.msra.mxu0 0
  %385 = vmatprep.mubr.bf16.mxu0 0
  %386 = vmatmul.mubr.bf16.gmra.mxu0 %v344
  %v387 = vpop.f32.mrf.mxu0
  %v388 = vadd.f32 0.0, %v387
  %v389 = vpop.f32.mrf.mxu0
  %v390 = vadd.f32 0.0, %v389
  %v391 = vpop.f32.mrf.mxu0
  %v392 = vpop.f32.mrf.mxu0
  %393 = vdwg.mxu0
  %394 = vmatprep.subr.bf16.mxu0 %v194
  %395 = vmatpush1.bf16.msra.mxu0 %v193
  %396 = vmatprep.subr.bf16.mxu0 %v190
  %397 = vmatpush1.bf16.msra.mxu0 %v189
  %398 = vmatprep.subr.bf16.mxu0 %v186
  %399 = vmatpush1.bf16.msra.mxu0 %v185
  %400 = vmatprep.subr.bf16.mxu0 %v182
  %401 = vmatpush1.bf16.msra.mxu0 %v181
  %402 = vmatprep.subr.bf16.mxu0 %v178
  %403 = vmatpush1.bf16.msra.mxu0 %v177
  %404 = vmatprep.subr.bf16.mxu0 %v174
  %405 = vmatpush1.bf16.msra.mxu0 %v173
  %406 = vmatprep.subr.bf16.mxu0 %v170
  %407 = vmatpush1.bf16.msra.mxu0 %v169
  %408 = vmatprep.subr.bf16.mxu0 %v166
  %409 = vmatpush1.bf16.msra.mxu0 %v165
  %410 = vmatprep.subr.bf16.mxu0 0
  %411 = vmatpush2.bf16.msra.mxu0 0
  %412 = vmatprep.subr.bf16.mxu0 0
  %413 = vmatpush2.bf16.msra.mxu0 0
  %414 = vmatprep.subr.bf16.mxu0 0
  %415 = vmatpush2.bf16.msra.mxu0 0
  %416 = vmatprep.subr.bf16.mxu0 0
  %417 = vmatpush2.bf16.msra.mxu0 0
  %418 = vmatprep.subr.bf16.mxu0 0
  %419 = vmatpush2.bf16.msra.mxu0 0
  %420 = vmatprep.subr.bf16.mxu0 0
  %421 = vmatpush2.bf16.msra.mxu0 0
  %422 = vmatprep.subr.bf16.mxu0 0
  %423 = vmatpush2.bf16.msra.mxu0 0
  %424 = vmatprep.subr.bf16.mxu0 0
  %425 = vmatpush2.bf16.msra.mxu0 0
  %426 = vmatprep.mubr.bf16.mxu0 0
  %427 = vmatmul.mubr.bf16.gmra.mxu0 %v344
  %v428 = vpop.f32.mrf.mxu0
  %v429 = vadd.f32 0.0, %v428
  %v430 = vpop.f32.mrf.mxu0
  %v431 = vadd.f32 0.0, %v430
  %v432 = vpop.f32.mrf.mxu0
  %v433 = vpop.f32.mrf.mxu0
  %434 = vdwg.mxu0
  %v435 = vadd.f32 %v349, %v388
  %v436 = vadd.f32 %v350, %v390
  %v437 = vadd.f32 %v351, %v429
  %v438 = vadd.f32 %v352, %v431
  %v439 = vxor.u32 %v435, 2147483648
  %v440 = vmul.f32 %v439, 1.442695
  %v441 = vpow.pop %v440
  %v442 = vadd.f32 %v441, 1.0
  %v443 = vrcp.pop %v442
  %v444 = vmul.f32 1.0, %v443
  %v445 = vxor.u32 %v436, 2147483648
  %v446 = vmul.f32 %v445, 1.442695
  %v447 = vpow.pop %v446
  %v448 = vadd.f32 %v447, 1.0
  %v449 = vrcp.pop %v448
  %v450 = vmul.f32 1.0, %v449
  %v451 = vtanh.pop %v437
  %v452 = vxor.u32 %v438, 2147483648
  %v453 = vmul.f32 %v452, 1.442695
  %v454 = vpow.pop %v453
  %v455 = vadd.f32 %v454, 1.0
  %v456 = vrcp.pop %v455
  %v457 = vmul.f32 1.0, %v456
  %v458 = vmul.f32 %v450, %v343
  %v459 = vmul.f32 %v444, %v451
  %v460 = vadd.f32 %v458, %v459
  %v461 = vtanh.pop %v460
  %v462 = vmul.f32 %v457, %v461
  %s463 = sadd.s32 %s337, 1
  %p464 = scmp.ge.s32.totalorder %s463, 1
  %s465 = scalar_select %p464, 1, 0
  %v466 = vstv %s465
  %vm467 = vcmp.eq.s32.totalorder %v466, 1
  %v468 = vsel %vm467, %v462, %v342
  %v469 = vsel %vm467, %v460, %v343
  %v470 = vpack.c.bf16 %v468, %v468
  %s471 = scalar_lea.vmem %s4, 4
  %472 = vst [vmem:[%s471] sm:$0xf] %v470
  %s473 = scalar_lea.vmem %s0, 32
  %v474 = vld [vmem:[%s473] sm:$0xff]
  %v475 = vld [vmem:[%s473 + $0x8] sm:$0xff]
  %v476 = vunpack.c.l.bf16 %v474
  %v477 = vunpack.c.h.bf16 %v474
  %v478 = vunpack.c.l.bf16 %v475
  %v479 = vunpack.c.h.bf16 %v475
  %480 = vmatprep.subr.bf16.mxu0 %v192
  %481 = vmatpush1.bf16.msra.mxu0 %v191
  %482 = vmatprep.subr.bf16.mxu0 %v188
  %483 = vmatpush1.bf16.msra.mxu0 %v187
  %484 = vmatprep.subr.bf16.mxu0 %v184
  %485 = vmatpush1.bf16.msra.mxu0 %v183
  %486 = vmatprep.subr.bf16.mxu0 %v180
  %487 = vmatpush1.bf16.msra.mxu0 %v179
  %488 = vmatprep.subr.bf16.mxu0 %v176
  %489 = vmatpush1.bf16.msra.mxu0 %v175
  %490 = vmatprep.subr.bf16.mxu0 %v172
  %491 = vmatpush1.bf16.msra.mxu0 %v171
  %492 = vmatprep.subr.bf16.mxu0 %v168
  %493 = vmatpush1.bf16.msra.mxu0 %v167
  %494 = vmatprep.subr.bf16.mxu0 %v164
  %495 = vmatpush1.bf16.msra.mxu0 %v163
  %496 = vmatprep.subr.bf16.mxu0 0
  %497 = vmatpush2.bf16.msra.mxu0 0
  %498 = vmatprep.subr.bf16.mxu0 0
  %499 = vmatpush2.bf16.msra.mxu0 0
  %500 = vmatprep.subr.bf16.mxu0 0
  %501 = vmatpush2.bf16.msra.mxu0 0
  %502 = vmatprep.subr.bf16.mxu0 0
  %503 = vmatpush2.bf16.msra.mxu0 0
  %504 = vmatprep.subr.bf16.mxu0 0
  %505 = vmatpush2.bf16.msra.mxu0 0
  %506 = vmatprep.subr.bf16.mxu0 0
  %507 = vmatpush2.bf16.msra.mxu0 0
  %508 = vmatprep.subr.bf16.mxu0 0
  %509 = vmatpush2.bf16.msra.mxu0 0
  %510 = vmatprep.subr.bf16.mxu0 0
  %511 = vmatpush2.bf16.msra.mxu0 0
  %512 = vmatprep.mubr.bf16.mxu0 0
  %513 = vmatmul.mubr.bf16.gmra.mxu0 %v470
  %v514 = vpop.f32.mrf.mxu0
  %v515 = vadd.f32 0.0, %v514
  %v516 = vpop.f32.mrf.mxu0
  %v517 = vadd.f32 0.0, %v516
  %v518 = vpop.f32.mrf.mxu0
  %v519 = vpop.f32.mrf.mxu0
  %520 = vdwg.mxu0
  %521 = vmatprep.subr.bf16.mxu0 %v194
  %522 = vmatpush1.bf16.msra.mxu0 %v193
  %523 = vmatprep.subr.bf16.mxu0 %v190
  %524 = vmatpush1.bf16.msra.mxu0 %v189
  %525 = vmatprep.subr.bf16.mxu0 %v186
  %526 = vmatpush1.bf16.msra.mxu0 %v185
  %527 = vmatprep.subr.bf16.mxu0 %v182
  %528 = vmatpush1.bf16.msra.mxu0 %v181
  %529 = vmatprep.subr.bf16.mxu0 %v178
  %530 = vmatpush1.bf16.msra.mxu0 %v177
  %531 = vmatprep.subr.bf16.mxu0 %v174
  %532 = vmatpush1.bf16.msra.mxu0 %v173
  %533 = vmatprep.subr.bf16.mxu0 %v170
  %534 = vmatpush1.bf16.msra.mxu0 %v169
  %535 = vmatprep.subr.bf16.mxu0 %v166
  %536 = vmatpush1.bf16.msra.mxu0 %v165
  %537 = vmatprep.subr.bf16.mxu0 0
  %538 = vmatpush2.bf16.msra.mxu0 0
  %539 = vmatprep.subr.bf16.mxu0 0
  %540 = vmatpush2.bf16.msra.mxu0 0
  %541 = vmatprep.subr.bf16.mxu0 0
  %542 = vmatpush2.bf16.msra.mxu0 0
  %543 = vmatprep.subr.bf16.mxu0 0
  %544 = vmatpush2.bf16.msra.mxu0 0
  %545 = vmatprep.subr.bf16.mxu0 0
  %546 = vmatpush2.bf16.msra.mxu0 0
  %547 = vmatprep.subr.bf16.mxu0 0
  %548 = vmatpush2.bf16.msra.mxu0 0
  %549 = vmatprep.subr.bf16.mxu0 0
  %550 = vmatpush2.bf16.msra.mxu0 0
  %551 = vmatprep.subr.bf16.mxu0 0
  %552 = vmatpush2.bf16.msra.mxu0 0
  %553 = vmatprep.mubr.bf16.mxu0 0
  %554 = vmatmul.mubr.bf16.gmra.mxu0 %v470
  %v555 = vpop.f32.mrf.mxu0
  %v556 = vadd.f32 0.0, %v555
  %v557 = vpop.f32.mrf.mxu0
  %v558 = vadd.f32 0.0, %v557
  %v559 = vpop.f32.mrf.mxu0
  %v560 = vpop.f32.mrf.mxu0
  %561 = vdwg.mxu0
  %v562 = vadd.f32 %v476, %v515
  %v563 = vadd.f32 %v477, %v517
  %v564 = vadd.f32 %v478, %v556
  %v565 = vadd.f32 %v479, %v558
  %v566 = vxor.u32 %v562, 2147483648
  %v567 = vmul.f32 %v566, 1.442695
  %v568 = vpow.pop %v567
  %v569 = vadd.f32 %v568, 1.0
  %v570 = vrcp.pop %v569
  %v571 = vmul.f32 1.0, %v570
  %v572 = vxor.u32 %v563, 2147483648
  %v573 = vmul.f32 %v572, 1.442695
  %v574 = vpow.pop %v573
  %v575 = vadd.f32 %v574, 1.0
  %v576 = vrcp.pop %v575
  %v577 = vmul.f32 1.0, %v576
  %v578 = vtanh.pop %v564
  %v579 = vxor.u32 %v565, 2147483648
  %v580 = vmul.f32 %v579, 1.442695
  %v581 = vpow.pop %v580
  %v582 = vadd.f32 %v581, 1.0
  %v583 = vrcp.pop %v582
  %v584 = vmul.f32 1.0, %v583
  %v585 = vmul.f32 %v577, %v469
  %v586 = vmul.f32 %v571, %v578
  %v587 = vadd.f32 %v585, %v586
  %v588 = vtanh.pop %v587
  %v589 = vmul.f32 %v584, %v588
  %s590 = sadd.s32 %s337, 2
  %p591 = scmp.ge.s32.totalorder %s590, 1
  %s592 = scalar_select %p591, 1, 0
  %v593 = vstv %s592
  %vm594 = vcmp.eq.s32.totalorder %v593, 1
  %v595 = vsel %vm594, %v589, %v468
  %v596 = vsel %vm594, %v587, %v469
  %v597 = vpack.c.bf16 %v595, %v595
  %s598 = scalar_lea.vmem %s4, 8
  %599 = vst [vmem:[%s598] sm:$0xf] %v597
  %s600 = scalar_lea.vmem %s0, 48
  %v601 = vld [vmem:[%s600] sm:$0xff]
  %v602 = vld [vmem:[%s600 + $0x8] sm:$0xff]
  %v603 = vunpack.c.l.bf16 %v601
  %v604 = vunpack.c.h.bf16 %v601
  %v605 = vunpack.c.l.bf16 %v602
  %v606 = vunpack.c.h.bf16 %v602
  %607 = vmatprep.subr.bf16.mxu0 %v192
  %608 = vmatpush1.bf16.msra.mxu0 %v191
  %609 = vmatprep.subr.bf16.mxu0 %v188
  %610 = vmatpush1.bf16.msra.mxu0 %v187
  %611 = vmatprep.subr.bf16.mxu0 %v184
  %612 = vmatpush1.bf16.msra.mxu0 %v183
  %613 = vmatprep.subr.bf16.mxu0 %v180
  %614 = vmatpush1.bf16.msra.mxu0 %v179
  %615 = vmatprep.subr.bf16.mxu0 %v176
  %616 = vmatpush1.bf16.msra.mxu0 %v175
  %617 = vmatprep.subr.bf16.mxu0 %v172
  %618 = vmatpush1.bf16.msra.mxu0 %v171
  %619 = vmatprep.subr.bf16.mxu0 %v168
  %620 = vmatpush1.bf16.msra.mxu0 %v167
  %621 = vmatprep.subr.bf16.mxu0 %v164
  %622 = vmatpush1.bf16.msra.mxu0 %v163
  %623 = vmatprep.subr.bf16.mxu0 0
  %624 = vmatpush2.bf16.msra.mxu0 0
  %625 = vmatprep.subr.bf16.mxu0 0
  %626 = vmatpush2.bf16.msra.mxu0 0
  %627 = vmatprep.subr.bf16.mxu0 0
  %628 = vmatpush2.bf16.msra.mxu0 0
  %629 = vmatprep.subr.bf16.mxu0 0
  %630 = vmatpush2.bf16.msra.mxu0 0
  %631 = vmatprep.subr.bf16.mxu0 0
  %632 = vmatpush2.bf16.msra.mxu0 0
  %633 = vmatprep.subr.bf16.mxu0 0
  %634 = vmatpush2.bf16.msra.mxu0 0
  %635 = vmatprep.subr.bf16.mxu0 0
  %636 = vmatpush2.bf16.msra.mxu0 0
  %637 = vmatprep.subr.bf16.mxu0 0
  %638 = vmatpush2.bf16.msra.mxu0 0
  %639 = vmatprep.mubr.bf16.mxu0 0
  %640 = vmatmul.mubr.bf16.gmra.mxu0 %v597
  %v641 = vpop.f32.mrf.mxu0
  %v642 = vadd.f32 0.0, %v641
  %v643 = vpop.f32.mrf.mxu0
  %v644 = vadd.f32 0.0, %v643
  %v645 = vpop.f32.mrf.mxu0
  %v646 = vpop.f32.mrf.mxu0
  %647 = vdwg.mxu0
  %648 = vmatprep.subr.bf16.mxu0 %v194
  %649 = vmatpush1.bf16.msra.mxu0 %v193
  %650 = vmatprep.subr.bf16.mxu0 %v190
  %651 = vmatpush1.bf16.msra.mxu0 %v189
  %652 = vmatprep.subr.bf16.mxu0 %v186
  %653 = vmatpush1.bf16.msra.mxu0 %v185
  %654 = vmatprep.subr.bf16.mxu0 %v182
  %655 = vmatpush1.bf16.msra.mxu0 %v181
  %656 = vmatprep.subr.bf16.mxu0 %v178
  %657 = vmatpush1.bf16.msra.mxu0 %v177
  %658 = vmatprep.subr.bf16.mxu0 %v174
  %659 = vmatpush1.bf16.msra.mxu0 %v173
  %660 = vmatprep.subr.bf16.mxu0 %v170
  %661 = vmatpush1.bf16.msra.mxu0 %v169
  %662 = vmatprep.subr.bf16.mxu0 %v166
  %663 = vmatpush1.bf16.msra.mxu0 %v165
  %664 = vmatprep.subr.bf16.mxu0 0
  %665 = vmatpush2.bf16.msra.mxu0 0
  %666 = vmatprep.subr.bf16.mxu0 0
  %667 = vmatpush2.bf16.msra.mxu0 0
  %668 = vmatprep.subr.bf16.mxu0 0
  %669 = vmatpush2.bf16.msra.mxu0 0
  %670 = vmatprep.subr.bf16.mxu0 0
  %671 = vmatpush2.bf16.msra.mxu0 0
  %672 = vmatprep.subr.bf16.mxu0 0
  %673 = vmatpush2.bf16.msra.mxu0 0
  %674 = vmatprep.subr.bf16.mxu0 0
  %675 = vmatpush2.bf16.msra.mxu0 0
  %676 = vmatprep.subr.bf16.mxu0 0
  %677 = vmatpush2.bf16.msra.mxu0 0
  %678 = vmatprep.subr.bf16.mxu0 0
  %679 = vmatpush2.bf16.msra.mxu0 0
  %680 = vmatprep.mubr.bf16.mxu0 0
  %681 = vmatmul.mubr.bf16.gmra.mxu0 %v597
  %v682 = vpop.f32.mrf.mxu0
  %v683 = vadd.f32 0.0, %v682
  %v684 = vpop.f32.mrf.mxu0
  %v685 = vadd.f32 0.0, %v684
  %v686 = vpop.f32.mrf.mxu0
  %v687 = vpop.f32.mrf.mxu0
  %688 = vdwg.mxu0
  %v689 = vadd.f32 %v603, %v642
  %v690 = vadd.f32 %v604, %v644
  %v691 = vadd.f32 %v605, %v683
  %v692 = vadd.f32 %v606, %v685
  %v693 = vxor.u32 %v689, 2147483648
  %v694 = vmul.f32 %v693, 1.442695
  %v695 = vpow.pop %v694
  %v696 = vadd.f32 %v695, 1.0
  %v697 = vrcp.pop %v696
  %v698 = vmul.f32 1.0, %v697
  %v699 = vxor.u32 %v690, 2147483648
  %v700 = vmul.f32 %v699, 1.442695
  %v701 = vpow.pop %v700
  %v702 = vadd.f32 %v701, 1.0
  %v703 = vrcp.pop %v702
  %v704 = vmul.f32 1.0, %v703
  %v705 = vtanh.pop %v691
  %v706 = vxor.u32 %v692, 2147483648
  %v707 = vmul.f32 %v706, 1.442695
  %v708 = vpow.pop %v707
  %v709 = vadd.f32 %v708, 1.0
  %v710 = vrcp.pop %v709
  %v711 = vmul.f32 1.0, %v710
  %v712 = vmul.f32 %v704, %v596
  %v713 = vmul.f32 %v698, %v705
  %v714 = vadd.f32 %v712, %v713
  %v715 = vtanh.pop %v714
  %v716 = vmul.f32 %v711, %v715
  %s717 = sadd.s32 %s337, 3
  %p718 = scmp.ge.s32.totalorder %s717, 1
  %s719 = scalar_select %p718, 1, 0
  %v720 = vstv %s719
  %vm721 = vcmp.eq.s32.totalorder %v720, 1
  %v722 = vsel %vm721, %v716, %v595
  %v723 = vsel %vm721, %v714, %v596
  %v724 = vpack.c.bf16 %v722, %v722
  %s725 = scalar_lea.vmem %s4, 12
  %726 = vst [vmem:[%s725] sm:$0xf] %v724
  %s727 = scalar_lea.vmem %s0, 64
  %v728 = vld [vmem:[%s727] sm:$0xff]
  %v729 = vld [vmem:[%s727 + $0x8] sm:$0xff]
  %v730 = vunpack.c.l.bf16 %v728
  %v731 = vunpack.c.h.bf16 %v728
  %v732 = vunpack.c.l.bf16 %v729
  %v733 = vunpack.c.h.bf16 %v729
  %734 = vmatprep.subr.bf16.mxu0 %v192
  %735 = vmatpush1.bf16.msra.mxu0 %v191
  %736 = vmatprep.subr.bf16.mxu0 %v188
  %737 = vmatpush1.bf16.msra.mxu0 %v187
  %738 = vmatprep.subr.bf16.mxu0 %v184
  %739 = vmatpush1.bf16.msra.mxu0 %v183
  %740 = vmatprep.subr.bf16.mxu0 %v180
  %741 = vmatpush1.bf16.msra.mxu0 %v179
  %742 = vmatprep.subr.bf16.mxu0 %v176
  %743 = vmatpush1.bf16.msra.mxu0 %v175
  %744 = vmatprep.subr.bf16.mxu0 %v172
  %745 = vmatpush1.bf16.msra.mxu0 %v171
  %746 = vmatprep.subr.bf16.mxu0 %v168
  %747 = vmatpush1.bf16.msra.mxu0 %v167
  %748 = vmatprep.subr.bf16.mxu0 %v164
  %749 = vmatpush1.bf16.msra.mxu0 %v163
  %750 = vmatprep.subr.bf16.mxu0 0
  %751 = vmatpush2.bf16.msra.mxu0 0
  %752 = vmatprep.subr.bf16.mxu0 0
  %753 = vmatpush2.bf16.msra.mxu0 0
  %754 = vmatprep.subr.bf16.mxu0 0
  %755 = vmatpush2.bf16.msra.mxu0 0
  %756 = vmatprep.subr.bf16.mxu0 0
  %757 = vmatpush2.bf16.msra.mxu0 0
  %758 = vmatprep.subr.bf16.mxu0 0
  %759 = vmatpush2.bf16.msra.mxu0 0
  %760 = vmatprep.subr.bf16.mxu0 0
  %761 = vmatpush2.bf16.msra.mxu0 0
  %762 = vmatprep.subr.bf16.mxu0 0
  %763 = vmatpush2.bf16.msra.mxu0 0
  %764 = vmatprep.subr.bf16.mxu0 0
  %765 = vmatpush2.bf16.msra.mxu0 0
  %766 = vmatprep.mubr.bf16.mxu0 0
  %767 = vmatmul.mubr.bf16.gmra.mxu0 %v724
  %v768 = vpop.f32.mrf.mxu0
  %v769 = vadd.f32 0.0, %v768
  %v770 = vpop.f32.mrf.mxu0
  %v771 = vadd.f32 0.0, %v770
  %v772 = vpop.f32.mrf.mxu0
  %v773 = vpop.f32.mrf.mxu0
  %774 = vdwg.mxu0
  %775 = vmatprep.subr.bf16.mxu0 %v194
  %776 = vmatpush1.bf16.msra.mxu0 %v193
  %777 = vmatprep.subr.bf16.mxu0 %v190
  %778 = vmatpush1.bf16.msra.mxu0 %v189
  %779 = vmatprep.subr.bf16.mxu0 %v186
  %780 = vmatpush1.bf16.msra.mxu0 %v185
  %781 = vmatprep.subr.bf16.mxu0 %v182
  %782 = vmatpush1.bf16.msra.mxu0 %v181
  %783 = vmatprep.subr.bf16.mxu0 %v178
  %784 = vmatpush1.bf16.msra.mxu0 %v177
  %785 = vmatprep.subr.bf16.mxu0 %v174
  %786 = vmatpush1.bf16.msra.mxu0 %v173
  %787 = vmatprep.subr.bf16.mxu0 %v170
  %788 = vmatpush1.bf16.msra.mxu0 %v169
  %789 = vmatprep.subr.bf16.mxu0 %v166
  %790 = vmatpush1.bf16.msra.mxu0 %v165
  %791 = vmatprep.subr.bf16.mxu0 0
  %792 = vmatpush2.bf16.msra.mxu0 0
  %793 = vmatprep.subr.bf16.mxu0 0
  %794 = vmatpush2.bf16.msra.mxu0 0
  %795 = vmatprep.subr.bf16.mxu0 0
  %796 = vmatpush2.bf16.msra.mxu0 0
  %797 = vmatprep.subr.bf16.mxu0 0
  %798 = vmatpush2.bf16.msra.mxu0 0
  %799 = vmatprep.subr.bf16.mxu0 0
  %800 = vmatpush2.bf16.msra.mxu0 0
  %801 = vmatprep.subr.bf16.mxu0 0
  %802 = vmatpush2.bf16.msra.mxu0 0
  %803 = vmatprep.subr.bf16.mxu0 0
  %804 = vmatpush2.bf16.msra.mxu0 0
  %805 = vmatprep.subr.bf16.mxu0 0
  %806 = vmatpush2.bf16.msra.mxu0 0
  %807 = vmatprep.mubr.bf16.mxu0 0
  %808 = vmatmul.mubr.bf16.gmra.mxu0 %v724
  %v809 = vpop.f32.mrf.mxu0
  %v810 = vadd.f32 0.0, %v809
  %v811 = vpop.f32.mrf.mxu0
  %v812 = vadd.f32 0.0, %v811
  %v813 = vpop.f32.mrf.mxu0
  %v814 = vpop.f32.mrf.mxu0
  %815 = vdwg.mxu0
  %v816 = vadd.f32 %v730, %v769
  %v817 = vadd.f32 %v731, %v771
  %v818 = vadd.f32 %v732, %v810
  %v819 = vadd.f32 %v733, %v812
  %v820 = vxor.u32 %v816, 2147483648
  %v821 = vmul.f32 %v820, 1.442695
  %v822 = vpow.pop %v821
  %v823 = vadd.f32 %v822, 1.0
  %v824 = vrcp.pop %v823
  %v825 = vmul.f32 1.0, %v824
  %v826 = vxor.u32 %v817, 2147483648
  %v827 = vmul.f32 %v826, 1.442695
  %v828 = vpow.pop %v827
  %v829 = vadd.f32 %v828, 1.0
  %v830 = vrcp.pop %v829
  %v831 = vmul.f32 1.0, %v830
  %v832 = vtanh.pop %v818
  %v833 = vxor.u32 %v819, 2147483648
  %v834 = vmul.f32 %v833, 1.442695
  %v835 = vpow.pop %v834
  %v836 = vadd.f32 %v835, 1.0
  %v837 = vrcp.pop %v836
  %v838 = vmul.f32 1.0, %v837
  %v839 = vmul.f32 %v831, %v723
  %v840 = vmul.f32 %v825, %v832
  %v841 = vadd.f32 %v839, %v840
  %v842 = vtanh.pop %v841
  %v843 = vmul.f32 %v838, %v842
  %s844 = sadd.s32 %s337, 4
  %p845 = scmp.ge.s32.totalorder %s844, 1
  %s846 = scalar_select %p845, 1, 0
  %v847 = vstv %s846
  %vm848 = vcmp.eq.s32.totalorder %v847, 1
  %v849 = vsel %vm848, %v843, %v722
  %v850 = vsel %vm848, %v841, %v723
  %v851 = vpack.c.bf16 %v849, %v849
  %s852 = scalar_lea.vmem %s4, 16
  %853 = vst [vmem:[%s852] sm:$0xf] %v851
  %s854 = scalar_lea.vmem %s0, 80
  %v855 = vld [vmem:[%s854] sm:$0xff]
  %v856 = vld [vmem:[%s854 + $0x8] sm:$0xff]
  %v857 = vunpack.c.l.bf16 %v855
  %v858 = vunpack.c.h.bf16 %v855
  %v859 = vunpack.c.l.bf16 %v856
  %v860 = vunpack.c.h.bf16 %v856
  %861 = vmatprep.subr.bf16.mxu0 %v192
  %862 = vmatpush1.bf16.msra.mxu0 %v191
  %863 = vmatprep.subr.bf16.mxu0 %v188
  %864 = vmatpush1.bf16.msra.mxu0 %v187
  %865 = vmatprep.subr.bf16.mxu0 %v184
  %866 = vmatpush1.bf16.msra.mxu0 %v183
  %867 = vmatprep.subr.bf16.mxu0 %v180
  %868 = vmatpush1.bf16.msra.mxu0 %v179
  %869 = vmatprep.subr.bf16.mxu0 %v176
  %870 = vmatpush1.bf16.msra.mxu0 %v175
  %871 = vmatprep.subr.bf16.mxu0 %v172
  %872 = vmatpush1.bf16.msra.mxu0 %v171
  %873 = vmatprep.subr.bf16.mxu0 %v168
  %874 = vmatpush1.bf16.msra.mxu0 %v167
  %875 = vmatprep.subr.bf16.mxu0 %v164
  %876 = vmatpush1.bf16.msra.mxu0 %v163
  %877 = vmatprep.subr.bf16.mxu0 0
  %878 = vmatpush2.bf16.msra.mxu0 0
  %879 = vmatprep.subr.bf16.mxu0 0
  %880 = vmatpush2.bf16.msra.mxu0 0
  %881 = vmatprep.subr.bf16.mxu0 0
  %882 = vmatpush2.bf16.msra.mxu0 0
  %883 = vmatprep.subr.bf16.mxu0 0
  %884 = vmatpush2.bf16.msra.mxu0 0
  %885 = vmatprep.subr.bf16.mxu0 0
  %886 = vmatpush2.bf16.msra.mxu0 0
  %887 = vmatprep.subr.bf16.mxu0 0
  %888 = vmatpush2.bf16.msra.mxu0 0
  %889 = vmatprep.subr.bf16.mxu0 0
  %890 = vmatpush2.bf16.msra.mxu0 0
  %891 = vmatprep.subr.bf16.mxu0 0
  %892 = vmatpush2.bf16.msra.mxu0 0
  %893 = vmatprep.mubr.bf16.mxu0 0
  %894 = vmatmul.mubr.bf16.gmra.mxu0 %v851
  %v895 = vpop.f32.mrf.mxu0
  %v896 = vadd.f32 0.0, %v895
  %v897 = vpop.f32.mrf.mxu0
  %v898 = vadd.f32 0.0, %v897
  %v899 = vpop.f32.mrf.mxu0
  %v900 = vpop.f32.mrf.mxu0
  %901 = vdwg.mxu0
  %902 = vmatprep.subr.bf16.mxu0 %v194
  %903 = vmatpush1.bf16.msra.mxu0 %v193
  %904 = vmatprep.subr.bf16.mxu0 %v190
  %905 = vmatpush1.bf16.msra.mxu0 %v189
  %906 = vmatprep.subr.bf16.mxu0 %v186
  %907 = vmatpush1.bf16.msra.mxu0 %v185
  %908 = vmatprep.subr.bf16.mxu0 %v182
  %909 = vmatpush1.bf16.msra.mxu0 %v181
  %910 = vmatprep.subr.bf16.mxu0 %v178
  %911 = vmatpush1.bf16.msra.mxu0 %v177
  %912 = vmatprep.subr.bf16.mxu0 %v174
  %913 = vmatpush1.bf16.msra.mxu0 %v173
  %914 = vmatprep.subr.bf16.mxu0 %v170
  %915 = vmatpush1.bf16.msra.mxu0 %v169
  %916 = vmatprep.subr.bf16.mxu0 %v166
  %917 = vmatpush1.bf16.msra.mxu0 %v165
  %918 = vmatprep.subr.bf16.mxu0 0
  %919 = vmatpush2.bf16.msra.mxu0 0
  %920 = vmatprep.subr.bf16.mxu0 0
  %921 = vmatpush2.bf16.msra.mxu0 0
  %922 = vmatprep.subr.bf16.mxu0 0
  %923 = vmatpush2.bf16.msra.mxu0 0
  %924 = vmatprep.subr.bf16.mxu0 0
  %925 = vmatpush2.bf16.msra.mxu0 0
  %926 = vmatprep.subr.bf16.mxu0 0
  %927 = vmatpush2.bf16.msra.mxu0 0
  %928 = vmatprep.subr.bf16.mxu0 0
  %929 = vmatpush2.bf16.msra.mxu0 0
  %930 = vmatprep.subr.bf16.mxu0 0
  %931 = vmatpush2.bf16.msra.mxu0 0
  %932 = vmatprep.subr.bf16.mxu0 0
  %933 = vmatpush2.bf16.msra.mxu0 0
  %934 = vmatprep.mubr.bf16.mxu0 0
  %935 = vmatmul.mubr.bf16.gmra.mxu0 %v851
  %v936 = vpop.f32.mrf.mxu0
  %v937 = vadd.f32 0.0, %v936
  %v938 = vpop.f32.mrf.mxu0
  %v939 = vadd.f32 0.0, %v938
  %v940 = vpop.f32.mrf.mxu0
  %v941 = vpop.f32.mrf.mxu0
  %942 = vdwg.mxu0
  %v943 = vadd.f32 %v857, %v896
  %v944 = vadd.f32 %v858, %v898
  %v945 = vadd.f32 %v859, %v937
  %v946 = vadd.f32 %v860, %v939
  %v947 = vxor.u32 %v943, 2147483648
  %v948 = vmul.f32 %v947, 1.442695
  %v949 = vpow.pop %v948
  %v950 = vadd.f32 %v949, 1.0
  %v951 = vrcp.pop %v950
  %v952 = vmul.f32 1.0, %v951
  %v953 = vxor.u32 %v944, 2147483648
  %v954 = vmul.f32 %v953, 1.442695
  %v955 = vpow.pop %v954
  %v956 = vadd.f32 %v955, 1.0
  %v957 = vrcp.pop %v956
  %v958 = vmul.f32 1.0, %v957
  %v959 = vtanh.pop %v945
  %v960 = vxor.u32 %v946, 2147483648
  %v961 = vmul.f32 %v960, 1.442695
  %v962 = vpow.pop %v961
  %v963 = vadd.f32 %v962, 1.0
  %v964 = vrcp.pop %v963
  %v965 = vmul.f32 1.0, %v964
  %v966 = vmul.f32 %v958, %v850
  %v967 = vmul.f32 %v952, %v959
  %v968 = vadd.f32 %v966, %v967
  %v969 = vtanh.pop %v968
  %v970 = vmul.f32 %v965, %v969
  %s971 = sadd.s32 %s337, 5
  %p972 = scmp.ge.s32.totalorder %s971, 1
  %s973 = scalar_select %p972, 1, 0
  %v974 = vstv %s973
  %vm975 = vcmp.eq.s32.totalorder %v974, 1
  %v976 = vsel %vm975, %v970, %v849
  %v977 = vsel %vm975, %v968, %v850
  %v978 = vpack.c.bf16 %v976, %v976
  %s979 = scalar_lea.vmem %s4, 20
  %980 = vst [vmem:[%s979] sm:$0xf] %v978
  %s981 = scalar_lea.vmem %s0, 96
  %v982 = vld [vmem:[%s981] sm:$0xff]
  %v983 = vld [vmem:[%s981 + $0x8] sm:$0xff]
  %v984 = vunpack.c.l.bf16 %v982
  %v985 = vunpack.c.h.bf16 %v982
  %v986 = vunpack.c.l.bf16 %v983
  %v987 = vunpack.c.h.bf16 %v983
  %988 = vmatprep.subr.bf16.mxu0 %v192
  %989 = vmatpush1.bf16.msra.mxu0 %v191
  %990 = vmatprep.subr.bf16.mxu0 %v188
  %991 = vmatpush1.bf16.msra.mxu0 %v187
  %992 = vmatprep.subr.bf16.mxu0 %v184
  %993 = vmatpush1.bf16.msra.mxu0 %v183
  %994 = vmatprep.subr.bf16.mxu0 %v180
  %995 = vmatpush1.bf16.msra.mxu0 %v179
  %996 = vmatprep.subr.bf16.mxu0 %v176
  %997 = vmatpush1.bf16.msra.mxu0 %v175
  %998 = vmatprep.subr.bf16.mxu0 %v172
  %999 = vmatpush1.bf16.msra.mxu0 %v171
  %1000 = vmatprep.subr.bf16.mxu0 %v168
  %1001 = vmatpush1.bf16.msra.mxu0 %v167
  %1002 = vmatprep.subr.bf16.mxu0 %v164
  %1003 = vmatpush1.bf16.msra.mxu0 %v163
  %1004 = vmatprep.subr.bf16.mxu0 0
  %1005 = vmatpush2.bf16.msra.mxu0 0
  %1006 = vmatprep.subr.bf16.mxu0 0
  %1007 = vmatpush2.bf16.msra.mxu0 0
  %1008 = vmatprep.subr.bf16.mxu0 0
  %1009 = vmatpush2.bf16.msra.mxu0 0
  %1010 = vmatprep.subr.bf16.mxu0 0
  %1011 = vmatpush2.bf16.msra.mxu0 0
  %1012 = vmatprep.subr.bf16.mxu0 0
  %1013 = vmatpush2.bf16.msra.mxu0 0
  %1014 = vmatprep.subr.bf16.mxu0 0
  %1015 = vmatpush2.bf16.msra.mxu0 0
  %1016 = vmatprep.subr.bf16.mxu0 0
  %1017 = vmatpush2.bf16.msra.mxu0 0
  %1018 = vmatprep.subr.bf16.mxu0 0
  %1019 = vmatpush2.bf16.msra.mxu0 0
  %1020 = vmatprep.mubr.bf16.mxu0 0
  %1021 = vmatmul.mubr.bf16.gmra.mxu0 %v978
  %v1022 = vpop.f32.mrf.mxu0
  %v1023 = vadd.f32 0.0, %v1022
  %v1024 = vpop.f32.mrf.mxu0
  %v1025 = vadd.f32 0.0, %v1024
  %v1026 = vpop.f32.mrf.mxu0
  %v1027 = vpop.f32.mrf.mxu0
  %1028 = vdwg.mxu0
  %1029 = vmatprep.subr.bf16.mxu0 %v194
  %1030 = vmatpush1.bf16.msra.mxu0 %v193
  %1031 = vmatprep.subr.bf16.mxu0 %v190
  %1032 = vmatpush1.bf16.msra.mxu0 %v189
  %1033 = vmatprep.subr.bf16.mxu0 %v186
  %1034 = vmatpush1.bf16.msra.mxu0 %v185
  %1035 = vmatprep.subr.bf16.mxu0 %v182
  %1036 = vmatpush1.bf16.msra.mxu0 %v181
  %1037 = vmatprep.subr.bf16.mxu0 %v178
  %1038 = vmatpush1.bf16.msra.mxu0 %v177
  %1039 = vmatprep.subr.bf16.mxu0 %v174
  %1040 = vmatpush1.bf16.msra.mxu0 %v173
  %1041 = vmatprep.subr.bf16.mxu0 %v170
  %1042 = vmatpush1.bf16.msra.mxu0 %v169
  %1043 = vmatprep.subr.bf16.mxu0 %v166
  %1044 = vmatpush1.bf16.msra.mxu0 %v165
  %1045 = vmatprep.subr.bf16.mxu0 0
  %1046 = vmatpush2.bf16.msra.mxu0 0
  %1047 = vmatprep.subr.bf16.mxu0 0
  %1048 = vmatpush2.bf16.msra.mxu0 0
  %1049 = vmatprep.subr.bf16.mxu0 0
  %1050 = vmatpush2.bf16.msra.mxu0 0
  %1051 = vmatprep.subr.bf16.mxu0 0
  %1052 = vmatpush2.bf16.msra.mxu0 0
  %1053 = vmatprep.subr.bf16.mxu0 0
  %1054 = vmatpush2.bf16.msra.mxu0 0
  %1055 = vmatprep.subr.bf16.mxu0 0
  %1056 = vmatpush2.bf16.msra.mxu0 0
  %1057 = vmatprep.subr.bf16.mxu0 0
  %1058 = vmatpush2.bf16.msra.mxu0 0
  %1059 = vmatprep.subr.bf16.mxu0 0
  %1060 = vmatpush2.bf16.msra.mxu0 0
  %1061 = vmatprep.mubr.bf16.mxu0 0
  %1062 = vmatmul.mubr.bf16.gmra.mxu0 %v978
  %v1063 = vpop.f32.mrf.mxu0
  %v1064 = vadd.f32 0.0, %v1063
  %v1065 = vpop.f32.mrf.mxu0
  %v1066 = vadd.f32 0.0, %v1065
  %v1067 = vpop.f32.mrf.mxu0
  %v1068 = vpop.f32.mrf.mxu0
  %1069 = vdwg.mxu0
  %v1070 = vadd.f32 %v984, %v1023
  %v1071 = vadd.f32 %v985, %v1025
  %v1072 = vadd.f32 %v986, %v1064
  %v1073 = vadd.f32 %v987, %v1066
  %v1074 = vxor.u32 %v1070, 2147483648
  %v1075 = vmul.f32 %v1074, 1.442695
  %v1076 = vpow.pop %v1075
  %v1077 = vadd.f32 %v1076, 1.0
  %v1078 = vrcp.pop %v1077
  %v1079 = vmul.f32 1.0, %v1078
  %v1080 = vxor.u32 %v1071, 2147483648
  %v1081 = vmul.f32 %v1080, 1.442695
  %v1082 = vpow.pop %v1081
  %v1083 = vadd.f32 %v1082, 1.0
  %v1084 = vrcp.pop %v1083
  %v1085 = vmul.f32 1.0, %v1084
  %v1086 = vtanh.pop %v1072
  %v1087 = vxor.u32 %v1073, 2147483648
  %v1088 = vmul.f32 %v1087, 1.442695
  %v1089 = vpow.pop %v1088
  %v1090 = vadd.f32 %v1089, 1.0
  %v1091 = vrcp.pop %v1090
  %v1092 = vmul.f32 1.0, %v1091
  %v1093 = vmul.f32 %v1085, %v977
  %v1094 = vmul.f32 %v1079, %v1086
  %v1095 = vadd.f32 %v1093, %v1094
  %v1096 = vtanh.pop %v1095
  %v1097 = vmul.f32 %v1092, %v1096
  %s1098 = sadd.s32 %s337, 6
  %p1099 = scmp.ge.s32.totalorder %s1098, 1
  %s1100 = scalar_select %p1099, 1, 0
  %v1101 = vstv %s1100
  %vm1102 = vcmp.eq.s32.totalorder %v1101, 1
  %v1103 = vsel %vm1102, %v1097, %v976
  %v1104 = vsel %vm1102, %v1095, %v977
  %v1105 = vpack.c.bf16 %v1103, %v1103
  %s1106 = scalar_lea.vmem %s4, 24
  %1107 = vst [vmem:[%s1106] sm:$0xf] %v1105
  %s1108 = scalar_lea.vmem %s0, 112
  %v1109 = vld [vmem:[%s1108] sm:$0xff]
  %v1110 = vld [vmem:[%s1108 + $0x8] sm:$0xff]
  %v1111 = vunpack.c.l.bf16 %v1109
  %v1112 = vunpack.c.h.bf16 %v1109
  %v1113 = vunpack.c.l.bf16 %v1110
  %v1114 = vunpack.c.h.bf16 %v1110
  %1115 = vmatprep.subr.bf16.mxu0 %v192
  %1116 = vmatpush1.bf16.msra.mxu0 %v191
  %1117 = vmatprep.subr.bf16.mxu0 %v188
  %1118 = vmatpush1.bf16.msra.mxu0 %v187
  %1119 = vmatprep.subr.bf16.mxu0 %v184
  %1120 = vmatpush1.bf16.msra.mxu0 %v183
  %1121 = vmatprep.subr.bf16.mxu0 %v180
  %1122 = vmatpush1.bf16.msra.mxu0 %v179
  %1123 = vmatprep.subr.bf16.mxu0 %v176
  %1124 = vmatpush1.bf16.msra.mxu0 %v175
  %1125 = vmatprep.subr.bf16.mxu0 %v172
  %1126 = vmatpush1.bf16.msra.mxu0 %v171
  %1127 = vmatprep.subr.bf16.mxu0 %v168
  %1128 = vmatpush1.bf16.msra.mxu0 %v167
  %1129 = vmatprep.subr.bf16.mxu0 %v164
  %1130 = vmatpush1.bf16.msra.mxu0 %v163
  %1131 = vmatprep.subr.bf16.mxu0 0
  %1132 = vmatpush2.bf16.msra.mxu0 0
  %1133 = vmatprep.subr.bf16.mxu0 0
  %1134 = vmatpush2.bf16.msra.mxu0 0
  %1135 = vmatprep.subr.bf16.mxu0 0
  %1136 = vmatpush2.bf16.msra.mxu0 0
  %1137 = vmatprep.subr.bf16.mxu0 0
  %1138 = vmatpush2.bf16.msra.mxu0 0
  %1139 = vmatprep.subr.bf16.mxu0 0
  %1140 = vmatpush2.bf16.msra.mxu0 0
  %1141 = vmatprep.subr.bf16.mxu0 0
  %1142 = vmatpush2.bf16.msra.mxu0 0
  %1143 = vmatprep.subr.bf16.mxu0 0
  %1144 = vmatpush2.bf16.msra.mxu0 0
  %1145 = vmatprep.subr.bf16.mxu0 0
  %1146 = vmatpush2.bf16.msra.mxu0 0
  %1147 = vmatprep.mubr.bf16.mxu0 0
  %1148 = vmatmul.mubr.bf16.gmra.mxu0 %v1105
  %v1149 = vpop.f32.mrf.mxu0
  %v1150 = vadd.f32 0.0, %v1149
  %v1151 = vpop.f32.mrf.mxu0
  %v1152 = vadd.f32 0.0, %v1151
  %v1153 = vpop.f32.mrf.mxu0
  %v1154 = vpop.f32.mrf.mxu0
  %1155 = vdwg.mxu0
  %1156 = vmatprep.subr.bf16.mxu0 %v194
  %1157 = vmatpush1.bf16.msra.mxu0 %v193
  %1158 = vmatprep.subr.bf16.mxu0 %v190
  %1159 = vmatpush1.bf16.msra.mxu0 %v189
  %1160 = vmatprep.subr.bf16.mxu0 %v186
  %1161 = vmatpush1.bf16.msra.mxu0 %v185
  %1162 = vmatprep.subr.bf16.mxu0 %v182
  %1163 = vmatpush1.bf16.msra.mxu0 %v181
  %1164 = vmatprep.subr.bf16.mxu0 %v178
  %1165 = vmatpush1.bf16.msra.mxu0 %v177
  %1166 = vmatprep.subr.bf16.mxu0 %v174
  %1167 = vmatpush1.bf16.msra.mxu0 %v173
  %1168 = vmatprep.subr.bf16.mxu0 %v170
  %1169 = vmatpush1.bf16.msra.mxu0 %v169
  %1170 = vmatprep.subr.bf16.mxu0 %v166
  %1171 = vmatpush1.bf16.msra.mxu0 %v165
  %1172 = vmatprep.subr.bf16.mxu0 0
  %1173 = vmatpush2.bf16.msra.mxu0 0
  %1174 = vmatprep.subr.bf16.mxu0 0
  %1175 = vmatpush2.bf16.msra.mxu0 0
  %1176 = vmatprep.subr.bf16.mxu0 0
  %1177 = vmatpush2.bf16.msra.mxu0 0
  %1178 = vmatprep.subr.bf16.mxu0 0
  %1179 = vmatpush2.bf16.msra.mxu0 0
  %1180 = vmatprep.subr.bf16.mxu0 0
  %1181 = vmatpush2.bf16.msra.mxu0 0
  %1182 = vmatprep.subr.bf16.mxu0 0
  %1183 = vmatpush2.bf16.msra.mxu0 0
  %1184 = vmatprep.subr.bf16.mxu0 0
  %1185 = vmatpush2.bf16.msra.mxu0 0
  %1186 = vmatprep.subr.bf16.mxu0 0
  %1187 = vmatpush2.bf16.msra.mxu0 0
  %1188 = vmatprep.mubr.bf16.mxu0 0
  %1189 = vmatmul.mubr.bf16.gmra.mxu0 %v1105
  %v1190 = vpop.f32.mrf.mxu0
  %v1191 = vadd.f32 0.0, %v1190
  %v1192 = vpop.f32.mrf.mxu0
  %v1193 = vadd.f32 0.0, %v1192
  %v1194 = vpop.f32.mrf.mxu0
  %v1195 = vpop.f32.mrf.mxu0
  %1196 = vdwg.mxu0
  %v1197 = vadd.f32 %v1111, %v1150
  %v1198 = vadd.f32 %v1112, %v1152
  %v1199 = vadd.f32 %v1113, %v1191
  %v1200 = vadd.f32 %v1114, %v1193
  %v1201 = vxor.u32 %v1197, 2147483648
  %v1202 = vmul.f32 %v1201, 1.442695
  %v1203 = vpow.pop %v1202
  %v1204 = vadd.f32 %v1203, 1.0
  %v1205 = vrcp.pop %v1204
  %v1206 = vmul.f32 1.0, %v1205
  %v1207 = vxor.u32 %v1198, 2147483648
  %v1208 = vmul.f32 %v1207, 1.442695
  %v1209 = vpow.pop %v1208
  %v1210 = vadd.f32 %v1209, 1.0
  %v1211 = vrcp.pop %v1210
  %v1212 = vmul.f32 1.0, %v1211
  %v1213 = vtanh.pop %v1199
  %v1214 = vxor.u32 %v1200, 2147483648
  %v1215 = vmul.f32 %v1214, 1.442695
  %v1216 = vpow.pop %v1215
  %v1217 = vadd.f32 %v1216, 1.0
  %v1218 = vrcp.pop %v1217
  %v1219 = vmul.f32 1.0, %v1218
  %v1220 = vmul.f32 %v1212, %v1104
  %v1221 = vmul.f32 %v1206, %v1213
  %v1222 = vadd.f32 %v1220, %v1221
  %v1223 = vtanh.pop %v1222
  %v1224 = vmul.f32 %v1219, %v1223
  %s1225 = sadd.s32 %s337, 7
  %p1226 = scmp.ge.s32.totalorder %s1225, 1
  %s1227 = scalar_select %p1226, 1, 0
  %v1228 = vstv %s1227
  %vm1229 = vcmp.eq.s32.totalorder %v1228, 1
  %v1230 = vsel %vm1229, %v1224, %v1103
  %v1231 = vsel %vm1229, %v1222, %v1104
  %v1232 = vpack.c.bf16 %v1230, %v1230
  %s1233 = scalar_lea.vmem %s4, 28
  %1234 = vst [vmem:[%s1233] sm:$0xf] %v1232
  %1235 = vst [vmem:[#allocation2] sm:$0xff] %v1230
  %1236 = vst [vmem:[#allocation3] sm:$0xff] %v1231
  // Predicated region
  $region22: #{seq2seq_forward.8} parent=0 // pred_check
    _
  $region23: #{seq2seq_forward.8} parent=0 // pred_check_branch
    %1238 = sbr.rel (0) target = $region25
  $region24: #{seq2seq_forward.8} parent=0 // pred_region
    _
  $region25: #{seq2seq_forward.8} parent=0 // pred_fallthru
    _
  // Predicated region
  $region26: #{seq2seq_forward.8} parent=0 // pred_check
    _
  $region27: #{seq2seq_forward.8} parent=0 // pred_check_branch
    %1240 = sbr.rel (0) target = $region29
  $region28: #{seq2seq_forward.8} parent=0 // pred_region
    _
  $region29: #{seq2seq_forward.8} parent=0 // pred_fallthru
    _

// kernel: seq2seq_forward.6
$region0: #{seq2seq_forward.6}
  #allocation0 [shape = 'u32[]', space=smem, size = 0x4, offset = 0x4, fixed_abs, tag = 'smem constant byte address 0x4 - core index']
  #allocation1 [shape = 'u32[144,128]{1,0:T(1,128)}', space=vmem, size = 0x12000, scoped, tag = 'internal scratch']
  #allocation2 [shape = 'f32[8,128]{1,0:T(8,128)}', space=vmem, size = 0x1000, scoped, tag = 'scratch operand']
  #allocation3 [shape = 'f32[8,128]{1,0:T(8,128)}', space=vmem, size = 0x1000, scoped, tag = 'scratch operand']
  %s0 = inlined_call_operand.vmem [shape: bf16[16,8,512], index: 0, kind: input, shape index: {}]
  %s1 = inlined_call_operand.vmem [shape: s32[8,1], index: 1, kind: input, shape index: {}]
  %s2 = inlined_call_operand.vmem [shape: bf16[128,512], index: 2, kind: input, shape index: {}]
  %s3 = inlined_call_operand.vmem [shape: f32[8,128], index: 3, kind: output, shape index: {0}]
  %s4 = inlined_call_operand.vmem [shape: f32[8,128], index: 4, kind: output, shape index: {1}]
  %5 = xla_tuple %s3, %s4
  %s6 = sld [smem:[#allocation0]]
  $region61: #{seq2seq_forward.6} parent=0
    _
  %s8 = ssub.s32 1, %s6
  %s9 = scalar_select 0, %s8, %s6
  loop: start=0, step=1, limit=4
  $region2: #{seq2seq_forward.6} parent=0 // loop_pre_header
    _
  $region3: #{seq2seq_forward.6} parent=0 // loop_header
    %s11 = sphi 0, %s15
    %p12 = scmp.ge.s32.totalorder %s11, 4
    %s18 = sphi 0, %s30
    %s19 = sphi 0, %s26
    %s20 = sphi 0, %s18
    %s21 = sphi 0, %s19
    %s22 = sphi 0, %s20
    %s23 = sphi 0, %s21
    %s35 = sphi 0, %s37
    %s38 = sphi 0, %s35
    %s39 = sphi 0, %s38
    %s55 = sphi 0, %s39
    %s61 = sphi 0, %s63
    %s64 = sphi 0, %s61
    %s65 = sphi 0, %s64
    %s81 = sphi 0, %s65
    %s85 = sphi 0, %s85
    %s87 = sphi 0, %s85
    %s88 = sphi 0, %s87
    %s102 = sphi 0, %s88
    %s108 = sphi 0, %s110
    %s111 = sphi 0, %s108
    %s112 = sphi 0, %s111
    %s128 = sphi 0, %s112
    %s134 = sphi 0, %s136
    %s137 = sphi 0, %s134
    %s138 = sphi 0, %s137
    %s154 = sphi 0, %s138
  $region4: #{seq2seq_forward.6} parent=0 // loop_header_branch
    %14 = sbr.rel (%p12) target = $region8
  $region5: #{seq2seq_forward.6} parent=0 // loop_body
    %s16 = ssub.s32 %s11, 1
    %s17 = ssub.s32 %s11, 2
    %s24 = sadd.s32 1, %s19
    %p25 = scmp.ge.s32.totalorder %s24, 2
    %s26 = scalar_select %p25, 0, %s24
    %s27 = sadd.s32 1, %s18
    %s28 = scalar_select %p25, %s27, %s18
    %p29 = scmp.ge.s32.totalorder %s28, 1
    %s30 = scalar_select %p29, 0, %s28
    %s31 = ssub.s32 %s19, %s26
    %s32 = ssub.s32 %s18, %s30
    %s33 = sor.u32 %s31, %s32
    %p34 = scmp.eq.s32.totalorder %s33, 0
    %s36 = sadd.s32 %s35, 1
    %s37 = scalar_select %p34, %s35, %s36
    %p40 = pneg %p34
    %p41 = scmp.eq.s32.totalorder %s11, 1
    %p42 = por %p40, %p41
    %p43 = scmp.ne.s32.totalorder %s35, %s38
    %p44 = scmp.eq.s32.totalorder %s11, 0
    %p45 = por %p43, %p44
    %p46 = scmp.ne.s32.totalorder %s35, %s38
    %p47 = scmp.eq.s32.totalorder %s16, 1
    %p48 = por %p46, %p47
    %p49 = scmp.ne.s32.totalorder %s38, %s39
    %p50 = scmp.eq.s32.totalorder %s16, 0
    %p51 = por %p49, %p50
    %p52 = scmp.ne.s32.totalorder %s38, %s39
    %p53 = scmp.eq.s32.totalorder %s17, 1
    %p54 = por %p52, %p53
    %p56 = scmp.ne.s32.totalorder %s39, %s55
    %p57 = scmp.eq.s32.totalorder %s17, 0
    %p58 = por %p56, %p57
    %s59 = ssub.s32 %s18, %s30
    %p60 = scmp.eq.s32.totalorder %s59, 0
    %s62 = sadd.s32 %s61, 1
    %s63 = scalar_select %p60, %s61, %s62
    %p66 = pneg %p60
    %p67 = scmp.eq.s32.totalorder %s11, 1
    %p68 = por %p66, %p67
    %p69 = scmp.ne.s32.totalorder %s61, %s64
    %p70 = scmp.eq.s32.totalorder %s11, 0
    %p71 = por %p69, %p70
    %p72 = scmp.ne.s32.totalorder %s61, %s64
    %p73 = scmp.eq.s32.totalorder %s16, 1
    %p74 = por %p72, %p73
    %p75 = scmp.ne.s32.totalorder %s64, %s65
    %p76 = scmp.eq.s32.totalorder %s16, 0
    %p77 = por %p75, %p76
    %p78 = scmp.ne.s32.totalorder %s64, %s65
    %p79 = scmp.eq.s32.totalorder %s17, 1
    %p80 = por %p78, %p79
    %p82 = scmp.ne.s32.totalorder %s65, %s81
    %p83 = scmp.eq.s32.totalorder %s17, 0
    %p84 = por %p82, %p83
    %s86 = sadd.s32 %s85, 1
    %p89 = scmp.eq.s32.totalorder %s11, 1
    %p90 = scmp.ne.s32.totalorder %s85, %s87
    %p91 = scmp.eq.s32.totalorder %s11, 0
    %p92 = por %p90, %p91
    %p93 = scmp.ne.s32.totalorder %s85, %s87
    %p94 = scmp.eq.s32.totalorder %s16, 1
    %p95 = por %p93, %p94
    %p96 = scmp.ne.s32.totalorder %s87, %s88
    %p97 = scmp.eq.s32.totalorder %s16, 0
    %p98 = por %p96, %p97
    %p99 = scmp.ne.s32.totalorder %s87, %s88
    %p100 = scmp.eq.s32.totalorder %s17, 1
    %p101 = por %p99, %p100
    %p103 = scmp.ne.s32.totalorder %s88, %s102
    %p104 = scmp.eq.s32.totalorder %s17, 0
    %p105 = por %p103, %p104
    %s106 = ssub.s32 %s18, %s30
    %p107 = scmp.eq.s32.totalorder %s106, 0
    %s109 = sadd.s32 %s108, 1
    %s110 = scalar_select %p107, %s108, %s109
    %p113 = pneg %p107
    %p114 = scmp.eq.s32.totalorder %s11, 1
    %p115 = por %p113, %p114
    %p116 = scmp.ne.s32.totalorder %s108, %s111
    %p117 = scmp.eq.s32.totalorder %s11, 0
    %p118 = por %p116, %p117
    %p119 = scmp.ne.s32.totalorder %s108, %s111
    %p120 = scmp.eq.s32.totalorder %s16, 1
    %p121 = por %p119, %p120
    %p122 = scmp.ne.s32.totalorder %s111, %s112
    %p123 = scmp.eq.s32.totalorder %s16, 0
    %p124 = por %p122, %p123
    %p125 = scmp.ne.s32.totalorder %s111, %s112
    %p126 = scmp.eq.s32.totalorder %s17, 1
    %p127 = por %p125, %p126
    %p129 = scmp.ne.s32.totalorder %s112, %s128
    %p130 = scmp.eq.s32.totalorder %s17, 0
    %p131 = por %p129, %p130
    %s132 = ssub.s32 %s18, %s30
    %p133 = scmp.eq.s32.totalorder %s132, 0
    %s135 = sadd.s32 %s134, 1
    %s136 = scalar_select %p133, %s134, %s135
    %p139 = pneg %p133
    %p140 = scmp.eq.s32.totalorder %s11, 1
    %p141 = por %p139, %p140
    %p142 = scmp.ne.s32.totalorder %s134, %s137
    %p143 = scmp.eq.s32.totalorder %s11, 0
    %p144 = por %p142, %p143
    %p145 = scmp.ne.s32.totalorder %s134, %s137
    %p146 = scmp.eq.s32.totalorder %s16, 1
    %p147 = por %p145, %p146
    %p148 = scmp.ne.s32.totalorder %s137, %s138
    %p149 = scmp.eq.s32.totalorder %s16, 0
    %p150 = por %p148, %p149
    %p151 = scmp.ne.s32.totalorder %s137, %s138
    %p152 = scmp.eq.s32.totalorder %s17, 1
    %p153 = por %p151, %p152
    %p155 = scmp.ne.s32.totalorder %s138, %s154
    %p156 = scmp.eq.s32.totalorder %s17, 0
    %p157 = por %p155, %p156
    %p158 = scmp.le.s32.totalorder 1, %s11
    %p159 = scmp.lt.s32.totalorder %s11, 3
    %p160 = pnand %p158, %p159
    %p161 = pneg %p160
    // Predicated region
    $region9: #{seq2seq_forward.6} parent=5 // pred_check
      _
    $region10: #{seq2seq_forward.6} parent=5 // pred_check_branch
      %163 = sbr.rel (%p160) target = $region12
    $region11: #{seq2seq_forward.6} parent=5 // pred_region
      %s164 = ssub.s32 %s11, 1
      // Predicated region
      $region13: #{seq2seq_forward.6} parent=11 // pred_check
        %p165 = pneg %p77
      $region14: #{seq2seq_forward.6} parent=11 // pred_check_branch
        %167 = sbr.rel (%p165) target = $region16
      $region15: #{seq2seq_forward.6} parent=11 // pred_region
        %p168 = scmp.lt.s32.totalorder %s20, 0
        %s169 = scalar_select %p168, %s20, 0
        %s170 = smul.addr %s169, 8
        %s171 = scalar_lea.vmem %s1, %s170
      $region16: #{seq2seq_forward.6} parent=11 // pred_fallthru
        _
      // Predicated region
      $region17: #{seq2seq_forward.6} parent=11 // pred_check
        %p172 = pneg %p98
      $region18: #{seq2seq_forward.6} parent=11 // pred_check_branch
        %174 = sbr.rel (%p172) target = $region20
      $region19: #{seq2seq_forward.6} parent=11 // pred_region
        _
      $region20: #{seq2seq_forward.6} parent=11 // pred_fallthru
        _
    $region12: #{seq2seq_forward.6} parent=5 // pred_fallthru
      _
    %p175 = scmp.lt.s32.totalorder %s11, 2
    // Predicated region
    $region21: #{seq2seq_forward.6} parent=5 // pred_check
      %p176 = pneg %p175
    $region22: #{seq2seq_forward.6} parent=5 // pred_check_branch
      %178 = sbr.rel (%p176) target = $region24
    $region23: #{seq2seq_forward.6} parent=5 // pred_region
      // Predicated region
      $region25: #{seq2seq_forward.6} parent=23 // pred_check
        %p179 = pneg %p45
      $region26: #{seq2seq_forward.6} parent=23 // pred_check_branch
        %181 = sbr.rel (%p179) target = $region28
      $region27: #{seq2seq_forward.6} parent=23 // pred_region
        %s182 = smul.u32 8, %s19
        %p183 = scmp.lt.s32.totalorder %s182, 15
        %s184 = scalar_select %p183, %s182, 15
        %p185 = scmp.lt.s32.totalorder %s18, 0
        %s186 = scalar_select %p185, %s18, 0
        %s187 = smul.addr %s186, 4
        %s188 = smul.addr %s184, 4
        %s189 = sadd.s32 %s187, %s188
        %s190 = smul.addr %s189, 4
        %s191 = scalar_lea.vmem %s0, %s190
        %s192 = smul.u32 8, %s19
      $region28: #{seq2seq_forward.6} parent=23 // pred_fallthru
        _
    $region24: #{seq2seq_forward.6} parent=5 // pred_fallthru
      _
    %p193 = scmp.le.s32.totalorder 1, %s11
    %p194 = scmp.lt.s32.totalorder %s11, 3
    %p195 = pnand %p193, %p194
    %p196 = pneg %p195
    // Predicated region
    $region29: #{seq2seq_forward.6} parent=5 // pred_check
      _
    $region30: #{seq2seq_forward.6} parent=5 // pred_check_branch
      %198 = sbr.rel (%p195) target = $region32
    $region31: #{seq2seq_forward.6} parent=5 // pred_region
      %s199 = ssub.s32 %s11, 1
      %s200 = smul.u32 8, %s21
      %p201 = scmp.lt.s32.totalorder %s200, 15
      %s202 = scalar_select %p201, %s200, 15
      %p203 = scmp.lt.s32.totalorder %s20, 0
      %s204 = scalar_select %p203, %s20, 0
      %s205 = smul.addr %s204, 4
      %s206 = smul.addr %s202, 4
      %s207 = sadd.s32 %s205, %s206
      %s208 = smul.addr %s207, 4
      %s209 = scalar_lea.vmem %s0, %s208
      %p210 = pneg %p51
      %p211 = pneg %p48
      %p212 = scmp.lt.s32.totalorder %s20, 0
      %s213 = scalar_select %p212, %s20, 0
      %s214 = smul.addr %s213, 8
      %s215 = scalar_lea.vmem %s1, %s214
      %p216 = pneg %p77
      %p217 = pneg %p74
      %p218 = pneg %p98
      %p219 = pneg %p95
      %p220 = pneg %p124
      %p221 = pneg %p121
      %p222 = scmp.lt.s32.totalorder %s20, 0
      %s223 = scalar_select %p222, %s20, 0
      %s224 = smul.addr %s223, 8
      %s225 = scalar_lea.vmem %s3, %s224
      %p226 = pneg %p150
      %p227 = pneg %p147
      %p228 = scmp.lt.s32.totalorder %s20, 0
      %s229 = scalar_select %p228, %s20, 0
      %s230 = smul.addr %s229, 8
      %s231 = scalar_lea.vmem %s4, %s230
      %s232 = smul.u32 8, %s21
      %p233 = scmp.lt.s32.totalorder %s232, 15
      %s234 = scalar_select %p233, %s232, 15
      %p235 = scmp.lt.s32.totalorder %s20, 0
      %s236 = scalar_select %p235, %s20, 0
      %s237 = smul.addr %s236, 4
      %s238 = smul.addr %s234, 4
      %s239 = sadd.s32 %s237, %s238
      %s240 = smul.addr %s239, 4
      %s241 = scalar_lea.vmem %s0, %s240
      %s242 = smul.u32 8, %s21
      %p243 = scmp.lt.s32.totalorder %s20, 0
      %s244 = scalar_select %p243, %s20, 0
      %s245 = smul.addr %s244, 8
      %s246 = scalar_lea.vmem %s1, %s245
      %p247 = scmp.lt.s32.totalorder %s20, 0
      %s248 = scalar_select %p247, %s20, 0
      %s249 = smul.addr %s248, 8
      %s250 = scalar_lea.vmem %s3, %s249
      %p251 = scmp.lt.s32.totalorder %s20, 0
      %s252 = scalar_select %p251, %s20, 0
      %s253 = smul.addr %s252, 8
      %s254 = scalar_lea.vmem %s4, %s253
      %p256 = scmp.eq.s32.totalorder %s21, 0
      // Predicated region
      $region33: #{seq2seq_forward.6} parent=31 // pred_check
        %p257 = pneg %p256
      $region34: #{seq2seq_forward.6} parent=31 // pred_check_branch
        %259 = sbr.rel (%p257) target = $region36
      $region35: #{seq2seq_forward.6} parent=31 // pred_region
        %260 = vst [vmem:[#allocation2] sm:$0xff] 0.0
        %261 = vst [vmem:[#allocation3] sm:$0xff] 0.0
      $region36: #{seq2seq_forward.6} parent=31 // pred_fallthru
        _
      %v262 = vld [vmem:[%s2] sm:$0xff]
      %v263 = vld [vmem:[%s2 + $0x8] sm:$0xff]
      %v264 = vld [vmem:[%s2 + $0x10] sm:$0xff]
      %v265 = vld [vmem:[%s2 + $0x18] sm:$0xff]
      %v266 = vld [vmem:[%s2 + $0x20] sm:$0xff]
      %v267 = vld [vmem:[%s2 + $0x28] sm:$0xff]
      %v268 = vld [vmem:[%s2 + $0x30] sm:$0xff]
      %v269 = vld [vmem:[%s2 + $0x38] sm:$0xff]
      %v270 = vld [vmem:[%s2 + $0x40] sm:$0xff]
      %v271 = vld [vmem:[%s2 + $0x48] sm:$0xff]
      %v272 = vld [vmem:[%s2 + $0x50] sm:$0xff]
      %v273 = vld [vmem:[%s2 + $0x58] sm:$0xff]
      %v274 = vld [vmem:[%s2 + $0x60] sm:$0xff]
      %v275 = vld [vmem:[%s2 + $0x68] sm:$0xff]
      %v276 = vld [vmem:[%s2 + $0x70] sm:$0xff]
      %v277 = vld [vmem:[%s2 + $0x78] sm:$0xff]
      %v278 = vld [vmem:[%s2 + $0x80] sm:$0xff]
      %v279 = vld [vmem:[%s2 + $0x88] sm:$0xff]
      %v280 = vld [vmem:[%s2 + $0x90] sm:$0xff]
      %v281 = vld [vmem:[%s2 + $0x98] sm:$0xff]
      %v282 = vld [vmem:[%s2 + $0xa0] sm:$0xff]
      %v283 = vld [vmem:[%s2 + $0xa8] sm:$0xff]
      %v284 = vld [vmem:[%s2 + $0xb0] sm:$0xff]
      %v285 = vld [vmem:[%s2 + $0xb8] sm:$0xff]
      %v286 = vld [vmem:[%s2 + $0xc0] sm:$0xff]
      %v287 = vld [vmem:[%s2 + $0xc8] sm:$0xff]
      %v288 = vld [vmem:[%s2 + $0xd0] sm:$0xff]
      %v289 = vld [vmem:[%s2 + $0xd8] sm:$0xff]
      %v290 = vld [vmem:[%s2 + $0xe0] sm:$0xff]
      %v291 = vld [vmem:[%s2 + $0xe8] sm:$0xff]
      %v292 = vld [vmem:[%s2 + $0xf0] sm:$0xff]
      %v293 = vld [vmem:[%s2 + $0xf8] sm:$0xff]
      %v294 = vld [vmem:[%s246] sm:$0xff]
      %v295 = vld [vmem:[#allocation2] sm:$0xff]
      %v296 = vld [vmem:[#allocation3] sm:$0xff]
      %v297 = vld [vmem:[%s241] sm:$0xff]
      %v298 = vld [vmem:[%s241 + $0x8] sm:$0xff]
      %v299 = vunpack.c.l.bf16 %v297
      %v300 = vunpack.c.h.bf16 %v297
      %v301 = vunpack.c.l.bf16 %v298
      %v302 = vunpack.c.h.bf16 %v298
      %v303 = vpack.c.bf16 %v295, %v295
      %v336 = vunpack.c.l.b16 %v262
      %v337 = vunpack.c.h.b16 %v262
      %v338 = vunpack.c.l.b16 %v263
      %v339 = vunpack.c.h.b16 %v263
      %v340 = vunpack.c.l.b16 %v264
      %v341 = vunpack.c.h.b16 %v264
      %v342 = vunpack.c.l.b16 %v265
      %v343 = vunpack.c.h.b16 %v265
      %v344 = vunpack.c.l.b16 %v266
      %v345 = vunpack.c.h.b16 %v266
      %v346 = vunpack.c.l.b16 %v267
      %v347 = vunpack.c.h.b16 %v267
      %v348 = vunpack.c.l.b16 %v268
      %v349 = vunpack.c.h.b16 %v268
      %v350 = vunpack.c.l.b16 %v269
      %v351 = vunpack.c.h.b16 %v269
      %v352 = vunpack.c.l.b16 %v270
      %v353 = vunpack.c.h.b16 %v270
      %v354 = vunpack.c.l.b16 %v271
      %v355 = vunpack.c.h.b16 %v271
      %v356 = vunpack.c.l.b16 %v272
      %v357 = vunpack.c.h.b16 %v272
      %v358 = vunpack.c.l.b16 %v273
      %v359 = vunpack.c.h.b16 %v273
      %v360 = vunpack.c.l.b16 %v274
      %v361 = vunpack.c.h.b16 %v274
      %v362 = vunpack.c.l.b16 %v275
      %v363 = vunpack.c.h.b16 %v275
      %v364 = vunpack.c.l.b16 %v276
      %v365 = vunpack.c.h.b16 %v276
      %v366 = vunpack.c.l.b16 %v277
      %v367 = vunpack.c.h.b16 %v277
      %v368 = vunpack.c.l.b16 %v278
      %v369 = vunpack.c.h.b16 %v278
      %v370 = vunpack.c.l.b16 %v279
      %v371 = vunpack.c.h.b16 %v279
      %v372 = vunpack.c.l.b16 %v280
      %v373 = vunpack.c.h.b16 %v280
      %v374 = vunpack.c.l.b16 %v281
      %v375 = vunpack.c.h.b16 %v281
      %v376 = vunpack.c.l.b16 %v282
      %v377 = vunpack.c.h.b16 %v282
      %v378 = vunpack.c.l.b16 %v283
      %v379 = vunpack.c.h.b16 %v283
      %v380 = vunpack.c.l.b16 %v284
      %v381 = vunpack.c.h.b16 %v284
      %v382 = vunpack.c.l.b16 %v285
      %v383 = vunpack.c.h.b16 %v285
      %v384 = vunpack.c.l.b16 %v286
      %v385 = vunpack.c.h.b16 %v286
      %v386 = vunpack.c.l.b16 %v287
      %v387 = vunpack.c.h.b16 %v287
      %v388 = vunpack.c.l.b16 %v288
      %v389 = vunpack.c.h.b16 %v288
      %v390 = vunpack.c.l.b16 %v289
      %v391 = vunpack.c.h.b16 %v289
      %v392 = vunpack.c.l.b16 %v290
      %v393 = vunpack.c.h.b16 %v290
      %v394 = vunpack.c.l.b16 %v291
      %v395 = vunpack.c.h.b16 %v291
      %v396 = vunpack.c.l.b16 %v292
      %v397 = vunpack.c.h.b16 %v292
      %v398 = vunpack.c.l.b16 %v293
      %v399 = vunpack.c.h.b16 %v293
      %v400 = vpack.c.b16 %v340, %v336
      %v401 = vpack.c.b16 %v341, %v337
      %v402 = vpack.c.b16 %v342, %v338
      %v403 = vpack.c.b16 %v343, %v339
      %v404 = vpack.c.b16 %v348, %v344
      %v405 = vpack.c.b16 %v349, %v345
      %v406 = vpack.c.b16 %v350, %v346
      %v407 = vpack.c.b16 %v351, %v347
      %v408 = vpack.c.b16 %v356, %v352
      %v409 = vpack.c.b16 %v357, %v353
      %v410 = vpack.c.b16 %v358, %v354
      %v411 = vpack.c.b16 %v359, %v355
      %v412 = vpack.c.b16 %v364, %v360
      %v413 = vpack.c.b16 %v365, %v361
      %v414 = vpack.c.b16 %v366, %v362
      %v415 = vpack.c.b16 %v367, %v363
      %v416 = vpack.c.b16 %v372, %v368
      %v417 = vpack.c.b16 %v373, %v369
      %v418 = vpack.c.b16 %v374, %v370
      %v419 = vpack.c.b16 %v375, %v371
      %v420 = vpack.c.b16 %v380, %v376
      %v421 = vpack.c.b16 %v381, %v377
      %v422 = vpack.c.b16 %v382, %v378
      %v423 = vpack.c.b16 %v383, %v379
      %v424 = vpack.c.b16 %v388, %v384
      %v425 = vpack.c.b16 %v389, %v385
      %v426 = vpack.c.b16 %v390, %v386
      %v427 = vpack.c.b16 %v391, %v387
      %v428 = vpack.c.b16 %v396, %v392
      %v429 = vpack.c.b16 %v397, %v393
      %v430 = vpack.c.b16 %v398, %v394
      %v431 = vpack.c.b16 %v399, %v395
      %464 = vmatprep.subr.bf16.mxu0 %v429
      %465 = vmatpush1.bf16.msra.mxu0 %v428
      %466 = vmatprep.subr.bf16.mxu0 %v425
      %467 = vmatpush1.bf16.msra.mxu0 %v424
      %468 = vmatprep.subr.bf16.mxu0 %v421
      %469 = vmatpush1.bf16.msra.mxu0 %v420
      %470 = vmatprep.subr.bf16.mxu0 %v417
      %471 = vmatpush1.bf16.msra.mxu0 %v416
      %472 = vmatprep.subr.bf16.mxu0 %v413
      %473 = vmatpush1.bf16.msra.mxu0 %v412
      %474 = vmatprep.subr.bf16.mxu0 %v409
      %475 = vmatpush1.bf16.msra.mxu0 %v408
      %476 = vmatprep.subr.bf16.mxu0 %v405
      %477 = vmatpush1.bf16.msra.mxu0 %v404
      %478 = vmatprep.subr.bf16.mxu0 %v401
      %479 = vmatpush1.bf16.msra.mxu0 %v400
      %480 = vmatprep.subr.bf16.mxu0 0
      %481 = vmatpush2.bf16.msra.mxu0 0
      %482 = vmatprep.subr.bf16.mxu0 0
      %483 = vmatpush2.bf16.msra.mxu0 0
      %484 = vmatprep.subr.bf16.mxu0 0
      %485 = vmatpush2.bf16.msra.mxu0 0
      %486 = vmatprep.subr.bf16.mxu0 0
      %487 = vmatpush2.bf16.msra.mxu0 0
      %488 = vmatprep.subr.bf16.mxu0 0
      %489 = vmatpush2.bf16.msra.mxu0 0
      %490 = vmatprep.subr.bf16.mxu0 0
      %491 = vmatpush2.bf16.msra.mxu0 0
      %492 = vmatprep.subr.bf16.mxu0 0
      %493 = vmatpush2.bf16.msra.mxu0 0
      %494 = vmatprep.subr.bf16.mxu0 0
      %495 = vmatpush2.bf16.msra.mxu0 0
      %496 = vmatprep.mubr.bf16.mxu0 0
      %497 = vmatmul.mubr.bf16.gmra.mxu0 %v303
      %v498 = vpop.f32.mrf.mxu0
      %v499 = vadd.f32 0.0, %v498
      %v500 = vpop.f32.mrf.mxu0
      %v501 = vadd.f32 0.0, %v500
      %v502 = vpop.f32.mrf.mxu0
      %v503 = vpop.f32.mrf.mxu0
      %504 = vdwg.mxu0
      %505 = vmatprep.subr.bf16.mxu0 %v431
      %506 = vmatpush1.bf16.msra.mxu0 %v430
      %507 = vmatprep.subr.bf16.mxu0 %v427
      %508 = vmatpush1.bf16.msra.mxu0 %v426
      %509 = vmatprep.subr.bf16.mxu0 %v423
      %510 = vmatpush1.bf16.msra.mxu0 %v422
      %511 = vmatprep.subr.bf16.mxu0 %v419
      %512 = vmatpush1.bf16.msra.mxu0 %v418
      %513 = vmatprep.subr.bf16.mxu0 %v415
      %514 = vmatpush1.bf16.msra.mxu0 %v414
      %515 = vmatprep.subr.bf16.mxu0 %v411
      %516 = vmatpush1.bf16.msra.mxu0 %v410
      %517 = vmatprep.subr.bf16.mxu0 %v407
      %518 = vmatpush1.bf16.msra.mxu0 %v406
      %519 = vmatprep.subr.bf16.mxu0 %v403
      %520 = vmatpush1.bf16.msra.mxu0 %v402
      %521 = vmatprep.subr.bf16.mxu0 0
      %522 = vmatpush2.bf16.msra.mxu0 0
      %523 = vmatprep.subr.bf16.mxu0 0
      %524 = vmatpush2.bf16.msra.mxu0 0
      %525 = vmatprep.subr.bf16.mxu0 0
      %526 = vmatpush2.bf16.msra.mxu0 0
      %527 = vmatprep.subr.bf16.mxu0 0
      %528 = vmatpush2.bf16.msra.mxu0 0
      %529 = vmatprep.subr.bf16.mxu0 0
      %530 = vmatpush2.bf16.msra.mxu0 0
      %531 = vmatprep.subr.bf16.mxu0 0
      %532 = vmatpush2.bf16.msra.mxu0 0
      %533 = vmatprep.subr.bf16.mxu0 0
      %534 = vmatpush2.bf16.msra.mxu0 0
      %535 = vmatprep.subr.bf16.mxu0 0
      %536 = vmatpush2.bf16.msra.mxu0 0
      %537 = vmatprep.mubr.bf16.mxu0 0
      %538 = vmatmul.mubr.bf16.gmra.mxu0 %v303
      %v539 = vpop.f32.mrf.mxu0
      %v540 = vadd.f32 0.0, %v539
      %v541 = vpop.f32.mrf.mxu0
      %v542 = vadd.f32 0.0, %v541
      %v543 = vpop.f32.mrf.mxu0
      %v544 = vpop.f32.mrf.mxu0
      %545 = vdwg.mxu0
      %v546 = vadd.f32 %v299, %v499
      %v547 = vadd.f32 %v300, %v501
      %v548 = vadd.f32 %v301, %v540
      %v549 = vadd.f32 %v302, %v542
      %v550 = vxor.u32 %v546, 2147483648
      %v551 = vmul.f32 %v550, 1.442695
      %v552 = vpow.pop %v551
      %v553 = vadd.f32 %v552, 1.0
      %v554 = vrcp.pop %v553
      %v555 = vmul.f32 1.0, %v554
      %v556 = vxor.u32 %v547, 2147483648
      %v557 = vmul.f32 %v556, 1.442695
      %v558 = vpow.pop %v557
      %v559 = vadd.f32 %v558, 1.0
      %v560 = vrcp.pop %v559
      %v561 = vmul.f32 1.0, %v560
      %v562 = vtanh.pop %v548
      %v563 = vxor.u32 %v549, 2147483648
      %v564 = vmul.f32 %v563, 1.442695
      %v565 = vpow.pop %v564
      %v566 = vadd.f32 %v565, 1.0
      %v567 = vrcp.pop %v566
      %v568 = vmul.f32 1.0, %v567
      %v569 = vmul.f32 %v561, %v296
      %v570 = vmul.f32 %v555, %v562
      %v571 = vadd.f32 %v569, %v570
      %v572 = vtanh.pop %v571
      %v573 = vmul.f32 %v568, %v572
      %s574 = smul.u32 %s21, 8
      %v575 = vstv %s574
      %vm576 = vcmp.gt.s32.totalorder %v294, %v575
      %v577 = vsel %vm576, 1, 0
      %578 = vset.pattern.permute.xlu0 0
      %579 = vperm.xlu0 %578, %v577
      %v580 = vpop.permute.xlu0 %579
      %vm581 = vcmp.eq.s32.totalorder %v580, 1
      %v582 = vsel %vm581, %v573, %v295
      %v583 = vsel %vm581, %v571, %v296
      %s584 = scalar_lea.vmem %s241, 16
      %v585 = vld [vmem:[%s584] sm:$0xff]
      %v586 = vld [vmem:[%s584 + $0x8] sm:$0xff]
      %v587 = vunpack.c.l.bf16 %v585
      %v588 = vunpack.c.h.bf16 %v585
      %v589 = vunpack.c.l.bf16 %v586
      %v590 = vunpack.c.h.bf16 %v586
      %v591 = vpack.c.bf16 %v582, %v582
      %592 = vmatprep.subr.bf16.mxu0 %v429
      %593 = vmatpush1.bf16.msra.mxu0 %v428
      %594 = vmatprep.subr.bf16.mxu0 %v425
      %595 = vmatpush1.bf16.msra.mxu0 %v424
      %596 = vmatprep.subr.bf16.mxu0 %v421
      %597 = vmatpush1.bf16.msra.mxu0 %v420
      %598 = vmatprep.subr.bf16.mxu0 %v417
      %599 = vmatpush1.bf16.msra.mxu0 %v416
      %600 = vmatprep.subr.bf16.mxu0 %v413
      %601 = vmatpush1.bf16.msra.mxu0 %v412
      %602 = vmatprep.subr.bf16.mxu0 %v409
      %603 = vmatpush1.bf16.msra.mxu0 %v408
      %604 = vmatprep.subr.bf16.mxu0 %v405
      %605 = vmatpush1.bf16.msra.mxu0 %v404
      %606 = vmatprep.subr.bf16.mxu0 %v401
      %607 = vmatpush1.bf16.msra.mxu0 %v400
      %608 = vmatprep.subr.bf16.mxu0 0
      %609 = vmatpush2.bf16.msra.mxu0 0
      %610 = vmatprep.subr.bf16.mxu0 0
      %611 = vmatpush2.bf16.msra.mxu0 0
      %612 = vmatprep.subr.bf16.mxu0 0
      %613 = vmatpush2.bf16.msra.mxu0 0
      %614 = vmatprep.subr.bf16.mxu0 0
      %615 = vmatpush2.bf16.msra.mxu0 0
      %616 = vmatprep.subr.bf16.mxu0 0
      %617 = vmatpush2.bf16.msra.mxu0 0
      %618 = vmatprep.subr.bf16.mxu0 0
      %619 = vmatpush2.bf16.msra.mxu0 0
      %620 = vmatprep.subr.bf16.mxu0 0
      %621 = vmatpush2.bf16.msra.mxu0 0
      %622 = vmatprep.subr.bf16.mxu0 0
      %623 = vmatpush2.bf16.msra.mxu0 0
      %624 = vmatprep.mubr.bf16.mxu0 0
      %625 = vmatmul.mubr.bf16.gmra.mxu0 %v591
      %v626 = vpop.f32.mrf.mxu0
      %v627 = vadd.f32 0.0, %v626
      %v628 = vpop.f32.mrf.mxu0
      %v629 = vadd.f32 0.0, %v628
      %v630 = vpop.f32.mrf.mxu0
      %v631 = vpop.f32.mrf.mxu0
      %632 = vdwg.mxu0
      %633 = vmatprep.subr.bf16.mxu0 %v431
      %634 = vmatpush1.bf16.msra.mxu0 %v430
      %635 = vmatprep.subr.bf16.mxu0 %v427
      %636 = vmatpush1.bf16.msra.mxu0 %v426
      %637 = vmatprep.subr.bf16.mxu0 %v423
      %638 = vmatpush1.bf16.msra.mxu0 %v422
      %639 = vmatprep.subr.bf16.mxu0 %v419
      %640 = vmatpush1.bf16.msra.mxu0 %v418
      %641 = vmatprep.subr.bf16.mxu0 %v415
      %642 = vmatpush1.bf16.msra.mxu0 %v414
      %643 = vmatprep.subr.bf16.mxu0 %v411
      %644 = vmatpush1.bf16.msra.mxu0 %v410
      %645 = vmatprep.subr.bf16.mxu0 %v407
      %646 = vmatpush1.bf16.msra.mxu0 %v406
      %647 = vmatprep.subr.bf16.mxu0 %v403
      %648 = vmatpush1.bf16.msra.mxu0 %v402
      %649 = vmatprep.subr.bf16.mxu0 0
      %650 = vmatpush2.bf16.msra.mxu0 0
      %651 = vmatprep.subr.bf16.mxu0 0
      %652 = vmatpush2.bf16.msra.mxu0 0
      %653 = vmatprep.subr.bf16.mxu0 0
      %654 = vmatpush2.bf16.msra.mxu0 0
      %655 = vmatprep.subr.bf16.mxu0 0
      %656 = vmatpush2.bf16.msra.mxu0 0
      %657 = vmatprep.subr.bf16.mxu0 0
      %658 = vmatpush2.bf16.msra.mxu0 0
      %659 = vmatprep.subr.bf16.mxu0 0
      %660 = vmatpush2.bf16.msra.mxu0 0
      %661 = vmatprep.subr.bf16.mxu0 0
      %662 = vmatpush2.bf16.msra.mxu0 0
      %663 = vmatprep.subr.bf16.mxu0 0
      %664 = vmatpush2.bf16.msra.mxu0 0
      %665 = vmatprep.mubr.bf16.mxu0 0
      %666 = vmatmul.mubr.bf16.gmra.mxu0 %v591
      %v667 = vpop.f32.mrf.mxu0
      %v668 = vadd.f32 0.0, %v667
      %v669 = vpop.f32.mrf.mxu0
      %v670 = vadd.f32 0.0, %v669
      %v671 = vpop.f32.mrf.mxu0
      %v672 = vpop.f32.mrf.mxu0
      %673 = vdwg.mxu0
      %v674 = vadd.f32 %v587, %v627
      %v675 = vadd.f32 %v588, %v629
      %v676 = vadd.f32 %v589, %v668
      %v677 = vadd.f32 %v590, %v670
      %v678 = vxor.u32 %v674, 2147483648
      %v679 = vmul.f32 %v678, 1.442695
      %v680 = vpow.pop %v679
      %v681 = vadd.f32 %v680, 1.0
      %v682 = vrcp.pop %v681
      %v683 = vmul.f32 1.0, %v682
      %v684 = vxor.u32 %v675, 2147483648
      %v685 = vmul.f32 %v684, 1.442695
      %v686 = vpow.pop %v685
      %v687 = vadd.f32 %v686, 1.0
      %v688 = vrcp.pop %v687
      %v689 = vmul.f32 1.0, %v688
      %v690 = vtanh.pop %v676
      %v691 = vxor.u32 %v677, 2147483648
      %v692 = vmul.f32 %v691, 1.442695
      %v693 = vpow.pop %v692
      %v694 = vadd.f32 %v693, 1.0
      %v695 = vrcp.pop %v694
      %v696 = vmul.f32 1.0, %v695
      %v697 = vmul.f32 %v689, %v583
      %v698 = vmul.f32 %v683, %v690
      %v699 = vadd.f32 %v697, %v698
      %v700 = vtanh.pop %v699
      %v701 = vmul.f32 %v696, %v700
      %s702 = sadd.s32 %s574, 1
      %v703 = vstv %s702
      %vm704 = vcmp.gt.s32.totalorder %v294, %v703
      %v705 = vsel %vm704, 1, 0
      %706 = vset.pattern.permute.xlu0 0
      %707 = vperm.xlu0 %706, %v705
      %v708 = vpop.permute.xlu0 %707
      %vm709 = vcmp.eq.s32.totalorder %v708, 1
      %v710 = vsel %vm709, %v701, %v582
      %v711 = vsel %vm709, %v699, %v583
      %s712 = scalar_lea.vmem %s241, 32
      %v713 = vld [vmem:[%s712] sm:$0xff]
      %v714 = vld [vmem:[%s712 + $0x8] sm:$0xff]
      %v715 = vunpack.c.l.bf16 %v713
      %v716 = vunpack.c.h.bf16 %v713
      %v717 = vunpack.c.l.bf16 %v714
      %v718 = vunpack.c.h.bf16 %v714
      %v719 = vpack.c.bf16 %v710, %v710
      %720 = vmatprep.subr.bf16.mxu0 %v429
      %721 = vmatpush1.bf16.msra.mxu0 %v428
      %722 = vmatprep.subr.bf16.mxu0 %v425
      %723 = vmatpush1.bf16.msra.mxu0 %v424
      %724 = vmatprep.subr.bf16.mxu0 %v421
      %725 = vmatpush1.bf16.msra.mxu0 %v420
      %726 = vmatprep.subr.bf16.mxu0 %v417
      %727 = vmatpush1.bf16.msra.mxu0 %v416
      %728 = vmatprep.subr.bf16.mxu0 %v413
      %729 = vmatpush1.bf16.msra.mxu0 %v412
      %730 = vmatprep.subr.bf16.mxu0 %v409
      %731 = vmatpush1.bf16.msra.mxu0 %v408
      %732 = vmatprep.subr.bf16.mxu0 %v405
      %733 = vmatpush1.bf16.msra.mxu0 %v404
      %734 = vmatprep.subr.bf16.mxu0 %v401
      %735 = vmatpush1.bf16.msra.mxu0 %v400
      %736 = vmatprep.subr.bf16.mxu0 0
      %737 = vmatpush2.bf16.msra.mxu0 0
      %738 = vmatprep.subr.bf16.mxu0 0
      %739 = vmatpush2.bf16.msra.mxu0 0
      %740 = vmatprep.subr.bf16.mxu0 0
      %741 = vmatpush2.bf16.msra.mxu0 0
      %742 = vmatprep.subr.bf16.mxu0 0
      %743 = vmatpush2.bf16.msra.mxu0 0
      %744 = vmatprep.subr.bf16.mxu0 0
      %745 = vmatpush2.bf16.msra.mxu0 0
      %746 = vmatprep.subr.bf16.mxu0 0
      %747 = vmatpush2.bf16.msra.mxu0 0
      %748 = vmatprep.subr.bf16.mxu0 0
      %749 = vmatpush2.bf16.msra.mxu0 0
      %750 = vmatprep.subr.bf16.mxu0 0
      %751 = vmatpush2.bf16.msra.mxu0 0
      %752 = vmatprep.mubr.bf16.mxu0 0
      %753 = vmatmul.mubr.bf16.gmra.mxu0 %v719
      %v754 = vpop.f32.mrf.mxu0
      %v755 = vadd.f32 0.0, %v754
      %v756 = vpop.f32.mrf.mxu0
      %v757 = vadd.f32 0.0, %v756
      %v758 = vpop.f32.mrf.mxu0
      %v759 = vpop.f32.mrf.mxu0
      %760 = vdwg.mxu0
      %761 = vmatprep.subr.bf16.mxu0 %v431
      %762 = vmatpush1.bf16.msra.mxu0 %v430
      %763 = vmatprep.subr.bf16.mxu0 %v427
      %764 = vmatpush1.bf16.msra.mxu0 %v426
      %765 = vmatprep.subr.bf16.mxu0 %v423
      %766 = vmatpush1.bf16.msra.mxu0 %v422
      %767 = vmatprep.subr.bf16.mxu0 %v419
      %768 = vmatpush1.bf16.msra.mxu0 %v418
      %769 = vmatprep.subr.bf16.mxu0 %v415
      %770 = vmatpush1.bf16.msra.mxu0 %v414
      %771 = vmatprep.subr.bf16.mxu0 %v411
      %772 = vmatpush1.bf16.msra.mxu0 %v410
      %773 = vmatprep.subr.bf16.mxu0 %v407
      %774 = vmatpush1.bf16.msra.mxu0 %v406
      %775 = vmatprep.subr.bf16.mxu0 %v403
      %776 = vmatpush1.bf16.msra.mxu0 %v402
      %777 = vmatprep.subr.bf16.mxu0 0
      %778 = vmatpush2.bf16.msra.mxu0 0
      %779 = vmatprep.subr.bf16.mxu0 0
      %780 = vmatpush2.bf16.msra.mxu0 0
      %781 = vmatprep.subr.bf16.mxu0 0
      %782 = vmatpush2.bf16.msra.mxu0 0
      %783 = vmatprep.subr.bf16.mxu0 0
      %784 = vmatpush2.bf16.msra.mxu0 0
      %785 = vmatprep.subr.bf16.mxu0 0
      %786 = vmatpush2.bf16.msra.mxu0 0
      %787 = vmatprep.subr.bf16.mxu0 0
      %788 = vmatpush2.bf16.msra.mxu0 0
      %789 = vmatprep.subr.bf16.mxu0 0
      %790 = vmatpush2.bf16.msra.mxu0 0
      %791 = vmatprep.subr.bf16.mxu0 0
      %792 = vmatpush2.bf16.msra.mxu0 0
      %793 = vmatprep.mubr.bf16.mxu0 0
      %794 = vmatmul.mubr.bf16.gmra.mxu0 %v719
      %v795 = vpop.f32.mrf.mxu0
      %v796 = vadd.f32 0.0, %v795
      %v797 = vpop.f32.mrf.mxu0
      %v798 = vadd.f32 0.0, %v797
      %v799 = vpop.f32.mrf.mxu0
      %v800 = vpop.f32.mrf.mxu0
      %801 = vdwg.mxu0
      %v802 = vadd.f32 %v715, %v755
      %v803 = vadd.f32 %v716, %v757
      %v804 = vadd.f32 %v717, %v796
      %v805 = vadd.f32 %v718, %v798
      %v806 = vxor.u32 %v802, 2147483648
      %v807 = vmul.f32 %v806, 1.442695
      %v808 = vpow.pop %v807
      %v809 = vadd.f32 %v808, 1.0
      %v810 = vrcp.pop %v809
      %v811 = vmul.f32 1.0, %v810
      %v812 = vxor.u32 %v803, 2147483648
      %v813 = vmul.f32 %v812, 1.442695
      %v814 = vpow.pop %v813
      %v815 = vadd.f32 %v814, 1.0
      %v816 = vrcp.pop %v815
      %v817 = vmul.f32 1.0, %v816
      %v818 = vtanh.pop %v804
      %v819 = vxor.u32 %v805, 2147483648
      %v820 = vmul.f32 %v819, 1.442695
      %v821 = vpow.pop %v820
      %v822 = vadd.f32 %v821, 1.0
      %v823 = vrcp.pop %v822
      %v824 = vmul.f32 1.0, %v823
      %v825 = vmul.f32 %v817, %v711
      %v826 = vmul.f32 %v811, %v818
      %v827 = vadd.f32 %v825, %v826
      %v828 = vtanh.pop %v827
      %v829 = vmul.f32 %v824, %v828
      %s830 = sadd.s32 %s574, 2
      %v831 = vstv %s830
      %vm832 = vcmp.gt.s32.totalorder %v294, %v831
      %v833 = vsel %vm832, 1, 0
      %834 = vset.pattern.permute.xlu0 0
      %835 = vperm.xlu0 %834, %v833
      %v836 = vpop.permute.xlu0 %835
      %vm837 = vcmp.eq.s32.totalorder %v836, 1
      %v838 = vsel %vm837, %v829, %v710
      %v839 = vsel %vm837, %v827, %v711
      %s840 = scalar_lea.vmem %s241, 48
      %v841 = vld [vmem:[%s840] sm:$0xff]
      %v842 = vld [vmem:[%s840 + $0x8] sm:$0xff]
      %v843 = vunpack.c.l.bf16 %v841
      %v844 = vunpack.c.h.bf16 %v841
      %v845 = vunpack.c.l.bf16 %v842
      %v846 = vunpack.c.h.bf16 %v842
      %v847 = vpack.c.bf16 %v838, %v838
      %848 = vmatprep.subr.bf16.mxu0 %v429
      %849 = vmatpush1.bf16.msra.mxu0 %v428
      %850 = vmatprep.subr.bf16.mxu0 %v425
      %851 = vmatpush1.bf16.msra.mxu0 %v424
      %852 = vmatprep.subr.bf16.mxu0 %v421
      %853 = vmatpush1.bf16.msra.mxu0 %v420
      %854 = vmatprep.subr.bf16.mxu0 %v417
      %855 = vmatpush1.bf16.msra.mxu0 %v416
      %856 = vmatprep.subr.bf16.mxu0 %v413
      %857 = vmatpush1.bf16.msra.mxu0 %v412
      %858 = vmatprep.subr.bf16.mxu0 %v409
      %859 = vmatpush1.bf16.msra.mxu0 %v408
      %860 = vmatprep.subr.bf16.mxu0 %v405
      %861 = vmatpush1.bf16.msra.mxu0 %v404
      %862 = vmatprep.subr.bf16.mxu0 %v401
      %863 = vmatpush1.bf16.msra.mxu0 %v400
      %864 = vmatprep.subr.bf16.mxu0 0
      %865 = vmatpush2.bf16.msra.mxu0 0
      %866 = vmatprep.subr.bf16.mxu0 0
      %867 = vmatpush2.bf16.msra.mxu0 0
      %868 = vmatprep.subr.bf16.mxu0 0
      %869 = vmatpush2.bf16.msra.mxu0 0
      %870 = vmatprep.subr.bf16.mxu0 0
      %871 = vmatpush2.bf16.msra.mxu0 0
      %872 = vmatprep.subr.bf16.mxu0 0
      %873 = vmatpush2.bf16.msra.mxu0 0
      %874 = vmatprep.subr.bf16.mxu0 0
      %875 = vmatpush2.bf16.msra.mxu0 0
      %876 = vmatprep.subr.bf16.mxu0 0
      %877 = vmatpush2.bf16.msra.mxu0 0
      %878 = vmatprep.subr.bf16.mxu0 0
      %879 = vmatpush2.bf16.msra.mxu0 0
      %880 = vmatprep.mubr.bf16.mxu0 0
      %881 = vmatmul.mubr.bf16.gmra.mxu0 %v847
      %v882 = vpop.f32.mrf.mxu0
      %v883 = vadd.f32 0.0, %v882
      %v884 = vpop.f32.mrf.mxu0
      %v885 = vadd.f32 0.0, %v884
      %v886 = vpop.f32.mrf.mxu0
      %v887 = vpop.f32.mrf.mxu0
      %888 = vdwg.mxu0
      %889 = vmatprep.subr.bf16.mxu0 %v431
      %890 = vmatpush1.bf16.msra.mxu0 %v430
      %891 = vmatprep.subr.bf16.mxu0 %v427
      %892 = vmatpush1.bf16.msra.mxu0 %v426
      %893 = vmatprep.subr.bf16.mxu0 %v423
      %894 = vmatpush1.bf16.msra.mxu0 %v422
      %895 = vmatprep.subr.bf16.mxu0 %v419
      %896 = vmatpush1.bf16.msra.mxu0 %v418
      %897 = vmatprep.subr.bf16.mxu0 %v415
      %898 = vmatpush1.bf16.msra.mxu0 %v414
      %899 = vmatprep.subr.bf16.mxu0 %v411
      %900 = vmatpush1.bf16.msra.mxu0 %v410
      %901 = vmatprep.subr.bf16.mxu0 %v407
      %902 = vmatpush1.bf16.msra.mxu0 %v406
      %903 = vmatprep.subr.bf16.mxu0 %v403
      %904 = vmatpush1.bf16.msra.mxu0 %v402
      %905 = vmatprep.subr.bf16.mxu0 0
      %906 = vmatpush2.bf16.msra.mxu0 0
      %907 = vmatprep.subr.bf16.mxu0 0
      %908 = vmatpush2.bf16.msra.mxu0 0
      %909 = vmatprep.subr.bf16.mxu0 0
      %910 = vmatpush2.bf16.msra.mxu0 0
      %911 = vmatprep.subr.bf16.mxu0 0
      %912 = vmatpush2.bf16.msra.mxu0 0
      %913 = vmatprep.subr.bf16.mxu0 0
      %914 = vmatpush2.bf16.msra.mxu0 0
      %915 = vmatprep.subr.bf16.mxu0 0
      %916 = vmatpush2.bf16.msra.mxu0 0
      %917 = vmatprep.subr.bf16.mxu0 0
      %918 = vmatpush2.bf16.msra.mxu0 0
      %919 = vmatprep.subr.bf16.mxu0 0
      %920 = vmatpush2.bf16.msra.mxu0 0
      %921 = vmatprep.mubr.bf16.mxu0 0
      %922 = vmatmul.mubr.bf16.gmra.mxu0 %v847
      %v923 = vpop.f32.mrf.mxu0
      %v924 = vadd.f32 0.0, %v923
      %v925 = vpop.f32.mrf.mxu0
      %v926 = vadd.f32 0.0, %v925
      %v927 = vpop.f32.mrf.mxu0
      %v928 = vpop.f32.mrf.mxu0
      %929 = vdwg.mxu0
      %v930 = vadd.f32 %v843, %v883
      %v931 = vadd.f32 %v844, %v885
      %v932 = vadd.f32 %v845, %v924
      %v933 = vadd.f32 %v846, %v926
      %v934 = vxor.u32 %v930, 2147483648
      %v935 = vmul.f32 %v934, 1.442695
      %v936 = vpow.pop %v935
      %v937 = vadd.f32 %v936, 1.0
      %v938 = vrcp.pop %v937
      %v939 = vmul.f32 1.0, %v938
      %v940 = vxor.u32 %v931, 2147483648
      %v941 = vmul.f32 %v940, 1.442695
      %v942 = vpow.pop %v941
      %v943 = vadd.f32 %v942, 1.0
      %v944 = vrcp.pop %v943
      %v945 = vmul.f32 1.0, %v944
      %v946 = vtanh.pop %v932
      %v947 = vxor.u32 %v933, 2147483648
      %v948 = vmul.f32 %v947, 1.442695
      %v949 = vpow.pop %v948
      %v950 = vadd.f32 %v949, 1.0
      %v951 = vrcp.pop %v950
      %v952 = vmul.f32 1.0, %v951
      %v953 = vmul.f32 %v945, %v839
      %v954 = vmul.f32 %v939, %v946
      %v955 = vadd.f32 %v953, %v954
      %v956 = vtanh.pop %v955
      %v957 = vmul.f32 %v952, %v956
      %s958 = sadd.s32 %s574, 3
      %v959 = vstv %s958
      %vm960 = vcmp.gt.s32.totalorder %v294, %v959
      %v961 = vsel %vm960, 1, 0
      %962 = vset.pattern.permute.xlu0 0
      %963 = vperm.xlu0 %962, %v961
      %v964 = vpop.permute.xlu0 %963
      %vm965 = vcmp.eq.s32.totalorder %v964, 1
      %v966 = vsel %vm965, %v957, %v838
      %v967 = vsel %vm965, %v955, %v839
      %s968 = scalar_lea.vmem %s241, 64
      %v969 = vld [vmem:[%s968] sm:$0xff]
      %v970 = vld [vmem:[%s968 + $0x8] sm:$0xff]
      %v971 = vunpack.c.l.bf16 %v969
      %v972 = vunpack.c.h.bf16 %v969
      %v973 = vunpack.c.l.bf16 %v970
      %v974 = vunpack.c.h.bf16 %v970
      %v975 = vpack.c.bf16 %v966, %v966
      %976 = vmatprep.subr.bf16.mxu0 %v429
      %977 = vmatpush1.bf16.msra.mxu0 %v428
      %978 = vmatprep.subr.bf16.mxu0 %v425
      %979 = vmatpush1.bf16.msra.mxu0 %v424
      %980 = vmatprep.subr.bf16.mxu0 %v421
      %981 = vmatpush1.bf16.msra.mxu0 %v420
      %982 = vmatprep.subr.bf16.mxu0 %v417
      %983 = vmatpush1.bf16.msra.mxu0 %v416
      %984 = vmatprep.subr.bf16.mxu0 %v413
      %985 = vmatpush1.bf16.msra.mxu0 %v412
      %986 = vmatprep.subr.bf16.mxu0 %v409
      %987 = vmatpush1.bf16.msra.mxu0 %v408
      %988 = vmatprep.subr.bf16.mxu0 %v405
      %989 = vmatpush1.bf16.msra.mxu0 %v404
      %990 = vmatprep.subr.bf16.mxu0 %v401
      %991 = vmatpush1.bf16.msra.mxu0 %v400
      %992 = vmatprep.subr.bf16.mxu0 0
      %993 = vmatpush2.bf16.msra.mxu0 0
      %994 = vmatprep.subr.bf16.mxu0 0
      %995 = vmatpush2.bf16.msra.mxu0 0
      %996 = vmatprep.subr.bf16.mxu0 0
      %997 = vmatpush2.bf16.msra.mxu0 0
      %998 = vmatprep.subr.bf16.mxu0 0
      %999 = vmatpush2.bf16.msra.mxu0 0
      %1000 = vmatprep.subr.bf16.mxu0 0
      %1001 = vmatpush2.bf16.msra.mxu0 0
      %1002 = vmatprep.subr.bf16.mxu0 0
      %1003 = vmatpush2.bf16.msra.mxu0 0
      %1004 = vmatprep.subr.bf16.mxu0 0
      %1005 = vmatpush2.bf16.msra.mxu0 0
      %1006 = vmatprep.subr.bf16.mxu0 0
      %1007 = vmatpush2.bf16.msra.mxu0 0
      %1008 = vmatprep.mubr.bf16.mxu0 0
      %1009 = vmatmul.mubr.bf16.gmra.mxu0 %v975
      %v1010 = vpop.f32.mrf.mxu0
      %v1011 = vadd.f32 0.0, %v1010
      %v1012 = vpop.f32.mrf.mxu0
      %v1013 = vadd.f32 0.0, %v1012
      %v1014 = vpop.f32.mrf.mxu0
      %v1015 = vpop.f32.mrf.mxu0
      %1016 = vdwg.mxu0
      %1017 = vmatprep.subr.bf16.mxu0 %v431
      %1018 = vmatpush1.bf16.msra.mxu0 %v430
      %1019 = vmatprep.subr.bf16.mxu0 %v427
      %1020 = vmatpush1.bf16.msra.mxu0 %v426
      %1021 = vmatprep.subr.bf16.mxu0 %v423
      %1022 = vmatpush1.bf16.msra.mxu0 %v422
      %1023 = vmatprep.subr.bf16.mxu0 %v419
      %1024 = vmatpush1.bf16.msra.mxu0 %v418
      %1025 = vmatprep.subr.bf16.mxu0 %v415
      %1026 = vmatpush1.bf16.msra.mxu0 %v414
      %1027 = vmatprep.subr.bf16.mxu0 %v411
      %1028 = vmatpush1.bf16.msra.mxu0 %v410
      %1029 = vmatprep.subr.bf16.mxu0 %v407
      %1030 = vmatpush1.bf16.msra.mxu0 %v406
      %1031 = vmatprep.subr.bf16.mxu0 %v403
      %1032 = vmatpush1.bf16.msra.mxu0 %v402
      %1033 = vmatprep.subr.bf16.mxu0 0
      %1034 = vmatpush2.bf16.msra.mxu0 0
      %1035 = vmatprep.subr.bf16.mxu0 0
      %1036 = vmatpush2.bf16.msra.mxu0 0
      %1037 = vmatprep.subr.bf16.mxu0 0
      %1038 = vmatpush2.bf16.msra.mxu0 0
      %1039 = vmatprep.subr.bf16.mxu0 0
      %1040 = vmatpush2.bf16.msra.mxu0 0
      %1041 = vmatprep.subr.bf16.mxu0 0
      %1042 = vmatpush2.bf16.msra.mxu0 0
      %1043 = vmatprep.subr.bf16.mxu0 0
      %1044 = vmatpush2.bf16.msra.mxu0 0
      %1045 = vmatprep.subr.bf16.mxu0 0
      %1046 = vmatpush2.bf16.msra.mxu0 0
      %1047 = vmatprep.subr.bf16.mxu0 0
      %1048 = vmatpush2.bf16.msra.mxu0 0
      %1049 = vmatprep.mubr.bf16.mxu0 0
      %1050 = vmatmul.mubr.bf16.gmra.mxu0 %v975
      %v1051 = vpop.f32.mrf.mxu0
      %v1052 = vadd.f32 0.0, %v1051
      %v1053 = vpop.f32.mrf.mxu0
      %v1054 = vadd.f32 0.0, %v1053
      %v1055 = vpop.f32.mrf.mxu0
      %v1056 = vpop.f32.mrf.mxu0
      %1057 = vdwg.mxu0
      %v1058 = vadd.f32 %v971, %v1011
      %v1059 = vadd.f32 %v972, %v1013
      %v1060 = vadd.f32 %v973, %v1052
      %v1061 = vadd.f32 %v974, %v1054
      %v1062 = vxor.u32 %v1058, 2147483648
      %v1063 = vmul.f32 %v1062, 1.442695
      %v1064 = vpow.pop %v1063
      %v1065 = vadd.f32 %v1064, 1.0
      %v1066 = vrcp.pop %v1065
      %v1067 = vmul.f32 1.0, %v1066
      %v1068 = vxor.u32 %v1059, 2147483648
      %v1069 = vmul.f32 %v1068, 1.442695
      %v1070 = vpow.pop %v1069
      %v1071 = vadd.f32 %v1070, 1.0
      %v1072 = vrcp.pop %v1071
      %v1073 = vmul.f32 1.0, %v1072
      %v1074 = vtanh.pop %v1060
      %v1075 = vxor.u32 %v1061, 2147483648
      %v1076 = vmul.f32 %v1075, 1.442695
      %v1077 = vpow.pop %v1076
      %v1078 = vadd.f32 %v1077, 1.0
      %v1079 = vrcp.pop %v1078
      %v1080 = vmul.f32 1.0, %v1079
      %v1081 = vmul.f32 %v1073, %v967
      %v1082 = vmul.f32 %v1067, %v1074
      %v1083 = vadd.f32 %v1081, %v1082
      %v1084 = vtanh.pop %v1083
      %v1085 = vmul.f32 %v1080, %v1084
      %s1086 = sadd.s32 %s574, 4
      %v1087 = vstv %s1086
      %vm1088 = vcmp.gt.s32.totalorder %v294, %v1087
      %v1089 = vsel %vm1088, 1, 0
      %1090 = vset.pattern.permute.xlu0 0
      %1091 = vperm.xlu0 %1090, %v1089
      %v1092 = vpop.permute.xlu0 %1091
      %vm1093 = vcmp.eq.s32.totalorder %v1092, 1
      %v1094 = vsel %vm1093, %v1085, %v966
      %v1095 = vsel %vm1093, %v1083, %v967
      %s1096 = scalar_lea.vmem %s241, 80
      %v1097 = vld [vmem:[%s1096] sm:$0xff]
      %v1098 = vld [vmem:[%s1096 + $0x8] sm:$0xff]
      %v1099 = vunpack.c.l.bf16 %v1097
      %v1100 = vunpack.c.h.bf16 %v1097
      %v1101 = vunpack.c.l.bf16 %v1098
      %v1102 = vunpack.c.h.bf16 %v1098
      %v1103 = vpack.c.bf16 %v1094, %v1094
      %1104 = vmatprep.subr.bf16.mxu0 %v429
      %1105 = vmatpush1.bf16.msra.mxu0 %v428
      %1106 = vmatprep.subr.bf16.mxu0 %v425
      %1107 = vmatpush1.bf16.msra.mxu0 %v424
      %1108 = vmatprep.subr.bf16.mxu0 %v421
      %1109 = vmatpush1.bf16.msra.mxu0 %v420
      %1110 = vmatprep.subr.bf16.mxu0 %v417
      %1111 = vmatpush1.bf16.msra.mxu0 %v416
      %1112 = vmatprep.subr.bf16.mxu0 %v413
      %1113 = vmatpush1.bf16.msra.mxu0 %v412
      %1114 = vmatprep.subr.bf16.mxu0 %v409
      %1115 = vmatpush1.bf16.msra.mxu0 %v408
      %1116 = vmatprep.subr.bf16.mxu0 %v405
      %1117 = vmatpush1.bf16.msra.mxu0 %v404
      %1118 = vmatprep.subr.bf16.mxu0 %v401
      %1119 = vmatpush1.bf16.msra.mxu0 %v400
      %1120 = vmatprep.subr.bf16.mxu0 0
      %1121 = vmatpush2.bf16.msra.mxu0 0
      %1122 = vmatprep.subr.bf16.mxu0 0
      %1123 = vmatpush2.bf16.msra.mxu0 0
      %1124 = vmatprep.subr.bf16.mxu0 0
      %1125 = vmatpush2.bf16.msra.mxu0 0
      %1126 = vmatprep.subr.bf16.mxu0 0
      %1127 = vmatpush2.bf16.msra.mxu0 0
      %1128 = vmatprep.subr.bf16.mxu0 0
      %1129 = vmatpush2.bf16.msra.mxu0 0
      %1130 = vmatprep.subr.bf16.mxu0 0
      %1131 = vmatpush2.bf16.msra.mxu0 0
      %1132 = vmatprep.subr.bf16.mxu0 0
      %1133 = vmatpush2.bf16.msra.mxu0 0
      %1134 = vmatprep.subr.bf16.mxu0 0
      %1135 = vmatpush2.bf16.msra.mxu0 0
      %1136 = vmatprep.mubr.bf16.mxu0 0
      %1137 = vmatmul.mubr.bf16.gmra.mxu0 %v1103
      %v1138 = vpop.f32.mrf.mxu0
      %v1139 = vadd.f32 0.0, %v1138
      %v1140 = vpop.f32.mrf.mxu0
      %v1141 = vadd.f32 0.0, %v1140
      %v1142 = vpop.f32.mrf.mxu0
      %v1143 = vpop.f32.mrf.mxu0
      %1144 = vdwg.mxu0
      %1145 = vmatprep.subr.bf16.mxu0 %v431
      %1146 = vmatpush1.bf16.msra.mxu0 %v430
      %1147 = vmatprep.subr.bf16.mxu0 %v427
      %1148 = vmatpush1.bf16.msra.mxu0 %v426
      %1149 = vmatprep.subr.bf16.mxu0 %v423
      %1150 = vmatpush1.bf16.msra.mxu0 %v422
      %1151 = vmatprep.subr.bf16.mxu0 %v419
      %1152 = vmatpush1.bf16.msra.mxu0 %v418
      %1153 = vmatprep.subr.bf16.mxu0 %v415
      %1154 = vmatpush1.bf16.msra.mxu0 %v414
      %1155 = vmatprep.subr.bf16.mxu0 %v411
      %1156 = vmatpush1.bf16.msra.mxu0 %v410
      %1157 = vmatprep.subr.bf16.mxu0 %v407
      %1158 = vmatpush1.bf16.msra.mxu0 %v406
      %1159 = vmatprep.subr.bf16.mxu0 %v403
      %1160 = vmatpush1.bf16.msra.mxu0 %v402
      %1161 = vmatprep.subr.bf16.mxu0 0
      %1162 = vmatpush2.bf16.msra.mxu0 0
      %1163 = vmatprep.subr.bf16.mxu0 0
      %1164 = vmatpush2.bf16.msra.mxu0 0
      %1165 = vmatprep.subr.bf16.mxu0 0
      %1166 = vmatpush2.bf16.msra.mxu0 0
      %1167 = vmatprep.subr.bf16.mxu0 0
      %1168 = vmatpush2.bf16.msra.mxu0 0
      %1169 = vmatprep.subr.bf16.mxu0 0
      %1170 = vmatpush2.bf16.msra.mxu0 0
      %1171 = vmatprep.subr.bf16.mxu0 0
      %1172 = vmatpush2.bf16.msra.mxu0 0
      %1173 = vmatprep.subr.bf16.mxu0 0
      %1174 = vmatpush2.bf16.msra.mxu0 0
      %1175 = vmatprep.subr.bf16.mxu0 0
      %1176 = vmatpush2.bf16.msra.mxu0 0
      %1177 = vmatprep.mubr.bf16.mxu0 0
      %1178 = vmatmul.mubr.bf16.gmra.mxu0 %v1103
      %v1179 = vpop.f32.mrf.mxu0
      %v1180 = vadd.f32 0.0, %v1179
      %v1181 = vpop.f32.mrf.mxu0
      %v1182 = vadd.f32 0.0, %v1181
      %v1183 = vpop.f32.mrf.mxu0
      %v1184 = vpop.f32.mrf.mxu0
      %1185 = vdwg.mxu0
      %v1186 = vadd.f32 %v1099, %v1139
      %v1187 = vadd.f32 %v1100, %v1141
      %v1188 = vadd.f32 %v1101, %v1180
      %v1189 = vadd.f32 %v1102, %v1182
      %v1190 = vxor.u32 %v1186, 2147483648
      %v1191 = vmul.f32 %v1190, 1.442695
      %v1192 = vpow.pop %v1191
      %v1193 = vadd.f32 %v1192, 1.0
      %v1194 = vrcp.pop %v1193
      %v1195 = vmul.f32 1.0, %v1194
      %v1196 = vxor.u32 %v1187, 2147483648
      %v1197 = vmul.f32 %v1196, 1.442695
      %v1198 = vpow.pop %v1197
      %v1199 = vadd.f32 %v1198, 1.0
      %v1200 = vrcp.pop %v1199
      %v1201 = vmul.f32 1.0, %v1200
      %v1202 = vtanh.pop %v1188
      %v1203 = vxor.u32 %v1189, 2147483648
      %v1204 = vmul.f32 %v1203, 1.442695
      %v1205 = vpow.pop %v1204
      %v1206 = vadd.f32 %v1205, 1.0
      %v1207 = vrcp.pop %v1206
      %v1208 = vmul.f32 1.0, %v1207
      %v1209 = vmul.f32 %v1201, %v1095
      %v1210 = vmul.f32 %v1195, %v1202
      %v1211 = vadd.f32 %v1209, %v1210
      %v1212 = vtanh.pop %v1211
      %v1213 = vmul.f32 %v1208, %v1212
      %s1214 = sadd.s32 %s574, 5
      %v1215 = vstv %s1214
      %vm1216 = vcmp.gt.s32.totalorder %v294, %v1215
      %v1217 = vsel %vm1216, 1, 0
      %1218 = vset.pattern.permute.xlu0 0
      %1219 = vperm.xlu0 %1218, %v1217
      %v1220 = vpop.permute.xlu0 %1219
      %vm1221 = vcmp.eq.s32.totalorder %v1220, 1
      %v1222 = vsel %vm1221, %v1213, %v1094
      %v1223 = vsel %vm1221, %v1211, %v1095
      %s1224 = scalar_lea.vmem %s241, 96
      %v1225 = vld [vmem:[%s1224] sm:$0xff]
      %v1226 = vld [vmem:[%s1224 + $0x8] sm:$0xff]
      %v1227 = vunpack.c.l.bf16 %v1225
      %v1228 = vunpack.c.h.bf16 %v1225
      %v1229 = vunpack.c.l.bf16 %v1226
      %v1230 = vunpack.c.h.bf16 %v1226
      %v1231 = vpack.c.bf16 %v1222, %v1222
      %1232 = vmatprep.subr.bf16.mxu0 %v429
      %1233 = vmatpush1.bf16.msra.mxu0 %v428
      %1234 = vmatprep.subr.bf16.mxu0 %v425
      %1235 = vmatpush1.bf16.msra.mxu0 %v424
      %1236 = vmatprep.subr.bf16.mxu0 %v421
      %1237 = vmatpush1.bf16.msra.mxu0 %v420
      %1238 = vmatprep.subr.bf16.mxu0 %v417
      %1239 = vmatpush1.bf16.msra.mxu0 %v416
      %1240 = vmatprep.subr.bf16.mxu0 %v413
      %1241 = vmatpush1.bf16.msra.mxu0 %v412
      %1242 = vmatprep.subr.bf16.mxu0 %v409
      %1243 = vmatpush1.bf16.msra.mxu0 %v408
      %1244 = vmatprep.subr.bf16.mxu0 %v405
      %1245 = vmatpush1.bf16.msra.mxu0 %v404
      %1246 = vmatprep.subr.bf16.mxu0 %v401
      %1247 = vmatpush1.bf16.msra.mxu0 %v400
      %1248 = vmatprep.subr.bf16.mxu0 0
      %1249 = vmatpush2.bf16.msra.mxu0 0
      %1250 = vmatprep.subr.bf16.mxu0 0
      %1251 = vmatpush2.bf16.msra.mxu0 0
      %1252 = vmatprep.subr.bf16.mxu0 0
      %1253 = vmatpush2.bf16.msra.mxu0 0
      %1254 = vmatprep.subr.bf16.mxu0 0
      %1255 = vmatpush2.bf16.msra.mxu0 0
      %1256 = vmatprep.subr.bf16.mxu0 0
      %1257 = vmatpush2.bf16.msra.mxu0 0
      %1258 = vmatprep.subr.bf16.mxu0 0
      %1259 = vmatpush2.bf16.msra.mxu0 0
      %1260 = vmatprep.subr.bf16.mxu0 0
      %1261 = vmatpush2.bf16.msra.mxu0 0
      %1262 = vmatprep.subr.bf16.mxu0 0
      %1263 = vmatpush2.bf16.msra.mxu0 0
      %1264 = vmatprep.mubr.bf16.mxu0 0
      %1265 = vmatmul.mubr.bf16.gmra.mxu0 %v1231
      %v1266 = vpop.f32.mrf.mxu0
      %v1267 = vadd.f32 0.0, %v1266
      %v1268 = vpop.f32.mrf.mxu0
      %v1269 = vadd.f32 0.0, %v1268
      %v1270 = vpop.f32.mrf.mxu0
      %v1271 = vpop.f32.mrf.mxu0
      %1272 = vdwg.mxu0
      %1273 = vmatprep.subr.bf16.mxu0 %v431
      %1274 = vmatpush1.bf16.msra.mxu0 %v430
      %1275 = vmatprep.subr.bf16.mxu0 %v427
      %1276 = vmatpush1.bf16.msra.mxu0 %v426
      %1277 = vmatprep.subr.bf16.mxu0 %v423
      %1278 = vmatpush1.bf16.msra.mxu0 %v422
      %1279 = vmatprep.subr.bf16.mxu0 %v419
      %1280 = vmatpush1.bf16.msra.mxu0 %v418
      %1281 = vmatprep.subr.bf16.mxu0 %v415
      %1282 = vmatpush1.bf16.msra.mxu0 %v414
      %1283 = vmatprep.subr.bf16.mxu0 %v411
      %1284 = vmatpush1.bf16.msra.mxu0 %v410
      %1285 = vmatprep.subr.bf16.mxu0 %v407
      %1286 = vmatpush1.bf16.msra.mxu0 %v406
      %1287 = vmatprep.subr.bf16.mxu0 %v403
      %1288 = vmatpush1.bf16.msra.mxu0 %v402
      %1289 = vmatprep.subr.bf16.mxu0 0
      %1290 = vmatpush2.bf16.msra.mxu0 0
      %1291 = vmatprep.subr.bf16.mxu0 0
      %1292 = vmatpush2.bf16.msra.mxu0 0
      %1293 = vmatprep.subr.bf16.mxu0 0
      %1294 = vmatpush2.bf16.msra.mxu0 0
      %1295 = vmatprep.subr.bf16.mxu0 0
      %1296 = vmatpush2.bf16.msra.mxu0 0
      %1297 = vmatprep.subr.bf16.mxu0 0
      %1298 = vmatpush2.bf16.msra.mxu0 0
      %1299 = vmatprep.subr.bf16.mxu0 0
      %1300 = vmatpush2.bf16.msra.mxu0 0
      %1301 = vmatprep.subr.bf16.mxu0 0
      %1302 = vmatpush2.bf16.msra.mxu0 0
      %1303 = vmatprep.subr.bf16.mxu0 0
      %1304 = vmatpush2.bf16.msra.mxu0 0
      %1305 = vmatprep.mubr.bf16.mxu0 0
      %1306 = vmatmul.mubr.bf16.gmra.mxu0 %v1231
      %v1307 = vpop.f32.mrf.mxu0
      %v1308 = vadd.f32 0.0, %v1307
      %v1309 = vpop.f32.mrf.mxu0
      %v1310 = vadd.f32 0.0, %v1309
      %v1311 = vpop.f32.mrf.mxu0
      %v1312 = vpop.f32.mrf.mxu0
      %1313 = vdwg.mxu0
      %v1314 = vadd.f32 %v1227, %v1267
      %v1315 = vadd.f32 %v1228, %v1269
      %v1316 = vadd.f32 %v1229, %v1308
      %v1317 = vadd.f32 %v1230, %v1310
      %v1318 = vxor.u32 %v1314, 2147483648
      %v1319 = vmul.f32 %v1318, 1.442695
      %v1320 = vpow.pop %v1319
      %v1321 = vadd.f32 %v1320, 1.0
      %v1322 = vrcp.pop %v1321
      %v1323 = vmul.f32 1.0, %v1322
      %v1324 = vxor.u32 %v1315, 2147483648
      %v1325 = vmul.f32 %v1324, 1.442695
      %v1326 = vpow.pop %v1325
      %v1327 = vadd.f32 %v1326, 1.0
      %v1328 = vrcp.pop %v1327
      %v1329 = vmul.f32 1.0, %v1328
      %v1330 = vtanh.pop %v1316
      %v1331 = vxor.u32 %v1317, 2147483648
      %v1332 = vmul.f32 %v1331, 1.442695
      %v1333 = vpow.pop %v1332
      %v1334 = vadd.f32 %v1333, 1.0
      %v1335 = vrcp.pop %v1334
      %v1336 = vmul.f32 1.0, %v1335
      %v1337 = vmul.f32 %v1329, %v1223
      %v1338 = vmul.f32 %v1323, %v1330
      %v1339 = vadd.f32 %v1337, %v1338
      %v1340 = vtanh.pop %v1339
      %v1341 = vmul.f32 %v1336, %v1340
      %s1342 = sadd.s32 %s574, 6
      %v1343 = vstv %s1342
      %vm1344 = vcmp.gt.s32.totalorder %v294, %v1343
      %v1345 = vsel %vm1344, 1, 0
      %1346 = vset.pattern.permute.xlu0 0
      %1347 = vperm.xlu0 %1346, %v1345
      %v1348 = vpop.permute.xlu0 %1347
      %vm1349 = vcmp.eq.s32.totalorder %v1348, 1
      %v1350 = vsel %vm1349, %v1341, %v1222
      %v1351 = vsel %vm1349, %v1339, %v1223
      %s1352 = scalar_lea.vmem %s241, 112
      %v1353 = vld [vmem:[%s1352] sm:$0xff]
      %v1354 = vld [vmem:[%s1352 + $0x8] sm:$0xff]
      %v1355 = vunpack.c.l.bf16 %v1353
      %v1356 = vunpack.c.h.bf16 %v1353
      %v1357 = vunpack.c.l.bf16 %v1354
      %v1358 = vunpack.c.h.bf16 %v1354
      %v1359 = vpack.c.bf16 %v1350, %v1350
      %1360 = vmatprep.subr.bf16.mxu0 %v429
      %1361 = vmatpush1.bf16.msra.mxu0 %v428
      %1362 = vmatprep.subr.bf16.mxu0 %v425
      %1363 = vmatpush1.bf16.msra.mxu0 %v424
      %1364 = vmatprep.subr.bf16.mxu0 %v421
      %1365 = vmatpush1.bf16.msra.mxu0 %v420
      %1366 = vmatprep.subr.bf16.mxu0 %v417
      %1367 = vmatpush1.bf16.msra.mxu0 %v416
      %1368 = vmatprep.subr.bf16.mxu0 %v413
      %1369 = vmatpush1.bf16.msra.mxu0 %v412
      %1370 = vmatprep.subr.bf16.mxu0 %v409
      %1371 = vmatpush1.bf16.msra.mxu0 %v408
      %1372 = vmatprep.subr.bf16.mxu0 %v405
      %1373 = vmatpush1.bf16.msra.mxu0 %v404
      %1374 = vmatprep.subr.bf16.mxu0 %v401
      %1375 = vmatpush1.bf16.msra.mxu0 %v400
      %1376 = vmatprep.subr.bf16.mxu0 0
      %1377 = vmatpush2.bf16.msra.mxu0 0
      %1378 = vmatprep.subr.bf16.mxu0 0
      %1379 = vmatpush2.bf16.msra.mxu0 0
      %1380 = vmatprep.subr.bf16.mxu0 0
      %1381 = vmatpush2.bf16.msra.mxu0 0
      %1382 = vmatprep.subr.bf16.mxu0 0
      %1383 = vmatpush2.bf16.msra.mxu0 0
      %1384 = vmatprep.subr.bf16.mxu0 0
      %1385 = vmatpush2.bf16.msra.mxu0 0
      %1386 = vmatprep.subr.bf16.mxu0 0
      %1387 = vmatpush2.bf16.msra.mxu0 0
      %1388 = vmatprep.subr.bf16.mxu0 0
      %1389 = vmatpush2.bf16.msra.mxu0 0
      %1390 = vmatprep.subr.bf16.mxu0 0
      %1391 = vmatpush2.bf16.msra.mxu0 0
      %1392 = vmatprep.mubr.bf16.mxu0 0
      %1393 = vmatmul.mubr.bf16.gmra.mxu0 %v1359
      %v1394 = vpop.f32.mrf.mxu0
      %v1395 = vadd.f32 0.0, %v1394
      %v1396 = vpop.f32.mrf.mxu0
      %v1397 = vadd.f32 0.0, %v1396
      %v1398 = vpop.f32.mrf.mxu0
      %v1399 = vpop.f32.mrf.mxu0
      %1400 = vdwg.mxu0
      %1401 = vmatprep.subr.bf16.mxu0 %v431
      %1402 = vmatpush1.bf16.msra.mxu0 %v430
      %1403 = vmatprep.subr.bf16.mxu0 %v427
      %1404 = vmatpush1.bf16.msra.mxu0 %v426
      %1405 = vmatprep.subr.bf16.mxu0 %v423
      %1406 = vmatpush1.bf16.msra.mxu0 %v422
      %1407 = vmatprep.subr.bf16.mxu0 %v419
      %1408 = vmatpush1.bf16.msra.mxu0 %v418
      %1409 = vmatprep.subr.bf16.mxu0 %v415
      %1410 = vmatpush1.bf16.msra.mxu0 %v414
      %1411 = vmatprep.subr.bf16.mxu0 %v411
      %1412 = vmatpush1.bf16.msra.mxu0 %v410
      %1413 = vmatprep.subr.bf16.mxu0 %v407
      %1414 = vmatpush1.bf16.msra.mxu0 %v406
      %1415 = vmatprep.subr.bf16.mxu0 %v403
      %1416 = vmatpush1.bf16.msra.mxu0 %v402
      %1417 = vmatprep.subr.bf16.mxu0 0
      %1418 = vmatpush2.bf16.msra.mxu0 0
      %1419 = vmatprep.subr.bf16.mxu0 0
      %1420 = vmatpush2.bf16.msra.mxu0 0
      %1421 = vmatprep.subr.bf16.mxu0 0
      %1422 = vmatpush2.bf16.msra.mxu0 0
      %1423 = vmatprep.subr.bf16.mxu0 0
      %1424 = vmatpush2.bf16.msra.mxu0 0
      %1425 = vmatprep.subr.bf16.mxu0 0
      %1426 = vmatpush2.bf16.msra.mxu0 0
      %1427 = vmatprep.subr.bf16.mxu0 0
      %1428 = vmatpush2.bf16.msra.mxu0 0
      %1429 = vmatprep.subr.bf16.mxu0 0
      %1430 = vmatpush2.bf16.msra.mxu0 0
      %1431 = vmatprep.subr.bf16.mxu0 0
      %1432 = vmatpush2.bf16.msra.mxu0 0
      %1433 = vmatprep.mubr.bf16.mxu0 0
      %1434 = vmatmul.mubr.bf16.gmra.mxu0 %v1359
      %v1435 = vpop.f32.mrf.mxu0
      %v1436 = vadd.f32 0.0, %v1435
      %v1437 = vpop.f32.mrf.mxu0
      %v1438 = vadd.f32 0.0, %v1437
      %v1439 = vpop.f32.mrf.mxu0
      %v1440 = vpop.f32.mrf.mxu0
      %1441 = vdwg.mxu0
      %v1442 = vadd.f32 %v1355, %v1395
      %v1443 = vadd.f32 %v1356, %v1397
      %v1444 = vadd.f32 %v1357, %v1436
      %v1445 = vadd.f32 %v1358, %v1438
      %v1446 = vxor.u32 %v1442, 2147483648
      %v1447 = vmul.f32 %v1446, 1.442695
      %v1448 = vpow.pop %v1447
      %v1449 = vadd.f32 %v1448, 1.0
      %v1450 = vrcp.pop %v1449
      %v1451 = vmul.f32 1.0, %v1450
      %v1452 = vxor.u32 %v1443, 2147483648
      %v1453 = vmul.f32 %v1452, 1.442695
      %v1454 = vpow.pop %v1453
      %v1455 = vadd.f32 %v1454, 1.0
      %v1456 = vrcp.pop %v1455
      %v1457 = vmul.f32 1.0, %v1456
      %v1458 = vtanh.pop %v1444
      %v1459 = vxor.u32 %v1445, 2147483648
      %v1460 = vmul.f32 %v1459, 1.442695
      %v1461 = vpow.pop %v1460
      %v1462 = vadd.f32 %v1461, 1.0
      %v1463 = vrcp.pop %v1462
      %v1464 = vmul.f32 1.0, %v1463
      %v1465 = vmul.f32 %v1457, %v1351
      %v1466 = vmul.f32 %v1451, %v1458
      %v1467 = vadd.f32 %v1465, %v1466
      %v1468 = vtanh.pop %v1467
      %v1469 = vmul.f32 %v1464, %v1468
      %s1470 = sadd.s32 %s574, 7
      %v1471 = vstv %s1470
      %vm1472 = vcmp.gt.s32.totalorder %v294, %v1471
      %v1473 = vsel %vm1472, 1, 0
      %1474 = vset.pattern.permute.xlu0 0
      %1475 = vperm.xlu0 %1474, %v1473
      %v1476 = vpop.permute.xlu0 %1475
      %vm1477 = vcmp.eq.s32.totalorder %v1476, 1
      %v1478 = vsel %vm1477, %v1469, %v1350
      %v1479 = vsel %vm1477, %v1467, %v1351
      %1480 = vst [vmem:[#allocation2] sm:$0xff] %v1478
      %1481 = vst [vmem:[#allocation3] sm:$0xff] %v1479
      %p1482 = scmp.eq.s32.totalorder %s21, 1
      // Predicated region
      $region37: #{seq2seq_forward.6} parent=31 // pred_check
        %p1483 = pneg %p1482
      $region38: #{seq2seq_forward.6} parent=31 // pred_check_branch
        %1485 = sbr.rel (%p1483) target = $region40
      $region39: #{seq2seq_forward.6} parent=31 // pred_region
        %1486 = vst [vmem:[%s250] sm:$0xff] %v1478
        %1487 = vst [vmem:[%s254] sm:$0xff] %v1479
      $region40: #{seq2seq_forward.6} parent=31 // pred_fallthru
        _
      %p1488 = scmp.lt.s32.totalorder %s20, 0
      %s1489 = scalar_select %p1488, %s20, 0
      %s1490 = smul.addr %s1489, 8
      %s1491 = scalar_lea.vmem %s3, %s1490
      %p1492 = scmp.lt.s32.totalorder %s20, 0
      %s1493 = scalar_select %p1492, %s20, 0
      %s1494 = smul.addr %s1493, 8
      %s1495 = scalar_lea.vmem %s4, %s1494
      // Predicated region
      $region41: #{seq2seq_forward.6} parent=31 // pred_check
        %p1496 = pneg %p121
      $region42: #{seq2seq_forward.6} parent=31 // pred_check_branch
        %1498 = sbr.rel (%p1496) target = $region44
      $region43: #{seq2seq_forward.6} parent=31 // pred_region
        _
      $region44: #{seq2seq_forward.6} parent=31 // pred_fallthru
        _
      // Predicated region
      $region45: #{seq2seq_forward.6} parent=31 // pred_check
        %p1499 = pneg %p147
      $region46: #{seq2seq_forward.6} parent=31 // pred_check_branch
        %1501 = sbr.rel (%p1499) target = $region48
      $region47: #{seq2seq_forward.6} parent=31 // pred_region
        _
      $region48: #{seq2seq_forward.6} parent=31 // pred_fallthru
        _
      // Predicated region
      $region49: #{seq2seq_forward.6} parent=31 // pred_check
        %p1502 = pneg %p121
      $region50: #{seq2seq_forward.6} parent=31 // pred_check_branch
        %1504 = sbr.rel (%p1502) target = $region52
      $region51: #{seq2seq_forward.6} parent=31 // pred_region
        %p1505 = scmp.lt.s32.totalorder %s20, 0
        %s1506 = scalar_select %p1505, %s20, 0
        %s1507 = smul.addr %s1506, 8
        %s1508 = scalar_lea.vmem %s3, %s1507
      $region52: #{seq2seq_forward.6} parent=31 // pred_fallthru
        _
      // Predicated region
      $region53: #{seq2seq_forward.6} parent=31 // pred_check
        %p1509 = pneg %p147
      $region54: #{seq2seq_forward.6} parent=31 // pred_check_branch
        %1511 = sbr.rel (%p1509) target = $region56
      $region55: #{seq2seq_forward.6} parent=31 // pred_region
        %p1512 = scmp.lt.s32.totalorder %s20, 0
        %s1513 = scalar_select %p1512, %s20, 0
        %s1514 = smul.addr %s1513, 8
        %s1515 = scalar_lea.vmem %s4, %s1514
      $region56: #{seq2seq_forward.6} parent=31 // pred_fallthru
        _
    $region32: #{seq2seq_forward.6} parent=5 // pred_fallthru
      _
    %p1516 = scmp.le.s32.totalorder 2, %s11
    // Predicated region
    $region57: #{seq2seq_forward.6} parent=5 // pred_check
      %p1517 = pneg %p1516
    $region58: #{seq2seq_forward.6} parent=5 // pred_check_branch
      %1519 = sbr.rel (%p1517) target = $region60
    $region59: #{seq2seq_forward.6} parent=5 // pred_region
      %s1520 = ssub.s32 %s11, 2
    $region60: #{seq2seq_forward.6} parent=5 // pred_fallthru
      _
  $region6: #{seq2seq_forward.6} parent=0 // loop_footer
    %s15 = sadd.s32 1, %s11
  $region7: #{seq2seq_forward.6} parent=0 // loop_footer_branch
    %10 = sbr.rel target = $region3
  $region8: #{seq2seq_forward.6} parent=0 // loop_exit
    _

// kernel: seq2seq_forward.9
$region0: #{seq2seq_forward.9}
  #allocation0 [shape = 'u32[]', space=smem, size = 0x4, offset = 0x4, fixed_abs, tag = 'smem constant byte address 0x4 - core index']
  #allocation1 [shape = 'u32[144,128]{1,0:T(1,128)}', space=vmem, size = 0x12000, scoped, tag = 'internal scratch']
  %s0 = inlined_call_operand.vmem [shape: bf16[64,128], index: 0, kind: input, shape index: {}]
  %s1 = inlined_call_operand.vmem [shape: bf16[128,128], index: 1, kind: input, shape index: {}]
  %s2 = inlined_call_operand.vmem [shape: f32[1,128], index: 2, kind: input, shape index: {}]
  %s3 = inlined_call_operand.vmem [shape: f32[64,128], index: 3, kind: output, shape index: {}]
  %s4 = sld [smem:[#allocation0]]
  $region26: #{seq2seq_forward.9} parent=0
    _
  %s6 = ssub.s32 1, %s4
  %s7 = scalar_select 0, %s6, %s4
  // Predicated region
  $region2: #{seq2seq_forward.9} parent=0 // pred_check
    _
  $region3: #{seq2seq_forward.9} parent=0 // pred_check_branch
    %9 = sbr.rel (0) target = $region5
  $region4: #{seq2seq_forward.9} parent=0 // pred_region
    _
  $region5: #{seq2seq_forward.9} parent=0 // pred_fallthru
    _
  // Predicated region
  $region6: #{seq2seq_forward.9} parent=0 // pred_check
    _
  $region7: #{seq2seq_forward.9} parent=0 // pred_check_branch
    %11 = sbr.rel (0) target = $region9
  $region8: #{seq2seq_forward.9} parent=0 // pred_region
    _
  $region9: #{seq2seq_forward.9} parent=0 // pred_fallthru
    _
  // Predicated region
  $region10: #{seq2seq_forward.9} parent=0 // pred_check
    _
  $region11: #{seq2seq_forward.9} parent=0 // pred_check_branch
    %13 = sbr.rel (0) target = $region13
  $region12: #{seq2seq_forward.9} parent=0 // pred_region
    _
  $region13: #{seq2seq_forward.9} parent=0 // pred_fallthru
    _
  %v15 = vld [vmem:[%s0] sm:$0xf]
  %v16 = vld [vmem:[%s0 + $0x4] sm:$0xf]
  %v17 = vld [vmem:[%s0 + $0x8] sm:$0xf]
  %v18 = vld [vmem:[%s0 + $0xc] sm:$0xf]
  %v19 = vld [vmem:[%s0 + $0x10] sm:$0xf]
  %v20 = vld [vmem:[%s0 + $0x14] sm:$0xf]
  %v21 = vld [vmem:[%s0 + $0x18] sm:$0xf]
  %v22 = vld [vmem:[%s0 + $0x1c] sm:$0xf]
  %v23 = vld [vmem:[%s1] sm:$0xf]
  %v24 = vld [vmem:[%s1 + $0x4] sm:$0xf]
  %v25 = vld [vmem:[%s1 + $0x8] sm:$0xf]
  %v26 = vld [vmem:[%s1 + $0xc] sm:$0xf]
  %v27 = vld [vmem:[%s1 + $0x10] sm:$0xf]
  %v28 = vld [vmem:[%s1 + $0x14] sm:$0xf]
  %v29 = vld [vmem:[%s1 + $0x18] sm:$0xf]
  %v30 = vld [vmem:[%s1 + $0x1c] sm:$0xf]
  %v31 = vld [vmem:[%s1 + $0x20] sm:$0xf]
  %v32 = vld [vmem:[%s1 + $0x24] sm:$0xf]
  %v33 = vld [vmem:[%s1 + $0x28] sm:$0xf]
  %v34 = vld [vmem:[%s1 + $0x2c] sm:$0xf]
  %v35 = vld [vmem:[%s1 + $0x30] sm:$0xf]
  %v36 = vld [vmem:[%s1 + $0x34] sm:$0xf]
  %v37 = vld [vmem:[%s1 + $0x38] sm:$0xf]
  %v38 = vld [vmem:[%s1 + $0x3c] sm:$0xf]
  %v39 = vld [vmem:[%s2] sm:$0x1]
  %v41 = vlaneseq
  %v42 = vshrl.u32 %v41, 7
  %v43 = vsub.s32 0, %v42
  %v44 = vrot.slane %v39, %v43
  %v54 = vunpack.c.l.b16 %v15
  %v55 = vunpack.c.l.b16 %v16
  %v56 = vunpack.c.l.b16 %v17
  %v57 = vunpack.c.l.b16 %v18
  %v58 = vunpack.c.l.b16 %v19
  %v59 = vunpack.c.l.b16 %v20
  %v60 = vunpack.c.l.b16 %v21
  %v61 = vunpack.c.l.b16 %v22
  %v62 = vpack.c.b16 %v55, %v54
  %v63 = vpack.c.b16 %v57, %v56
  %v64 = vpack.c.b16 %v59, %v58
  %v65 = vpack.c.b16 %v61, %v60
  %v86 = vunpack.c.l.b16 %v23
  %v87 = vunpack.c.l.b16 %v24
  %v88 = vunpack.c.l.b16 %v25
  %v89 = vunpack.c.l.b16 %v26
  %v90 = vunpack.c.l.b16 %v27
  %v91 = vunpack.c.l.b16 %v28
  %v92 = vunpack.c.l.b16 %v29
  %v93 = vunpack.c.l.b16 %v30
  %v94 = vunpack.c.l.b16 %v31
  %v95 = vunpack.c.l.b16 %v32
  %v96 = vunpack.c.l.b16 %v33
  %v97 = vunpack.c.l.b16 %v34
  %v98 = vunpack.c.l.b16 %v35
  %v99 = vunpack.c.l.b16 %v36
  %v100 = vunpack.c.l.b16 %v37
  %v101 = vunpack.c.l.b16 %v38
  %v102 = vpack.c.b16 %v87, %v86
  %v103 = vpack.c.b16 %v89, %v88
  %v104 = vpack.c.b16 %v91, %v90
  %v105 = vpack.c.b16 %v93, %v92
  %v106 = vpack.c.b16 %v95, %v94
  %v107 = vpack.c.b16 %v97, %v96
  %v108 = vpack.c.b16 %v99, %v98
  %v109 = vpack.c.b16 %v101, %v100
  %118 = vmatprep.subr.bf16.mxu0 0
  %119 = vmatpush1.bf16.msra.mxu0 %v109
  %120 = vmatprep.subr.bf16.mxu0 0
  %121 = vmatpush1.bf16.msra.mxu0 %v108
  %122 = vmatprep.subr.bf16.mxu0 0
  %123 = vmatpush1.bf16.msra.mxu0 %v107
  %124 = vmatprep.subr.bf16.mxu0 0
  %125 = vmatpush1.bf16.msra.mxu0 %v106
  %126 = vmatprep.subr.bf16.mxu0 0
  %127 = vmatpush1.bf16.msra.mxu0 %v105
  %128 = vmatprep.subr.bf16.mxu0 0
  %129 = vmatpush1.bf16.msra.mxu0 %v104
  %130 = vmatprep.subr.bf16.mxu0 0
  %131 = vmatpush1.bf16.msra.mxu0 %v103
  %132 = vmatprep.subr.bf16.mxu0 0
  %133 = vmatpush1.bf16.msra.mxu0 %v102
  %134 = vmatprep.subr.bf16.mxu0 0
  %135 = vmatpush2.bf16.msra.mxu0 0
  %136 = vmatprep.subr.bf16.mxu0 0
  %137 = vmatpush2.bf16.msra.mxu0 0
  %138 = vmatprep.subr.bf16.mxu0 0
  %139 = vmatpush2.bf16.msra.mxu0 0
  %140 = vmatprep.subr.bf16.mxu0 0
  %141 = vmatpush2.bf16.msra.mxu0 0
  %142 = vmatprep.subr.bf16.mxu0 0
  %143 = vmatpush2.bf16.msra.mxu0 0
  %144 = vmatprep.subr.bf16.mxu0 0
  %145 = vmatpush2.bf16.msra.mxu0 0
  %146 = vmatprep.subr.bf16.mxu0 0
  %147 = vmatpush2.bf16.msra.mxu0 0
  %148 = vmatprep.subr.bf16.mxu0 0
  %149 = vmatpush2.bf16.msra.mxu0 0
  %150 = vmatprep.mubr.bf16.mxu0 0
  %151 = vmatmul.mubr.bf16.gmra.mxu0 %v62
  %v152 = vpop.f32.mrf.mxu0
  %v153 = vadd.f32 %v44, %v152
  %v154 = vpop.f32.mrf.mxu0
  %v155 = vpop.f32.mrf.mxu0
  %v156 = vadd.f32 %v44, %v155
  %v157 = vpop.f32.mrf.mxu0
  %158 = vmatprep.mubr.bf16.mxu0 0
  %159 = vmatmul.mubr.bf16.gmra.mxu0 %v63
  %v160 = vpop.f32.mrf.mxu0
  %v161 = vadd.f32 %v44, %v160
  %v162 = vpop.f32.mrf.mxu0
  %v163 = vpop.f32.mrf.mxu0
  %v164 = vadd.f32 %v44, %v163
  %v165 = vpop.f32.mrf.mxu0
  %166 = vmatprep.mubr.bf16.mxu0 0
  %167 = vmatmul.mubr.bf16.gmra.mxu0 %v64
  %v168 = vpop.f32.mrf.mxu0
  %v169 = vadd.f32 %v44, %v168
  %v170 = vpop.f32.mrf.mxu0
  %v171 = vpop.f32.mrf.mxu0
  %v172 = vadd.f32 %v44, %v171
  %v173 = vpop.f32.mrf.mxu0
  %174 = vmatprep.mubr.bf16.mxu0 0
  %175 = vmatmul.mubr.bf16.gmra.mxu0 %v65
  %v176 = vpop.f32.mrf.mxu0
  %v177 = vadd.f32 %v44, %v176
  %v178 = vpop.f32.mrf.mxu0
  %v179 = vpop.f32.mrf.mxu0
  %v180 = vadd.f32 %v44, %v179
  %v181 = vpop.f32.mrf.mxu0
  %182 = vdwg.mxu0
  %183 = vst [vmem:[%s3] sm:$0xff] %v153
  %184 = vst [vmem:[%s3 + $0x8] sm:$0xff] %v156
  %185 = vst [vmem:[%s3 + $0x10] sm:$0xff] %v161
  %186 = vst [vmem:[%s3 + $0x18] sm:$0xff] %v164
  %187 = vst [vmem:[%s3 + $0x20] sm:$0xff] %v169
  %188 = vst [vmem:[%s3 + $0x28] sm:$0xff] %v172
  %189 = vst [vmem:[%s3 + $0x30] sm:$0xff] %v177
  %190 = vst [vmem:[%s3 + $0x38] sm:$0xff] %v180
  %p191 = scmp.eq.s32.totalorder 0, 0
  // Predicated region
  $region14: #{seq2seq_forward.9} parent=0 // pred_check
    %p192 = pneg %p191
  $region15: #{seq2seq_forward.9} parent=0 // pred_check_branch
    %194 = sbr.rel (%p192) target = $region17
  $region16: #{seq2seq_forward.9} parent=0 // pred_region
    %195 = vst [vmem:[%s3] sm:$0xff] 0.0
  $region17: #{seq2seq_forward.9} parent=0 // pred_fallthru
    _
  // Predicated region
  $region18: #{seq2seq_forward.9} parent=0 // pred_check
    _
  $region19: #{seq2seq_forward.9} parent=0 // pred_check_branch
    %197 = sbr.rel (0) target = $region21
  $region20: #{seq2seq_forward.9} parent=0 // pred_region
    _
  $region21: #{seq2seq_forward.9} parent=0 // pred_fallthru
    _
  // Predicated region
  $region22: #{seq2seq_forward.9} parent=0 // pred_check
    _
  $region23: #{seq2seq_forward.9} parent=0 // pred_check_branch
    %199 = sbr.rel (0) target = $region25
  $region24: #{seq2seq_forward.9} parent=0 // pred_region
    _
  $region25: #{seq2seq_forward.9} parent=0 // pred_fallthru
    _

</llo_original>
